<compile_context>
chip_gen: v7x
topology: tpu7x:2x2x1
jax: 0.10.0
libtpu: 0.0.40
codegen_flags: <defaults>
</compile_context>

<pallas_src>
import functools

import numpy as np
import jax
import jax.numpy as jnp
from jax.experimental import pallas as pl
from jax.experimental.pallas import tpu as pltpu

# ----------------------------- tiny config ---------------------------------
B = 2                # batch
RAW_LEN = 40         # raw waveform samples
CONV_DIM = (16, 32)  # conv feature extractor channel dims
CONV_K = (4, 4)      # conv kernel sizes
CONV_S = (2, 2)      # conv strides
HIDDEN = 32          # transformer hidden size
NUM_HEADS = 4
HEAD_DIM = HIDDEN // NUM_HEADS
NUM_LAYERS = 2
INTERMEDIATE = 64
POS_K = 4            # positional conv kernel (even -> drop last sample, like HF)
POS_GROUPS = 4
POS_PAD = POS_K // 2
LN_EPS = 1e-5
TIME_POOLING = True

T0 = (RAW_LEN - CONV_K[0]) // CONV_S[0] + 1   # frames after conv0 (= 19)
T = (T0 - CONV_K[1]) // CONV_S[1] + 1         # frames after conv1 (= 8)
BT = B * T

# ---- row layout of the packed parameter-vector slab (VEC_NROWS x VEC_W) ----
VEC_W = 128
R_GN_G, R_GN_B = 0, 1
R_FP_LN_G, R_FP_LN_B = 2, 3
R_FP_B, R_POS_B = 4, 5
R_ENC_LN_G, R_ENC_LN_B = 6, 7
R_LAYER0 = 8
ROWS_PER_LAYER = 8      # qkv_b, o_b, ln1_g, ln1_b, ff1_b, ff2_b, ln2_g, ln2_b
VEC_NROWS = R_LAYER0 + ROWS_PER_LAYER * NUM_LAYERS


# ------------------------ in-kernel math helpers ----------------------------
def _gelu(x):
    # tanh-approximate GELU (jnp.tanh -> EUP slot, nearly free).
    # TODO(synk): torch.nn.GELU() is exact erf; tanh approximation deviates ~1e-3.
    c = 0.7978845608028654
    return 0.5 * x * (1.0 + jnp.tanh(c * (x + 0.044715 * x * x * x)))


def _layernorm(x, g, b, eps=LN_EPS):
    mu = jnp.mean(x, axis=-1, keepdims=True)
    var = jnp.mean(jnp.square(x - mu), axis=-1, keepdims=True)
    return (x - mu) * jax.lax.rsqrt(var + eps) * g + b


def _mm(a, b):
    return jnp.dot(a, b, preferred_element_type=jnp.float32)


# ------------------------------ fused kernel --------------------------------
def _w2v2_kernel(
    p0_ref, w0_ref, gsum_ref, bsel_ref, gsel_ref, w1_ref,
    fp_w_ref, pshift_ref, pos_w_ref, mask_ref,
    qkv_w_ref, o_w_ref, ff1_w_ref, ff2_w_ref, pool_ref, vec_ref,
    out_ref, *, time_pooling):
    C0, C1 = CONV_DIM

    def vrow(r, w):
        # static row/lane slice of the packed (VEC_NROWS, VEC_W) bias/gain slab
        return vec_ref[r:r + 1, 0:w]                          # (1, w)

    # ---- conv0 (im2col patches precomputed from the raw input) ----
    y0 = _mm(p0_ref[...], w0_ref[...])                        # (B*T0, C0)

    # ---- GroupNorm (groups == channels): per-(batch, channel) stats over time,
    #      computed with constant averaging / broadcast matrices (pure matmuls) ----
    mu = _mm(gsum_ref[...], y0)                               # (B, C0)
    d = y0 - _mm(bsel_ref[...], mu)                           # centered
    var = _mm(gsum_ref[...], d * d)                           # (B, C0)
    y0 = d * jax.lax.rsqrt(_mm(bsel_ref[...], var) + LN_EPS)
    y0 = _gelu(y0 * vrow(R_GN_G, C0) + vrow(R_GN_B, C0))      # (B*T0, C0)

    # ---- conv1 (stride 2): strided im2col via constant selection matrices ----
    acc = jnp.zeros((BT, C1), jnp.float32)
    for k in range(CONV_K[1]):
        acc = acc + _mm(_mm(gsel_ref[k], y0), w1_ref[k])      # (B*T, C1)
    y1 = _gelu(acc)

    # ---- feature projection: LayerNorm -> Linear ----
    y1 = _layernorm(y1, vrow(R_FP_LN_G, C1), vrow(R_FP_LN_B, C1))
    h0 = _mm(y1, fp_w_ref[...]) + vrow(R_FP_B, HIDDEN)        # (B*T, D)

    # ---- positional conv embedding: grouped conv as block-diagonal matmuls over
    #      time-shifted (zero-padded) copies; even kernel -> last sample removed ----
    pc = jnp.zeros((BT, HIDDEN), jnp.float32)
    for k in range(POS_K):
        pc = pc + _mm(_mm(pshift_ref[k], h0), pos_w_ref[k])
    h = h0 + _gelu(pc + vrow(R_POS_B, HIDDEN))
    h = _layernorm(h, vrow(R_ENC_LN_G, HIDDEN), vrow(R_ENC_LN_B, HIDDEN))

    # ---- transformer encoder layers (post-LN), fully fused ----
    scale = HEAD_DIM ** -0.5
    mask = mask_ref[...]                                      # (B*T, B*T) block-diag
    for l in range(NUM_LAYERS):
        base = R_LAYER0 + l * ROWS_PER_LAYER
        qkv = _mm(h, qkv_w_ref[l]) + vrow(base + 0, 3 * HIDDEN)   # fused QKV
        o_w_l = o_w_ref[l]
        attn = jnp.zeros((BT, HIDDEN), jnp.float32)
        for hh in range(NUM_HEADS):
            c0 = hh * HEAD_DIM
            qh = qkv[:, c0:c0 + HEAD_DIM] * scale
            kh = qkv[:, HIDDEN + c0:HIDDEN + c0 + HEAD_DIM]
            vh = qkv[:, 2 * HIDDEN + c0:2 * HIDDEN + c0 + HEAD_DIM]
            s = jax.lax.dot_general(qh, kh, (((1,), (1,)), ((), ())),
                                    preferred_element_type=jnp.float32)
            s = s + mask                                      # forbid cross-batch attn
            p = jnp.exp(s - jnp.max(s, axis=-1, keepdims=True))
            p = p * pl.reciprocal(jnp.sum(p, axis=-1, keepdims=True), approx=True)
            oh = _mm(p, vh)                                   # (B*T, dh)
            # head-merge fused into the output projection (row-slice of o_w)
            attn = attn + _mm(oh, o_w_l[c0:c0 + HEAD_DIM, :])
        attn = attn + vrow(base + 1, HIDDEN)
        h = _layernorm(h + attn, vrow(base + 2, HIDDEN), vrow(base + 3, HIDDEN))
        f = _gelu(_mm(h, ff1_w_ref[l]) + vrow(base + 4, INTERMEDIATE))
        f = _mm(f, ff2_w_ref[l]) + vrow(base + 5, HIDDEN)
        h = _layernorm(h + f, vrow(base + 6, HIDDEN), vrow(base + 7, HIDDEN))

    # ---- mean-over-time pooling folded into the same kernel ----
    if time_pooling:
        out_ref[...] = _mm(pool_ref[...], h)                  # (B, D)
    else:
        out_ref[...] = h                                      # (B*T, D)


# --------------------- constant selection / averaging matrices ---------------
def _build_constants():
    gsum = np.zeros((B, B * T0), np.float32)   # per-(b) mean over time
    bsel = np.zeros((B * T0, B), np.float32)   # broadcast per-(b) stats back to rows
    for b in range(B):
        gsum[b, b * T0:(b + 1) * T0] = 1.0 / T0
        bsel[b * T0:(b + 1) * T0, b] = 1.0

    # conv1 strided im2col: gsel[k] picks row (b, 2t + k) of the conv0 output
    gsel = np.zeros((CONV_K[1], BT, B * T0), np.float32)
    for k in range(CONV_K[1]):
        for b in range(B):
            for t in range(T):
                gsel[k, b * T + t, b * T0 + t * CONV_S[1] + k] = 1.0

    # positional conv time shifts with zero padding (pad = POS_PAD), per batch block
    pshift = np.zeros((POS_K, BT, BT), np.float32)
    for k in range(POS_K):
        for b in range(B):
            for t in range(T):
                s = t + k - POS_PAD
                if 0 <= s < T:
                    pshift[k, b * T + t, b * T + s] = 1.0

    # mean pooling over time
    pool = np.zeros((B, BT), np.float32)
    for b in range(B):
        pool[b, b * T:(b + 1) * T] = 1.0 / T

    # block-diagonal attention mask: tokens attend only within their own batch
    mask = np.full((BT, BT), -1e30, np.float32)
    for b in range(B):
        mask[b * T:(b + 1) * T, b * T:(b + 1) * T] = 0.0

    arrays = dict(gsum=gsum, bsel=bsel, gsel=gsel, pshift=pshift, pool=pool, mask=mask)
    return {k: jnp.asarray(v) for k, v in arrays.items()}


_CONSTS = _build_constants()


# ------------------------------ forward wrapper ------------------------------
def w2v2_forward(params, x, time_pooling=TIME_POOLING):
    """x: (B, RAW_LEN) raw waveform -> (B, D) if time_pooling else (B, T, D)."""
    C0, C1 = CONV_DIM
    K0, K1 = CONV_K
    cg = HIDDEN // POS_GROUPS

    # conv0 im2col of the raw waveform (input-side layout op, stays in XLA)
    idx = (np.arange(T0) * CONV_S[0])[:, None] + np.arange(K0)[None, :]   # (T0, K0)
    p0 = x[:, idx].reshape(B * T0, K0)

    # tiny weight repacking (fused/const-folded by XLA)
    w0 = params["conv0_w"][:, 0, :].T                                     # (K0, C0)
    w1s = jnp.stack([params["conv1_w"][:, :, k].T for k in range(K1)])    # (K1, C0, C1)

    # grouped positional conv -> per-tap block-diagonal (D, D) weights
    # TODO(synk): HF applies torch weight_norm to pos_conv weight; the effective
    # (already-normalized) weight is initialized directly here.
    posw = params["pos_w"]                                                # (D, cg, K)
    wk_list = []
    for k in range(POS_K):
        wk = jnp.zeros((HIDDEN, HIDDEN), jnp.float32)
        for g in range(POS_GROUPS):
            blk = posw[g * cg:(g + 1) * cg, :, k].T                       # (cg_in, cg_out)
            wk = wk.at[g * cg:(g + 1) * cg, g * cg:(g + 1) * cg].set(blk)
        wk_list.append(wk)
    pos_wbd = jnp.stack(wk_list)                                          # (K, D, D)

    lyr = params["layers"]
    qkv_w = jnp.stack([jnp.concatenate([lp["q_w"], lp["k_w"], lp["v_w"]], axis=1)
                       for lp in lyr])                                    # (L, D, 3D)
    o_w = jnp.stack([lp["o_w"] for lp in lyr])                            # (L, D, D)
    ff1_w = jnp.stack([lp["ff1_w"] for lp in lyr])                        # (L, D, I)
    ff2_w = jnp.stack([lp["ff2_w"] for lp in lyr])                        # (L, I, D)

    # ---- pack ALL tiny gain/bias vectors into one (VEC_NROWS, 128) VMEM slab ----
    def pad_row(v):
        v = jnp.asarray(v, jnp.float32).reshape(-1)
        return jnp.pad(v, (0, VEC_W - v.shape[0]))

    rows = [
        pad_row(params["gn_g"]), pad_row(params["gn_b"]),
        pad_row(params["fp_ln_g"]), pad_row(params["fp_ln_b"]),
        pad_row(params["fp_b"]), pad_row(params["pos_b"]),
        pad_row(params["enc_ln_g"]), pad_row(params["enc_ln_b"]),
    ]
    for lp in lyr:
        rows += [
            pad_row(jnp.concatenate([lp["q_b"], lp["k_b"], lp["v_b"]])),
            pad_row(lp["o_b"]),
            pad_row(lp["ln1_g"]), pad_row(lp["ln1_b"]),
            pad_row(lp["ff1_b"]), pad_row(lp["ff2_b"]),
            pad_row(lp["ln2_g"]), pad_row(lp["ln2_b"]),
        ]
    vecs = jnp.stack(rows)                                                # (24, 128)

    operands = (
        p0, w0, _CONSTS["gsum"], _CONSTS["bsel"], _CONSTS["gsel"], w1s,
        params["fp_w"], _CONSTS["pshift"], pos_wbd, _CONSTS["mask"],
        qkv_w, o_w, ff1_w, ff2_w, _CONSTS["pool"], vecs,
    )

    out_shape = jax.ShapeDtypeStruct(
        (B, HIDDEN) if time_pooling else (BT, HIDDEN), jnp.float32)

    out = pl.pallas_call(
        functools.partial(_w2v2_kernel, time_pooling=time_pooling),
        out_shape=out_shape,
        compiler_params=pltpu.CompilerParams(vmem_limit_bytes=32 * 1024 * 1024),
    )(*operands)

    if not time_pooling:
        out = out.reshape(B, T, HIDDEN)
    return out


# ------------------------------ parameters ----------------------------------
def init_params(key):
    keys = iter(jax.random.split(key, 128))

    def nrm(shape, scale=0.05):
        return scale * jax.random.normal(next(keys), shape, jnp.float32)

    p = {
        "conv0_w": nrm((CONV_DIM[0], 1, CONV_K[0]), 0.2),         # conv_bias=False
        "gn_g": jnp.ones((CONV_DIM[0],), jnp.float32),
        "gn_b": jnp.zeros((CONV_DIM[0],), jnp.float32),
        "conv1_w": nrm((CONV_DIM[1], CONV_DIM[0], CONV_K[1]), 0.2),
        "fp_ln_g": jnp.ones((CONV_DIM[1],), jnp.float32),
        "fp_ln_b": jnp.zeros((CONV_DIM[1],), jnp.float32),
        "fp_w": nrm((CONV_DIM[1], HIDDEN)),
        "fp_b": jnp.zeros((HIDDEN,), jnp.float32),
        "pos_w": nrm((HIDDEN, HIDDEN // POS_GROUPS, POS_K), 0.2),
        "pos_b": jnp.zeros((HIDDEN,), jnp.float32),
        "enc_ln_g": jnp.ones((HIDDEN,), jnp.float32),
        "enc_ln_b": jnp.zeros((HIDDEN,), jnp.float32),
        "layers": [],
    }
    for _ in range(NUM_LAYERS):
        p["layers"].append({
            "q_w": nrm((HIDDEN, HIDDEN)), "q_b": jnp.zeros((HIDDEN,), jnp.float32),
            "k_w": nrm((HIDDEN, HIDDEN)), "k_b": jnp.zeros((HIDDEN,), jnp.float32),
            "v_w": nrm((HIDDEN, HIDDEN)), "v_b": jnp.zeros((HIDDEN,), jnp.float32),
            "o_w": nrm((HIDDEN, HIDDEN)), "o_b": jnp.zeros((HIDDEN,), jnp.float32),
            "ln1_g": jnp.ones((HIDDEN,), jnp.float32),
            "ln1_b": jnp.zeros((HIDDEN,), jnp.float32),
            "ff1_w": nrm((HIDDEN, INTERMEDIATE)),
            "ff1_b": jnp.zeros((INTERMEDIATE,), jnp.float32),
            "ff2_w": nrm((INTERMEDIATE, HIDDEN)),
            "ff2_b": jnp.zeros((HIDDEN,), jnp.float32),
            "ln2_g": jnp.ones((HIDDEN,), jnp.float32),
            "ln2_b": jnp.zeros((HIDDEN,), jnp.float32),
        })
    return p


# --------------------------------- main --------------------------------------
if __name__ == "__main__":
    root = jax.random.PRNGKey(0)
    pkey, xkey = jax.random.split(root)
    params = init_params(pkey)
    x = jax.random.normal(xkey, (B, RAW_LEN), jnp.float32)   # raw waveform batch

    fwd = jax.jit(functools.partial(w2v2_forward, time_pooling=TIME_POOLING))
    out = fwd(params, x)
    out = jax.block_until_ready(out)

    expected = (B, HIDDEN) if TIME_POOLING else (B, T, HIDDEN)
    assert out.shape == expected, f"unexpected output shape {out.shape}"
    assert bool(jnp.all(jnp.isfinite(out))), "non-finite output"
    print("KERNEL_OK")
</pallas_src>

<mosaic_0001>
module attributes {stable_mosaic.version = 11 : i64} {
  func.func @_w2v2_kernel(%arg0: memref<38x4xf32, #tpu.memory_space<vmem>>, %arg1: memref<4x16xf32, #tpu.memory_space<vmem>>, %arg2: memref<2x38xf32, #tpu.memory_space<vmem>>, %arg3: memref<38x2xf32, #tpu.memory_space<vmem>>, %arg4: memref<4x16x38xf32, #tpu.memory_space<vmem>>, %arg5: memref<4x16x32xf32, #tpu.memory_space<vmem>>, %arg6: memref<32x32xf32, #tpu.memory_space<vmem>>, %arg7: memref<4x16x16xf32, #tpu.memory_space<vmem>>, %arg8: memref<4x32x32xf32, #tpu.memory_space<vmem>>, %arg9: memref<16x16xf32, #tpu.memory_space<vmem>>, %arg10: memref<2x32x96xf32, #tpu.memory_space<vmem>>, %arg11: memref<2x32x32xf32, #tpu.memory_space<vmem>>, %arg12: memref<2x32x64xf32, #tpu.memory_space<vmem>>, %arg13: memref<2x64x32xf32, #tpu.memory_space<vmem>>, %arg14: memref<2x16xf32, #tpu.memory_space<vmem>>, %arg15: memref<24x128xf32, #tpu.memory_space<vmem>>, %arg16: memref<2x32xf32, #tpu.memory_space<vmem>>) attributes {dimension_semantics = [], scalar_prefetch = 0 : i64, scratch_operands = 0 : i64, tpu.core_type = #tpu.core_type<tc>} {
    %c0 = arith.constant 0 : index
    %c0_0 = arith.constant 0 : index
    %0 = vector.load %arg0[%c0, %c0_0] : memref<38x4xf32, #tpu.memory_space<vmem>>, vector<38x4xf32>
    %c0_1 = arith.constant 0 : index
    %c0_2 = arith.constant 0 : index
    %1 = vector.load %arg1[%c0_1, %c0_2] : memref<4x16xf32, #tpu.memory_space<vmem>>, vector<4x16xf32>
    %cst = arith.constant dense<0.000000e+00> : vector<38x16xf32>
    %2 = tpu.matmul %0, %1, %cst {dimension_numbers = #tpu.dot_dimension_numbers<[1], [0], [0], [1], [0, 0, 1, 1], [], []>} : vector<38x4xf32>, vector<4x16xf32>, vector<38x16xf32> -> vector<38x16xf32>
    %c0_3 = arith.constant 0 : index
    %c0_4 = arith.constant 0 : index
    %3 = vector.load %arg2[%c0_3, %c0_4] : memref<2x38xf32, #tpu.memory_space<vmem>>, vector<2x38xf32>
    %cst_5 = arith.constant dense<0.000000e+00> : vector<2x16xf32>
    %4 = tpu.matmul %3, %2, %cst_5 {dimension_numbers = #tpu.dot_dimension_numbers<[1], [0], [0], [1], [0, 0, 1, 1], [], []>} : vector<2x38xf32>, vector<38x16xf32>, vector<2x16xf32> -> vector<2x16xf32>
    %c0_6 = arith.constant 0 : index
    %c0_7 = arith.constant 0 : index
    %5 = vector.load %arg3[%c0_6, %c0_7] : memref<38x2xf32, #tpu.memory_space<vmem>>, vector<38x2xf32>
    %cst_8 = arith.constant dense<0.000000e+00> : vector<38x16xf32>
    %6 = tpu.matmul %5, %4, %cst_8 {dimension_numbers = #tpu.dot_dimension_numbers<[1], [0], [0], [1], [0, 0, 1, 1], [], []>} : vector<38x2xf32>, vector<2x16xf32>, vector<38x16xf32> -> vector<38x16xf32>
    %7 = arith.subf %2, %6 : vector<38x16xf32>
    %c0_9 = arith.constant 0 : index
    %c0_10 = arith.constant 0 : index
    %8 = vector.load %arg2[%c0_9, %c0_10] : memref<2x38xf32, #tpu.memory_space<vmem>>, vector<2x38xf32>
    %9 = arith.mulf %7, %7 : vector<38x16xf32>
    %cst_11 = arith.constant dense<0.000000e+00> : vector<2x16xf32>
    %10 = tpu.matmul %8, %9, %cst_11 {dimension_numbers = #tpu.dot_dimension_numbers<[1], [0], [0], [1], [0, 0, 1, 1], [], []>} : vector<2x38xf32>, vector<38x16xf32>, vector<2x16xf32> -> vector<2x16xf32>
    %c0_12 = arith.constant 0 : index
    %c0_13 = arith.constant 0 : index
    %11 = vector.load %arg3[%c0_12, %c0_13] : memref<38x2xf32, #tpu.memory_space<vmem>>, vector<38x2xf32>
    %cst_14 = arith.constant dense<0.000000e+00> : vector<38x16xf32>
    %12 = tpu.matmul %11, %10, %cst_14 {dimension_numbers = #tpu.dot_dimension_numbers<[1], [0], [0], [1], [0, 0, 1, 1], [], []>} : vector<38x2xf32>, vector<2x16xf32>, vector<38x16xf32> -> vector<38x16xf32>
    %cst_15 = arith.constant 9.99999974E-6 : f32
    %13 = vector.broadcast %cst_15 : f32 to vector<38x16xf32>
    %14 = arith.addf %12, %13 : vector<38x16xf32>
    %15 = math.rsqrt %14 : vector<38x16xf32>
    %16 = arith.mulf %7, %15 : vector<38x16xf32>
    %c0_16 = arith.constant 0 : index
    %c0_17 = arith.constant 0 : index
    %17 = vector.load %arg15[%c0_16, %c0_17] : memref<24x128xf32, #tpu.memory_space<vmem>>, vector<1x16xf32>
    %18 = vector.broadcast %17 : vector<1x16xf32> to vector<38x16xf32>
    %19 = arith.mulf %16, %18 : vector<38x16xf32>
    %c1 = arith.constant 1 : index
    %c0_18 = arith.constant 0 : index
    %20 = vector.load %arg15[%c1, %c0_18] : memref<24x128xf32, #tpu.memory_space<vmem>>, vector<1x16xf32>
    %21 = vector.broadcast %20 : vector<1x16xf32> to vector<38x16xf32>
    %22 = arith.addf %19, %21 : vector<38x16xf32>
    %cst_19 = arith.constant 5.000000e-01 : f32
    %23 = vector.broadcast %cst_19 : f32 to vector<38x16xf32>
    %24 = arith.mulf %23, %22 : vector<38x16xf32>
    %cst_20 = arith.constant 4.471500e-02 : f32
    %25 = vector.broadcast %cst_20 : f32 to vector<38x16xf32>
    %26 = arith.mulf %25, %22 : vector<38x16xf32>
    %27 = arith.mulf %26, %22 : vector<38x16xf32>
    %28 = arith.mulf %27, %22 : vector<38x16xf32>
    %29 = arith.addf %22, %28 : vector<38x16xf32>
    %cst_21 = arith.constant 0.797884583 : f32
    %30 = vector.broadcast %cst_21 : f32 to vector<38x16xf32>
    %31 = arith.mulf %30, %29 : vector<38x16xf32>
    %32 = math.tanh %31 : vector<38x16xf32>
    %cst_22 = arith.constant 1.000000e+00 : f32
    %33 = vector.broadcast %cst_22 : f32 to vector<38x16xf32>
    %34 = arith.addf %33, %32 : vector<38x16xf32>
    %35 = arith.mulf %24, %34 : vector<38x16xf32>
    %cst_23 = arith.constant 0.000000e+00 : f32
    %36 = vector.broadcast %cst_23 : f32 to vector<16x32xf32>
    %c0_24 = arith.constant 0 : index
    %c0_25 = arith.constant 0 : index
    %c0_26 = arith.constant 0 : index
    %37 = vector.load %arg4[%c0_24, %c0_25, %c0_26] : memref<4x16x38xf32, #tpu.memory_space<vmem>>, vector<1x16x38xf32>
    %38 = vector.shape_cast %37 : vector<1x16x38xf32> to vector<16x38xf32>
    %cst_27 = arith.constant dense<0.000000e+00> : vector<16x16xf32>
    %39 = tpu.matmul %38, %35, %cst_27 {dimension_numbers = #tpu.dot_dimension_numbers<[1], [0], [0], [1], [0, 0, 1, 1], [], []>} : vector<16x38xf32>, vector<38x16xf32>, vector<16x16xf32> -> vector<16x16xf32>
    %c0_28 = arith.constant 0 : index
    %c0_29 = arith.constant 0 : index
    %c0_30 = arith.constant 0 : index
    %40 = vector.load %arg5[%c0_28, %c0_29, %c0_30] : memref<4x16x32xf32, #tpu.memory_space<vmem>>, vector<1x16x32xf32>
    %41 = vector.shape_cast %40 : vector<1x16x32xf32> to vector<16x32xf32>
    %cst_31 = arith.constant dense<0.000000e+00> : vector<16x32xf32>
    %42 = tpu.matmul %39, %41, %cst_31 {dimension_numbers = #tpu.dot_dimension_numbers<[1], [0], [0], [1], [0, 0, 1, 1], [], []>} : vector<16x16xf32>, vector<16x32xf32>, vector<16x32xf32> -> vector<16x32xf32>
    %43 = arith.addf %36, %42 : vector<16x32xf32>
    %c1_32 = arith.constant 1 : index
    %c0_33 = arith.constant 0 : index
    %c0_34 = arith.constant 0 : index
    %44 = vector.load %arg4[%c1_32, %c0_33, %c0_34] : memref<4x16x38xf32, #tpu.memory_space<vmem>>, vector<1x16x38xf32>
    %45 = vector.shape_cast %44 : vector<1x16x38xf32> to vector<16x38xf32>
    %cst_35 = arith.constant dense<0.000000e+00> : vector<16x16xf32>
    %46 = tpu.matmul %45, %35, %cst_35 {dimension_numbers = #tpu.dot_dimension_numbers<[1], [0], [0], [1], [0, 0, 1, 1], [], []>} : vector<16x38xf32>, vector<38x16xf32>, vector<16x16xf32> -> vector<16x16xf32>
    %c1_36 = arith.constant 1 : index
    %c0_37 = arith.constant 0 : index
    %c0_38 = arith.constant 0 : index
    %47 = vector.load %arg5[%c1_36, %c0_37, %c0_38] : memref<4x16x32xf32, #tpu.memory_space<vmem>>, vector<1x16x32xf32>
    %48 = vector.shape_cast %47 : vector<1x16x32xf32> to vector<16x32xf32>
    %cst_39 = arith.constant dense<0.000000e+00> : vector<16x32xf32>
    %49 = tpu.matmul %46, %48, %cst_39 {dimension_numbers = #tpu.dot_dimension_numbers<[1], [0], [0], [1], [0, 0, 1, 1], [], []>} : vector<16x16xf32>, vector<16x32xf32>, vector<16x32xf32> -> vector<16x32xf32>
    %50 = arith.addf %43, %49 : vector<16x32xf32>
    %c2 = arith.constant 2 : index
    %c0_40 = arith.constant 0 : index
    %c0_41 = arith.constant 0 : index
    %51 = vector.load %arg4[%c2, %c0_40, %c0_41] : memref<4x16x38xf32, #tpu.memory_space<vmem>>, vector<1x16x38xf32>
    %52 = vector.shape_cast %51 : vector<1x16x38xf32> to vector<16x38xf32>
    %cst_42 = arith.constant dense<0.000000e+00> : vector<16x16xf32>
    %53 = tpu.matmul %52, %35, %cst_42 {dimension_numbers = #tpu.dot_dimension_numbers<[1], [0], [0], [1], [0, 0, 1, 1], [], []>} : vector<16x38xf32>, vector<38x16xf32>, vector<16x16xf32> -> vector<16x16xf32>
    %c2_43 = arith.constant 2 : index
    %c0_44 = arith.constant 0 : index
    %c0_45 = arith.constant 0 : index
    %54 = vector.load %arg5[%c2_43, %c0_44, %c0_45] : memref<4x16x32xf32, #tpu.memory_space<vmem>>, vector<1x16x32xf32>
    %55 = vector.shape_cast %54 : vector<1x16x32xf32> to vector<16x32xf32>
    %cst_46 = arith.constant dense<0.000000e+00> : vector<16x32xf32>
    %56 = tpu.matmul %53, %55, %cst_46 {dimension_numbers = #tpu.dot_dimension_numbers<[1], [0], [0], [1], [0, 0, 1, 1], [], []>} : vector<16x16xf32>, vector<16x32xf32>, vector<16x32xf32> -> vector<16x32xf32>
    %57 = arith.addf %50, %56 : vector<16x32xf32>
    %c3 = arith.constant 3 : index
    %c0_47 = arith.constant 0 : index
    %c0_48 = arith.constant 0 : index
    %58 = vector.load %arg4[%c3, %c0_47, %c0_48] : memref<4x16x38xf32, #tpu.memory_space<vmem>>, vector<1x16x38xf32>
    %59 = vector.shape_cast %58 : vector<1x16x38xf32> to vector<16x38xf32>
    %cst_49 = arith.constant dense<0.000000e+00> : vector<16x16xf32>
    %60 = tpu.matmul %59, %35, %cst_49 {dimension_numbers = #tpu.dot_dimension_numbers<[1], [0], [0], [1], [0, 0, 1, 1], [], []>} : vector<16x38xf32>, vector<38x16xf32>, vector<16x16xf32> -> vector<16x16xf32>
    %c3_50 = arith.constant 3 : index
    %c0_51 = arith.constant 0 : index
    %c0_52 = arith.constant 0 : index
    %61 = vector.load %arg5[%c3_50, %c0_51, %c0_52] : memref<4x16x32xf32, #tpu.memory_space<vmem>>, vector<1x16x32xf32>
    %62 = vector.shape_cast %61 : vector<1x16x32xf32> to vector<16x32xf32>
    %cst_53 = arith.constant dense<0.000000e+00> : vector<16x32xf32>
    %63 = tpu.matmul %60, %62, %cst_53 {dimension_numbers = #tpu.dot_dimension_numbers<[1], [0], [0], [1], [0, 0, 1, 1], [], []>} : vector<16x16xf32>, vector<16x32xf32>, vector<16x32xf32> -> vector<16x32xf32>
    %64 = arith.addf %57, %63 : vector<16x32xf32>
    %cst_54 = arith.constant 5.000000e-01 : f32
    %65 = vector.broadcast %cst_54 : f32 to vector<16x32xf32>
    %66 = arith.mulf %65, %64 : vector<16x32xf32>
    %cst_55 = arith.constant 4.471500e-02 : f32
    %67 = vector.broadcast %cst_55 : f32 to vector<16x32xf32>
    %68 = arith.mulf %67, %64 : vector<16x32xf32>
    %69 = arith.mulf %68, %64 : vector<16x32xf32>
    %70 = arith.mulf %69, %64 : vector<16x32xf32>
    %71 = arith.addf %64, %70 : vector<16x32xf32>
    %cst_56 = arith.constant 0.797884583 : f32
    %72 = vector.broadcast %cst_56 : f32 to vector<16x32xf32>
    %73 = arith.mulf %72, %71 : vector<16x32xf32>
    %74 = math.tanh %73 : vector<16x32xf32>
    %cst_57 = arith.constant 1.000000e+00 : f32
    %75 = vector.broadcast %cst_57 : f32 to vector<16x32xf32>
    %76 = arith.addf %75, %74 : vector<16x32xf32>
    %77 = arith.mulf %66, %76 : vector<16x32xf32>
    %c2_58 = arith.constant 2 : index
    %c0_59 = arith.constant 0 : index
    %78 = vector.load %arg15[%c2_58, %c0_59] : memref<24x128xf32, #tpu.memory_space<vmem>>, vector<1x32xf32>
    %c3_60 = arith.constant 3 : index
    %c0_61 = arith.constant 0 : index
    %79 = vector.load %arg15[%c3_60, %c0_61] : memref<24x128xf32, #tpu.memory_space<vmem>>, vector<1x32xf32>
    %cst_62 = arith.constant dense<0.000000e+00> : vector<16xf32>
    %80 = vector.multi_reduction <add>, %77, %cst_62 [1] : vector<16x32xf32> to vector<16xf32>
    %81 = vector.shape_cast %80 : vector<16xf32> to vector<16x1xf32>
    %cst_63 = arith.constant 3.200000e+01 : f32
    %82 = vector.broadcast %cst_63 : f32 to vector<16x1xf32>
    %83 = arith.divf %81, %82 : vector<16x1xf32>
    %84 = vector.broadcast %83 : vector<16x1xf32> to vector<16x32xf32>
    %85 = arith.subf %77, %84 : vector<16x32xf32>
    %86 = arith.mulf %85, %85 : vector<16x32xf32>
    %cst_64 = arith.constant dense<0.000000e+00> : vector<16xf32>
    %87 = vector.multi_reduction <add>, %86, %cst_64 [1] : vector<16x32xf32> to vector<16xf32>
    %88 = vector.shape_cast %87 : vector<16xf32> to vector<16x1xf32>
    %cst_65 = arith.constant 3.200000e+01 : f32
    %89 = vector.broadcast %cst_65 : f32 to vector<16x1xf32>
    %90 = arith.divf %88, %89 : vector<16x1xf32>
    %91 = vector.broadcast %83 : vector<16x1xf32> to vector<16x32xf32>
    %92 = arith.subf %77, %91 : vector<16x32xf32>
    %cst_66 = arith.constant 9.99999974E-6 : f32
    %93 = vector.broadcast %cst_66 : f32 to vector<16x1xf32>
    %94 = arith.addf %90, %93 : vector<16x1xf32>
    %95 = math.rsqrt %94 : vector<16x1xf32>
    %96 = vector.broadcast %95 : vector<16x1xf32> to vector<16x32xf32>
    %97 = arith.mulf %92, %96 : vector<16x32xf32>
    %98 = vector.broadcast %78 : vector<1x32xf32> to vector<16x32xf32>
    %99 = arith.mulf %97, %98 : vector<16x32xf32>
    %100 = vector.broadcast %79 : vector<1x32xf32> to vector<16x32xf32>
    %101 = arith.addf %99, %100 : vector<16x32xf32>
    %c0_67 = arith.constant 0 : index
    %c0_68 = arith.constant 0 : index
    %102 = vector.load %arg6[%c0_67, %c0_68] : memref<32x32xf32, #tpu.memory_space<vmem>>, vector<32x32xf32>
    %cst_69 = arith.constant dense<0.000000e+00> : vector<16x32xf32>
    %103 = tpu.matmul %101, %102, %cst_69 {dimension_numbers = #tpu.dot_dimension_numbers<[1], [0], [0], [1], [0, 0, 1, 1], [], []>} : vector<16x32xf32>, vector<32x32xf32>, vector<16x32xf32> -> vector<16x32xf32>
    %c4 = arith.constant 4 : index
    %c0_70 = arith.constant 0 : index
    %104 = vector.load %arg15[%c4, %c0_70] : memref<24x128xf32, #tpu.memory_space<vmem>>, vector<1x32xf32>
    %105 = vector.broadcast %104 : vector<1x32xf32> to vector<16x32xf32>
    %106 = arith.addf %103, %105 : vector<16x32xf32>
    %cst_71 = arith.constant 0.000000e+00 : f32
    %107 = vector.broadcast %cst_71 : f32 to vector<16x32xf32>
    %c0_72 = arith.constant 0 : index
    %c0_73 = arith.constant 0 : index
    %c0_74 = arith.constant 0 : index
    %108 = vector.load %arg7[%c0_72, %c0_73, %c0_74] : memref<4x16x16xf32, #tpu.memory_space<vmem>>, vector<1x16x16xf32>
    %109 = vector.shape_cast %108 : vector<1x16x16xf32> to vector<16x16xf32>
    %cst_75 = arith.constant dense<0.000000e+00> : vector<16x32xf32>
    %110 = tpu.matmul %109, %106, %cst_75 {dimension_numbers = #tpu.dot_dimension_numbers<[1], [0], [0], [1], [0, 0, 1, 1], [], []>} : vector<16x16xf32>, vector<16x32xf32>, vector<16x32xf32> -> vector<16x32xf32>
    %c0_76 = arith.constant 0 : index
    %c0_77 = arith.constant 0 : index
    %c0_78 = arith.constant 0 : index
    %111 = vector.load %arg8[%c0_76, %c0_77, %c0_78] : memref<4x32x32xf32, #tpu.memory_space<vmem>>, vector<1x32x32xf32>
    %112 = vector.shape_cast %111 : vector<1x32x32xf32> to vector<32x32xf32>
    %cst_79 = arith.constant dense<0.000000e+00> : vector<16x32xf32>
    %113 = tpu.matmul %110, %112, %cst_79 {dimension_numbers = #tpu.dot_dimension_numbers<[1], [0], [0], [1], [0, 0, 1, 1], [], []>} : vector<16x32xf32>, vector<32x32xf32>, vector<16x32xf32> -> vector<16x32xf32>
    %114 = arith.addf %107, %113 : vector<16x32xf32>
    %c1_80 = arith.constant 1 : index
    %c0_81 = arith.constant 0 : index
    %c0_82 = arith.constant 0 : index
    %115 = vector.load %arg7[%c1_80, %c0_81, %c0_82] : memref<4x16x16xf32, #tpu.memory_space<vmem>>, vector<1x16x16xf32>
    %116 = vector.shape_cast %115 : vector<1x16x16xf32> to vector<16x16xf32>
    %cst_83 = arith.constant dense<0.000000e+00> : vector<16x32xf32>
    %117 = tpu.matmul %116, %106, %cst_83 {dimension_numbers = #tpu.dot_dimension_numbers<[1], [0], [0], [1], [0, 0, 1, 1], [], []>} : vector<16x16xf32>, vector<16x32xf32>, vector<16x32xf32> -> vector<16x32xf32>
    %c1_84 = arith.constant 1 : index
    %c0_85 = arith.constant 0 : index
    %c0_86 = arith.constant 0 : index
    %118 = vector.load %arg8[%c1_84, %c0_85, %c0_86] : memref<4x32x32xf32, #tpu.memory_space<vmem>>, vector<1x32x32xf32>
    %119 = vector.shape_cast %118 : vector<1x32x32xf32> to vector<32x32xf32>
    %cst_87 = arith.constant dense<0.000000e+00> : vector<16x32xf32>
    %120 = tpu.matmul %117, %119, %cst_87 {dimension_numbers = #tpu.dot_dimension_numbers<[1], [0], [0], [1], [0, 0, 1, 1], [], []>} : vector<16x32xf32>, vector<32x32xf32>, vector<16x32xf32> -> vector<16x32xf32>
    %121 = arith.addf %114, %120 : vector<16x32xf32>
    %c2_88 = arith.constant 2 : index
    %c0_89 = arith.constant 0 : index
    %c0_90 = arith.constant 0 : index
    %122 = vector.load %arg7[%c2_88, %c0_89, %c0_90] : memref<4x16x16xf32, #tpu.memory_space<vmem>>, vector<1x16x16xf32>
    %123 = vector.shape_cast %122 : vector<1x16x16xf32> to vector<16x16xf32>
    %cst_91 = arith.constant dense<0.000000e+00> : vector<16x32xf32>
    %124 = tpu.matmul %123, %106, %cst_91 {dimension_numbers = #tpu.dot_dimension_numbers<[1], [0], [0], [1], [0, 0, 1, 1], [], []>} : vector<16x16xf32>, vector<16x32xf32>, vector<16x32xf32> -> vector<16x32xf32>
    %c2_92 = arith.constant 2 : index
    %c0_93 = arith.constant 0 : index
    %c0_94 = arith.constant 0 : index
    %125 = vector.load %arg8[%c2_92, %c0_93, %c0_94] : memref<4x32x32xf32, #tpu.memory_space<vmem>>, vector<1x32x32xf32>
    %126 = vector.shape_cast %125 : vector<1x32x32xf32> to vector<32x32xf32>
    %cst_95 = arith.constant dense<0.000000e+00> : vector<16x32xf32>
    %127 = tpu.matmul %124, %126, %cst_95 {dimension_numbers = #tpu.dot_dimension_numbers<[1], [0], [0], [1], [0, 0, 1, 1], [], []>} : vector<16x32xf32>, vector<32x32xf32>, vector<16x32xf32> -> vector<16x32xf32>
    %128 = arith.addf %121, %127 : vector<16x32xf32>
    %c3_96 = arith.constant 3 : index
    %c0_97 = arith.constant 0 : index
    %c0_98 = arith.constant 0 : index
    %129 = vector.load %arg7[%c3_96, %c0_97, %c0_98] : memref<4x16x16xf32, #tpu.memory_space<vmem>>, vector<1x16x16xf32>
    %130 = vector.shape_cast %129 : vector<1x16x16xf32> to vector<16x16xf32>
    %cst_99 = arith.constant dense<0.000000e+00> : vector<16x32xf32>
    %131 = tpu.matmul %130, %106, %cst_99 {dimension_numbers = #tpu.dot_dimension_numbers<[1], [0], [0], [1], [0, 0, 1, 1], [], []>} : vector<16x16xf32>, vector<16x32xf32>, vector<16x32xf32> -> vector<16x32xf32>
    %c3_100 = arith.constant 3 : index
    %c0_101 = arith.constant 0 : index
    %c0_102 = arith.constant 0 : index
    %132 = vector.load %arg8[%c3_100, %c0_101, %c0_102] : memref<4x32x32xf32, #tpu.memory_space<vmem>>, vector<1x32x32xf32>
    %133 = vector.shape_cast %132 : vector<1x32x32xf32> to vector<32x32xf32>
    %cst_103 = arith.constant dense<0.000000e+00> : vector<16x32xf32>
    %134 = tpu.matmul %131, %133, %cst_103 {dimension_numbers = #tpu.dot_dimension_numbers<[1], [0], [0], [1], [0, 0, 1, 1], [], []>} : vector<16x32xf32>, vector<32x32xf32>, vector<16x32xf32> -> vector<16x32xf32>
    %135 = arith.addf %128, %134 : vector<16x32xf32>
    %c5 = arith.constant 5 : index
    %c0_104 = arith.constant 0 : index
    %136 = vector.load %arg15[%c5, %c0_104] : memref<24x128xf32, #tpu.memory_space<vmem>>, vector<1x32xf32>
    %137 = vector.broadcast %136 : vector<1x32xf32> to vector<16x32xf32>
    %138 = arith.addf %135, %137 : vector<16x32xf32>
    %cst_105 = arith.constant 5.000000e-01 : f32
    %139 = vector.broadcast %cst_105 : f32 to vector<16x32xf32>
    %140 = arith.mulf %139, %138 : vector<16x32xf32>
    %cst_106 = arith.constant 4.471500e-02 : f32
    %141 = vector.broadcast %cst_106 : f32 to vector<16x32xf32>
    %142 = arith.mulf %141, %138 : vector<16x32xf32>
    %143 = arith.mulf %142, %138 : vector<16x32xf32>
    %144 = arith.mulf %143, %138 : vector<16x32xf32>
    %145 = arith.addf %138, %144 : vector<16x32xf32>
    %cst_107 = arith.constant 0.797884583 : f32
    %146 = vector.broadcast %cst_107 : f32 to vector<16x32xf32>
    %147 = arith.mulf %146, %145 : vector<16x32xf32>
    %148 = math.tanh %147 : vector<16x32xf32>
    %cst_108 = arith.constant 1.000000e+00 : f32
    %149 = vector.broadcast %cst_108 : f32 to vector<16x32xf32>
    %150 = arith.addf %149, %148 : vector<16x32xf32>
    %151 = arith.mulf %140, %150 : vector<16x32xf32>
    %152 = arith.addf %106, %151 : vector<16x32xf32>
    %c6 = arith.constant 6 : index
    %c0_109 = arith.constant 0 : index
    %153 = vector.load %arg15[%c6, %c0_109] : memref<24x128xf32, #tpu.memory_space<vmem>>, vector<1x32xf32>
    %c7 = arith.constant 7 : index
    %c0_110 = arith.constant 0 : index
    %154 = vector.load %arg15[%c7, %c0_110] : memref<24x128xf32, #tpu.memory_space<vmem>>, vector<1x32xf32>
    %cst_111 = arith.constant dense<0.000000e+00> : vector<16xf32>
    %155 = vector.multi_reduction <add>, %152, %cst_111 [1] : vector<16x32xf32> to vector<16xf32>
    %156 = vector.shape_cast %155 : vector<16xf32> to vector<16x1xf32>
    %cst_112 = arith.constant 3.200000e+01 : f32
    %157 = vector.broadcast %cst_112 : f32 to vector<16x1xf32>
    %158 = arith.divf %156, %157 : vector<16x1xf32>
    %159 = vector.broadcast %158 : vector<16x1xf32> to vector<16x32xf32>
    %160 = arith.subf %152, %159 : vector<16x32xf32>
    %161 = arith.mulf %160, %160 : vector<16x32xf32>
    %cst_113 = arith.constant dense<0.000000e+00> : vector<16xf32>
    %162 = vector.multi_reduction <add>, %161, %cst_113 [1] : vector<16x32xf32> to vector<16xf32>
    %163 = vector.shape_cast %162 : vector<16xf32> to vector<16x1xf32>
    %cst_114 = arith.constant 3.200000e+01 : f32
    %164 = vector.broadcast %cst_114 : f32 to vector<16x1xf32>
    %165 = arith.divf %163, %164 : vector<16x1xf32>
    %166 = vector.broadcast %158 : vector<16x1xf32> to vector<16x32xf32>
    %167 = arith.subf %152, %166 : vector<16x32xf32>
    %cst_115 = arith.constant 9.99999974E-6 : f32
    %168 = vector.broadcast %cst_115 : f32 to vector<16x1xf32>
    %169 = arith.addf %165, %168 : vector<16x1xf32>
    %170 = math.rsqrt %169 : vector<16x1xf32>
    %171 = vector.broadcast %170 : vector<16x1xf32> to vector<16x32xf32>
    %172 = arith.mulf %167, %171 : vector<16x32xf32>
    %173 = vector.broadcast %153 : vector<1x32xf32> to vector<16x32xf32>
    %174 = arith.mulf %172, %173 : vector<16x32xf32>
    %175 = vector.broadcast %154 : vector<1x32xf32> to vector<16x32xf32>
    %176 = arith.addf %174, %175 : vector<16x32xf32>
    %c0_116 = arith.constant 0 : index
    %c0_117 = arith.constant 0 : index
    %177 = vector.load %arg9[%c0_116, %c0_117] : memref<16x16xf32, #tpu.memory_space<vmem>>, vector<16x16xf32>
    %c0_118 = arith.constant 0 : index
    %c0_119 = arith.constant 0 : index
    %c0_120 = arith.constant 0 : index
    %178 = vector.load %arg10[%c0_118, %c0_119, %c0_120] : memref<2x32x96xf32, #tpu.memory_space<vmem>>, vector<1x32x96xf32>
    %179 = vector.shape_cast %178 : vector<1x32x96xf32> to vector<32x96xf32>
    %cst_121 = arith.constant dense<0.000000e+00> : vector<16x96xf32>
    %180 = tpu.matmul %176, %179, %cst_121 {dimension_numbers = #tpu.dot_dimension_numbers<[1], [0], [0], [1], [0, 0, 1, 1], [], []>} : vector<16x32xf32>, vector<32x96xf32>, vector<16x96xf32> -> vector<16x96xf32>
    %c8 = arith.constant 8 : index
    %c0_122 = arith.constant 0 : index
    %181 = vector.load %arg15[%c8, %c0_122] : memref<24x128xf32, #tpu.memory_space<vmem>>, vector<1x96xf32>
    %182 = vector.broadcast %181 : vector<1x96xf32> to vector<16x96xf32>
    %183 = arith.addf %180, %182 : vector<16x96xf32>
    %c0_123 = arith.constant 0 : index
    %c0_124 = arith.constant 0 : index
    %c0_125 = arith.constant 0 : index
    %184 = vector.load %arg11[%c0_123, %c0_124, %c0_125] : memref<2x32x32xf32, #tpu.memory_space<vmem>>, vector<1x32x32xf32>
    %185 = vector.shape_cast %184 : vector<1x32x32xf32> to vector<32x32xf32>
    %cst_126 = arith.constant 0.000000e+00 : f32
    %186 = vector.broadcast %cst_126 : f32 to vector<16x32xf32>
    %187 = vector.extract_strided_slice %183 {offsets = [0, 0], sizes = [16, 8], strides = [1, 1]} : vector<16x96xf32> to vector<16x8xf32>
    %cst_127 = arith.constant 0.353553385 : f32
    %188 = vector.broadcast %cst_127 : f32 to vector<16x8xf32>
    %189 = arith.mulf %187, %188 : vector<16x8xf32>
    %190 = vector.extract_strided_slice %183 {offsets = [0, 32], sizes = [16, 8], strides = [1, 1]} : vector<16x96xf32> to vector<16x8xf32>
    %191 = vector.extract_strided_slice %183 {offsets = [0, 64], sizes = [16, 8], strides = [1, 1]} : vector<16x96xf32> to vector<16x8xf32>
    %cst_128 = arith.constant dense<0.000000e+00> : vector<16x16xf32>
    %192 = tpu.matmul %189, %190, %cst_128 {dimension_numbers = #tpu.dot_dimension_numbers<[1], [1], [0], [0], [0, 0, 1, 0], [], []>} : vector<16x8xf32>, vector<16x8xf32>, vector<16x16xf32> -> vector<16x16xf32>
    %193 = arith.addf %192, %177 : vector<16x16xf32>
    %cst_129 = arith.constant dense<0xFF800000> : vector<16xf32>
    %194 = vector.multi_reduction <maximumf>, %193, %cst_129 [1] : vector<16x16xf32> to vector<16xf32>
    %195 = vector.shape_cast %194 : vector<16xf32> to vector<16x1xf32>
    %196 = vector.broadcast %195 : vector<16x1xf32> to vector<16x16xf32>
    %197 = arith.subf %193, %196 : vector<16x16xf32>
    %198 = math.exp %197 : vector<16x16xf32>
    %cst_130 = arith.constant dense<0.000000e+00> : vector<16xf32>
    %199 = vector.multi_reduction <add>, %198, %cst_130 [1] : vector<16x16xf32> to vector<16xf32>
    %200 = vector.shape_cast %199 : vector<16xf32> to vector<16x1xf32>
    %201 = tpu.reciprocal %200 {approx = true} : vector<16x1xf32> -> vector<16x1xf32>
    %202 = vector.broadcast %201 : vector<16x1xf32> to vector<16x16xf32>
    %203 = arith.mulf %198, %202 : vector<16x16xf32>
    %cst_131 = arith.constant dense<0.000000e+00> : vector<16x8xf32>
    %204 = tpu.matmul %203, %191, %cst_131 {dimension_numbers = #tpu.dot_dimension_numbers<[1], [0], [0], [1], [0, 0, 1, 1], [], []>} : vector<16x16xf32>, vector<16x8xf32>, vector<16x8xf32> -> vector<16x8xf32>
    %205 = vector.extract_strided_slice %185 {offsets = [0, 0], sizes = [8, 32], strides = [1, 1]} : vector<32x32xf32> to vector<8x32xf32>
    %cst_132 = arith.constant dense<0.000000e+00> : vector<16x32xf32>
    %206 = tpu.matmul %204, %205, %cst_132 {dimension_numbers = #tpu.dot_dimension_numbers<[1], [0], [0], [1], [0, 0, 1, 1], [], []>} : vector<16x8xf32>, vector<8x32xf32>, vector<16x32xf32> -> vector<16x32xf32>
    %207 = arith.addf %186, %206 : vector<16x32xf32>
    %208 = vector.extract_strided_slice %183 {offsets = [0, 8], sizes = [16, 8], strides = [1, 1]} : vector<16x96xf32> to vector<16x8xf32>
    %cst_133 = arith.constant 0.353553385 : f32
    %209 = vector.broadcast %cst_133 : f32 to vector<16x8xf32>
    %210 = arith.mulf %208, %209 : vector<16x8xf32>
    %211 = vector.extract_strided_slice %183 {offsets = [0, 40], sizes = [16, 8], strides = [1, 1]} : vector<16x96xf32> to vector<16x8xf32>
    %212 = vector.extract_strided_slice %183 {offsets = [0, 72], sizes = [16, 8], strides = [1, 1]} : vector<16x96xf32> to vector<16x8xf32>
    %cst_134 = arith.constant dense<0.000000e+00> : vector<16x16xf32>
    %213 = tpu.matmul %210, %211, %cst_134 {dimension_numbers = #tpu.dot_dimension_numbers<[1], [1], [0], [0], [0, 0, 1, 0], [], []>} : vector<16x8xf32>, vector<16x8xf32>, vector<16x16xf32> -> vector<16x16xf32>
    %214 = arith.addf %213, %177 : vector<16x16xf32>
    %cst_135 = arith.constant dense<0xFF800000> : vector<16xf32>
    %215 = vector.multi_reduction <maximumf>, %214, %cst_135 [1] : vector<16x16xf32> to vector<16xf32>
    %216 = vector.shape_cast %215 : vector<16xf32> to vector<16x1xf32>
    %217 = vector.broadcast %216 : vector<16x1xf32> to vector<16x16xf32>
    %218 = arith.subf %214, %217 : vector<16x16xf32>
    %219 = math.exp %218 : vector<16x16xf32>
    %cst_136 = arith.constant dense<0.000000e+00> : vector<16xf32>
    %220 = vector.multi_reduction <add>, %219, %cst_136 [1] : vector<16x16xf32> to vector<16xf32>
    %221 = vector.shape_cast %220 : vector<16xf32> to vector<16x1xf32>
    %222 = tpu.reciprocal %221 {approx = true} : vector<16x1xf32> -> vector<16x1xf32>
    %223 = vector.broadcast %222 : vector<16x1xf32> to vector<16x16xf32>
    %224 = arith.mulf %219, %223 : vector<16x16xf32>
    %cst_137 = arith.constant dense<0.000000e+00> : vector<16x8xf32>
    %225 = tpu.matmul %224, %212, %cst_137 {dimension_numbers = #tpu.dot_dimension_numbers<[1], [0], [0], [1], [0, 0, 1, 1], [], []>} : vector<16x16xf32>, vector<16x8xf32>, vector<16x8xf32> -> vector<16x8xf32>
    %226 = vector.extract_strided_slice %185 {offsets = [8, 0], sizes = [8, 32], strides = [1, 1]} : vector<32x32xf32> to vector<8x32xf32>
    %cst_138 = arith.constant dense<0.000000e+00> : vector<16x32xf32>
    %227 = tpu.matmul %225, %226, %cst_138 {dimension_numbers = #tpu.dot_dimension_numbers<[1], [0], [0], [1], [0, 0, 1, 1], [], []>} : vector<16x8xf32>, vector<8x32xf32>, vector<16x32xf32> -> vector<16x32xf32>
    %228 = arith.addf %207, %227 : vector<16x32xf32>
    %229 = vector.extract_strided_slice %183 {offsets = [0, 16], sizes = [16, 8], strides = [1, 1]} : vector<16x96xf32> to vector<16x8xf32>
    %cst_139 = arith.constant 0.353553385 : f32
    %230 = vector.broadcast %cst_139 : f32 to vector<16x8xf32>
    %231 = arith.mulf %229, %230 : vector<16x8xf32>
    %232 = vector.extract_strided_slice %183 {offsets = [0, 48], sizes = [16, 8], strides = [1, 1]} : vector<16x96xf32> to vector<16x8xf32>
    %233 = vector.extract_strided_slice %183 {offsets = [0, 80], sizes = [16, 8], strides = [1, 1]} : vector<16x96xf32> to vector<16x8xf32>
    %cst_140 = arith.constant dense<0.000000e+00> : vector<16x16xf32>
    %234 = tpu.matmul %231, %232, %cst_140 {dimension_numbers = #tpu.dot_dimension_numbers<[1], [1], [0], [0], [0, 0, 1, 0], [], []>} : vector<16x8xf32>, vector<16x8xf32>, vector<16x16xf32> -> vector<16x16xf32>
    %235 = arith.addf %234, %177 : vector<16x16xf32>
    %cst_141 = arith.constant dense<0xFF800000> : vector<16xf32>
    %236 = vector.multi_reduction <maximumf>, %235, %cst_141 [1] : vector<16x16xf32> to vector<16xf32>
    %237 = vector.shape_cast %236 : vector<16xf32> to vector<16x1xf32>
    %238 = vector.broadcast %237 : vector<16x1xf32> to vector<16x16xf32>
    %239 = arith.subf %235, %238 : vector<16x16xf32>
    %240 = math.exp %239 : vector<16x16xf32>
    %cst_142 = arith.constant dense<0.000000e+00> : vector<16xf32>
    %241 = vector.multi_reduction <add>, %240, %cst_142 [1] : vector<16x16xf32> to vector<16xf32>
    %242 = vector.shape_cast %241 : vector<16xf32> to vector<16x1xf32>
    %243 = tpu.reciprocal %242 {approx = true} : vector<16x1xf32> -> vector<16x1xf32>
    %244 = vector.broadcast %243 : vector<16x1xf32> to vector<16x16xf32>
    %245 = arith.mulf %240, %244 : vector<16x16xf32>
    %cst_143 = arith.constant dense<0.000000e+00> : vector<16x8xf32>
    %246 = tpu.matmul %245, %233, %cst_143 {dimension_numbers = #tpu.dot_dimension_numbers<[1], [0], [0], [1], [0, 0, 1, 1], [], []>} : vector<16x16xf32>, vector<16x8xf32>, vector<16x8xf32> -> vector<16x8xf32>
    %247 = vector.extract_strided_slice %185 {offsets = [16, 0], sizes = [8, 32], strides = [1, 1]} : vector<32x32xf32> to vector<8x32xf32>
    %cst_144 = arith.constant dense<0.000000e+00> : vector<16x32xf32>
    %248 = tpu.matmul %246, %247, %cst_144 {dimension_numbers = #tpu.dot_dimension_numbers<[1], [0], [0], [1], [0, 0, 1, 1], [], []>} : vector<16x8xf32>, vector<8x32xf32>, vector<16x32xf32> -> vector<16x32xf32>
    %249 = arith.addf %228, %248 : vector<16x32xf32>
    %250 = vector.extract_strided_slice %183 {offsets = [0, 24], sizes = [16, 8], strides = [1, 1]} : vector<16x96xf32> to vector<16x8xf32>
    %cst_145 = arith.constant 0.353553385 : f32
    %251 = vector.broadcast %cst_145 : f32 to vector<16x8xf32>
    %252 = arith.mulf %250, %251 : vector<16x8xf32>
    %253 = vector.extract_strided_slice %183 {offsets = [0, 56], sizes = [16, 8], strides = [1, 1]} : vector<16x96xf32> to vector<16x8xf32>
    %254 = vector.extract_strided_slice %183 {offsets = [0, 88], sizes = [16, 8], strides = [1, 1]} : vector<16x96xf32> to vector<16x8xf32>
    %cst_146 = arith.constant dense<0.000000e+00> : vector<16x16xf32>
    %255 = tpu.matmul %252, %253, %cst_146 {dimension_numbers = #tpu.dot_dimension_numbers<[1], [1], [0], [0], [0, 0, 1, 0], [], []>} : vector<16x8xf32>, vector<16x8xf32>, vector<16x16xf32> -> vector<16x16xf32>
    %256 = arith.addf %255, %177 : vector<16x16xf32>
    %cst_147 = arith.constant dense<0xFF800000> : vector<16xf32>
    %257 = vector.multi_reduction <maximumf>, %256, %cst_147 [1] : vector<16x16xf32> to vector<16xf32>
    %258 = vector.shape_cast %257 : vector<16xf32> to vector<16x1xf32>
    %259 = vector.broadcast %258 : vector<16x1xf32> to vector<16x16xf32>
    %260 = arith.subf %256, %259 : vector<16x16xf32>
    %261 = math.exp %260 : vector<16x16xf32>
    %cst_148 = arith.constant dense<0.000000e+00> : vector<16xf32>
    %262 = vector.multi_reduction <add>, %261, %cst_148 [1] : vector<16x16xf32> to vector<16xf32>
    %263 = vector.shape_cast %262 : vector<16xf32> to vector<16x1xf32>
    %264 = tpu.reciprocal %263 {approx = true} : vector<16x1xf32> -> vector<16x1xf32>
    %265 = vector.broadcast %264 : vector<16x1xf32> to vector<16x16xf32>
    %266 = arith.mulf %261, %265 : vector<16x16xf32>
    %cst_149 = arith.constant dense<0.000000e+00> : vector<16x8xf32>
    %267 = tpu.matmul %266, %254, %cst_149 {dimension_numbers = #tpu.dot_dimension_numbers<[1], [0], [0], [1], [0, 0, 1, 1], [], []>} : vector<16x16xf32>, vector<16x8xf32>, vector<16x8xf32> -> vector<16x8xf32>
    %268 = vector.extract_strided_slice %185 {offsets = [24, 0], sizes = [8, 32], strides = [1, 1]} : vector<32x32xf32> to vector<8x32xf32>
    %cst_150 = arith.constant dense<0.000000e+00> : vector<16x32xf32>
    %269 = tpu.matmul %267, %268, %cst_150 {dimension_numbers = #tpu.dot_dimension_numbers<[1], [0], [0], [1], [0, 0, 1, 1], [], []>} : vector<16x8xf32>, vector<8x32xf32>, vector<16x32xf32> -> vector<16x32xf32>
    %270 = arith.addf %249, %269 : vector<16x32xf32>
    %c9 = arith.constant 9 : index
    %c0_151 = arith.constant 0 : index
    %271 = vector.load %arg15[%c9, %c0_151] : memref<24x128xf32, #tpu.memory_space<vmem>>, vector<1x32xf32>
    %272 = vector.broadcast %271 : vector<1x32xf32> to vector<16x32xf32>
    %273 = arith.addf %270, %272 : vector<16x32xf32>
    %274 = arith.addf %176, %273 : vector<16x32xf32>
    %c10 = arith.constant 10 : index
    %c0_152 = arith.constant 0 : index
    %275 = vector.load %arg15[%c10, %c0_152] : memref<24x128xf32, #tpu.memory_space<vmem>>, vector<1x32xf32>
    %c11 = arith.constant 11 : index
    %c0_153 = arith.constant 0 : index
    %276 = vector.load %arg15[%c11, %c0_153] : memref<24x128xf32, #tpu.memory_space<vmem>>, vector<1x32xf32>
    %cst_154 = arith.constant dense<0.000000e+00> : vector<16xf32>
    %277 = vector.multi_reduction <add>, %274, %cst_154 [1] : vector<16x32xf32> to vector<16xf32>
    %278 = vector.shape_cast %277 : vector<16xf32> to vector<16x1xf32>
    %cst_155 = arith.constant 3.200000e+01 : f32
    %279 = vector.broadcast %cst_155 : f32 to vector<16x1xf32>
    %280 = arith.divf %278, %279 : vector<16x1xf32>
    %281 = vector.broadcast %280 : vector<16x1xf32> to vector<16x32xf32>
    %282 = arith.subf %274, %281 : vector<16x32xf32>
    %283 = arith.mulf %282, %282 : vector<16x32xf32>
    %cst_156 = arith.constant dense<0.000000e+00> : vector<16xf32>
    %284 = vector.multi_reduction <add>, %283, %cst_156 [1] : vector<16x32xf32> to vector<16xf32>
    %285 = vector.shape_cast %284 : vector<16xf32> to vector<16x1xf32>
    %cst_157 = arith.constant 3.200000e+01 : f32
    %286 = vector.broadcast %cst_157 : f32 to vector<16x1xf32>
    %287 = arith.divf %285, %286 : vector<16x1xf32>
    %288 = vector.broadcast %280 : vector<16x1xf32> to vector<16x32xf32>
    %289 = arith.subf %274, %288 : vector<16x32xf32>
    %cst_158 = arith.constant 9.99999974E-6 : f32
    %290 = vector.broadcast %cst_158 : f32 to vector<16x1xf32>
    %291 = arith.addf %287, %290 : vector<16x1xf32>
    %292 = math.rsqrt %291 : vector<16x1xf32>
    %293 = vector.broadcast %292 : vector<16x1xf32> to vector<16x32xf32>
    %294 = arith.mulf %289, %293 : vector<16x32xf32>
    %295 = vector.broadcast %275 : vector<1x32xf32> to vector<16x32xf32>
    %296 = arith.mulf %294, %295 : vector<16x32xf32>
    %297 = vector.broadcast %276 : vector<1x32xf32> to vector<16x32xf32>
    %298 = arith.addf %296, %297 : vector<16x32xf32>
    %c0_159 = arith.constant 0 : index
    %c0_160 = arith.constant 0 : index
    %c0_161 = arith.constant 0 : index
    %299 = vector.load %arg12[%c0_159, %c0_160, %c0_161] : memref<2x32x64xf32, #tpu.memory_space<vmem>>, vector<1x32x64xf32>
    %300 = vector.shape_cast %299 : vector<1x32x64xf32> to vector<32x64xf32>
    %cst_162 = arith.constant dense<0.000000e+00> : vector<16x64xf32>
    %301 = tpu.matmul %298, %300, %cst_162 {dimension_numbers = #tpu.dot_dimension_numbers<[1], [0], [0], [1], [0, 0, 1, 1], [], []>} : vector<16x32xf32>, vector<32x64xf32>, vector<16x64xf32> -> vector<16x64xf32>
    %c12 = arith.constant 12 : index
    %c0_163 = arith.constant 0 : index
    %302 = vector.load %arg15[%c12, %c0_163] : memref<24x128xf32, #tpu.memory_space<vmem>>, vector<1x64xf32>
    %303 = vector.broadcast %302 : vector<1x64xf32> to vector<16x64xf32>
    %304 = arith.addf %301, %303 : vector<16x64xf32>
    %cst_164 = arith.constant 5.000000e-01 : f32
    %305 = vector.broadcast %cst_164 : f32 to vector<16x64xf32>
    %306 = arith.mulf %305, %304 : vector<16x64xf32>
    %cst_165 = arith.constant 4.471500e-02 : f32
    %307 = vector.broadcast %cst_165 : f32 to vector<16x64xf32>
    %308 = arith.mulf %307, %304 : vector<16x64xf32>
    %309 = arith.mulf %308, %304 : vector<16x64xf32>
    %310 = arith.mulf %309, %304 : vector<16x64xf32>
    %311 = arith.addf %304, %310 : vector<16x64xf32>
    %cst_166 = arith.constant 0.797884583 : f32
    %312 = vector.broadcast %cst_166 : f32 to vector<16x64xf32>
    %313 = arith.mulf %312, %311 : vector<16x64xf32>
    %314 = math.tanh %313 : vector<16x64xf32>
    %cst_167 = arith.constant 1.000000e+00 : f32
    %315 = vector.broadcast %cst_167 : f32 to vector<16x64xf32>
    %316 = arith.addf %315, %314 : vector<16x64xf32>
    %317 = arith.mulf %306, %316 : vector<16x64xf32>
    %c0_168 = arith.constant 0 : index
    %c0_169 = arith.constant 0 : index
    %c0_170 = arith.constant 0 : index
    %318 = vector.load %arg13[%c0_168, %c0_169, %c0_170] : memref<2x64x32xf32, #tpu.memory_space<vmem>>, vector<1x64x32xf32>
    %319 = vector.shape_cast %318 : vector<1x64x32xf32> to vector<64x32xf32>
    %cst_171 = arith.constant dense<0.000000e+00> : vector<16x32xf32>
    %320 = tpu.matmul %317, %319, %cst_171 {dimension_numbers = #tpu.dot_dimension_numbers<[1], [0], [0], [1], [0, 0, 1, 1], [], []>} : vector<16x64xf32>, vector<64x32xf32>, vector<16x32xf32> -> vector<16x32xf32>
    %c13 = arith.constant 13 : index
    %c0_172 = arith.constant 0 : index
    %321 = vector.load %arg15[%c13, %c0_172] : memref<24x128xf32, #tpu.memory_space<vmem>>, vector<1x32xf32>
    %322 = vector.broadcast %321 : vector<1x32xf32> to vector<16x32xf32>
    %323 = arith.addf %320, %322 : vector<16x32xf32>
    %324 = arith.addf %298, %323 : vector<16x32xf32>
    %c14 = arith.constant 14 : index
    %c0_173 = arith.constant 0 : index
    %325 = vector.load %arg15[%c14, %c0_173] : memref<24x128xf32, #tpu.memory_space<vmem>>, vector<1x32xf32>
    %c15 = arith.constant 15 : index
    %c0_174 = arith.constant 0 : index
    %326 = vector.load %arg15[%c15, %c0_174] : memref<24x128xf32, #tpu.memory_space<vmem>>, vector<1x32xf32>
    %cst_175 = arith.constant dense<0.000000e+00> : vector<16xf32>
    %327 = vector.multi_reduction <add>, %324, %cst_175 [1] : vector<16x32xf32> to vector<16xf32>
    %328 = vector.shape_cast %327 : vector<16xf32> to vector<16x1xf32>
    %cst_176 = arith.constant 3.200000e+01 : f32
    %329 = vector.broadcast %cst_176 : f32 to vector<16x1xf32>
    %330 = arith.divf %328, %329 : vector<16x1xf32>
    %331 = vector.broadcast %330 : vector<16x1xf32> to vector<16x32xf32>
    %332 = arith.subf %324, %331 : vector<16x32xf32>
    %333 = arith.mulf %332, %332 : vector<16x32xf32>
    %cst_177 = arith.constant dense<0.000000e+00> : vector<16xf32>
    %334 = vector.multi_reduction <add>, %333, %cst_177 [1] : vector<16x32xf32> to vector<16xf32>
    %335 = vector.shape_cast %334 : vector<16xf32> to vector<16x1xf32>
    %cst_178 = arith.constant 3.200000e+01 : f32
    %336 = vector.broadcast %cst_178 : f32 to vector<16x1xf32>
    %337 = arith.divf %335, %336 : vector<16x1xf32>
    %338 = vector.broadcast %330 : vector<16x1xf32> to vector<16x32xf32>
    %339 = arith.subf %324, %338 : vector<16x32xf32>
    %cst_179 = arith.constant 9.99999974E-6 : f32
    %340 = vector.broadcast %cst_179 : f32 to vector<16x1xf32>
    %341 = arith.addf %337, %340 : vector<16x1xf32>
    %342 = math.rsqrt %341 : vector<16x1xf32>
    %343 = vector.broadcast %342 : vector<16x1xf32> to vector<16x32xf32>
    %344 = arith.mulf %339, %343 : vector<16x32xf32>
    %345 = vector.broadcast %325 : vector<1x32xf32> to vector<16x32xf32>
    %346 = arith.mulf %344, %345 : vector<16x32xf32>
    %347 = vector.broadcast %326 : vector<1x32xf32> to vector<16x32xf32>
    %348 = arith.addf %346, %347 : vector<16x32xf32>
    %c1_180 = arith.constant 1 : index
    %c0_181 = arith.constant 0 : index
    %c0_182 = arith.constant 0 : index
    %349 = vector.load %arg10[%c1_180, %c0_181, %c0_182] : memref<2x32x96xf32, #tpu.memory_space<vmem>>, vector<1x32x96xf32>
    %350 = vector.shape_cast %349 : vector<1x32x96xf32> to vector<32x96xf32>
    %cst_183 = arith.constant dense<0.000000e+00> : vector<16x96xf32>
    %351 = tpu.matmul %348, %350, %cst_183 {dimension_numbers = #tpu.dot_dimension_numbers<[1], [0], [0], [1], [0, 0, 1, 1], [], []>} : vector<16x32xf32>, vector<32x96xf32>, vector<16x96xf32> -> vector<16x96xf32>
    %c16 = arith.constant 16 : index
    %c0_184 = arith.constant 0 : index
    %352 = vector.load %arg15[%c16, %c0_184] : memref<24x128xf32, #tpu.memory_space<vmem>>, vector<1x96xf32>
    %353 = vector.broadcast %352 : vector<1x96xf32> to vector<16x96xf32>
    %354 = arith.addf %351, %353 : vector<16x96xf32>
    %c1_185 = arith.constant 1 : index
    %c0_186 = arith.constant 0 : index
    %c0_187 = arith.constant 0 : index
    %355 = vector.load %arg11[%c1_185, %c0_186, %c0_187] : memref<2x32x32xf32, #tpu.memory_space<vmem>>, vector<1x32x32xf32>
    %356 = vector.shape_cast %355 : vector<1x32x32xf32> to vector<32x32xf32>
    %cst_188 = arith.constant 0.000000e+00 : f32
    %357 = vector.broadcast %cst_188 : f32 to vector<16x32xf32>
    %358 = vector.extract_strided_slice %354 {offsets = [0, 0], sizes = [16, 8], strides = [1, 1]} : vector<16x96xf32> to vector<16x8xf32>
    %cst_189 = arith.constant 0.353553385 : f32
    %359 = vector.broadcast %cst_189 : f32 to vector<16x8xf32>
    %360 = arith.mulf %358, %359 : vector<16x8xf32>
    %361 = vector.extract_strided_slice %354 {offsets = [0, 32], sizes = [16, 8], strides = [1, 1]} : vector<16x96xf32> to vector<16x8xf32>
    %362 = vector.extract_strided_slice %354 {offsets = [0, 64], sizes = [16, 8], strides = [1, 1]} : vector<16x96xf32> to vector<16x8xf32>
    %cst_190 = arith.constant dense<0.000000e+00> : vector<16x16xf32>
    %363 = tpu.matmul %360, %361, %cst_190 {dimension_numbers = #tpu.dot_dimension_numbers<[1], [1], [0], [0], [0, 0, 1, 0], [], []>} : vector<16x8xf32>, vector<16x8xf32>, vector<16x16xf32> -> vector<16x16xf32>
    %364 = arith.addf %363, %177 : vector<16x16xf32>
    %cst_191 = arith.constant dense<0xFF800000> : vector<16xf32>
    %365 = vector.multi_reduction <maximumf>, %364, %cst_191 [1] : vector<16x16xf32> to vector<16xf32>
    %366 = vector.shape_cast %365 : vector<16xf32> to vector<16x1xf32>
    %367 = vector.broadcast %366 : vector<16x1xf32> to vector<16x16xf32>
    %368 = arith.subf %364, %367 : vector<16x16xf32>
    %369 = math.exp %368 : vector<16x16xf32>
    %cst_192 = arith.constant dense<0.000000e+00> : vector<16xf32>
    %370 = vector.multi_reduction <add>, %369, %cst_192 [1] : vector<16x16xf32> to vector<16xf32>
    %371 = vector.shape_cast %370 : vector<16xf32> to vector<16x1xf32>
    %372 = tpu.reciprocal %371 {approx = true} : vector<16x1xf32> -> vector<16x1xf32>
    %373 = vector.broadcast %372 : vector<16x1xf32> to vector<16x16xf32>
    %374 = arith.mulf %369, %373 : vector<16x16xf32>
    %cst_193 = arith.constant dense<0.000000e+00> : vector<16x8xf32>
    %375 = tpu.matmul %374, %362, %cst_193 {dimension_numbers = #tpu.dot_dimension_numbers<[1], [0], [0], [1], [0, 0, 1, 1], [], []>} : vector<16x16xf32>, vector<16x8xf32>, vector<16x8xf32> -> vector<16x8xf32>
    %376 = vector.extract_strided_slice %356 {offsets = [0, 0], sizes = [8, 32], strides = [1, 1]} : vector<32x32xf32> to vector<8x32xf32>
    %cst_194 = arith.constant dense<0.000000e+00> : vector<16x32xf32>
    %377 = tpu.matmul %375, %376, %cst_194 {dimension_numbers = #tpu.dot_dimension_numbers<[1], [0], [0], [1], [0, 0, 1, 1], [], []>} : vector<16x8xf32>, vector<8x32xf32>, vector<16x32xf32> -> vector<16x32xf32>
    %378 = arith.addf %357, %377 : vector<16x32xf32>
    %379 = vector.extract_strided_slice %354 {offsets = [0, 8], sizes = [16, 8], strides = [1, 1]} : vector<16x96xf32> to vector<16x8xf32>
    %cst_195 = arith.constant 0.353553385 : f32
    %380 = vector.broadcast %cst_195 : f32 to vector<16x8xf32>
    %381 = arith.mulf %379, %380 : vector<16x8xf32>
    %382 = vector.extract_strided_slice %354 {offsets = [0, 40], sizes = [16, 8], strides = [1, 1]} : vector<16x96xf32> to vector<16x8xf32>
    %383 = vector.extract_strided_slice %354 {offsets = [0, 72], sizes = [16, 8], strides = [1, 1]} : vector<16x96xf32> to vector<16x8xf32>
    %cst_196 = arith.constant dense<0.000000e+00> : vector<16x16xf32>
    %384 = tpu.matmul %381, %382, %cst_196 {dimension_numbers = #tpu.dot_dimension_numbers<[1], [1], [0], [0], [0, 0, 1, 0], [], []>} : vector<16x8xf32>, vector<16x8xf32>, vector<16x16xf32> -> vector<16x16xf32>
    %385 = arith.addf %384, %177 : vector<16x16xf32>
    %cst_197 = arith.constant dense<0xFF800000> : vector<16xf32>
    %386 = vector.multi_reduction <maximumf>, %385, %cst_197 [1] : vector<16x16xf32> to vector<16xf32>
    %387 = vector.shape_cast %386 : vector<16xf32> to vector<16x1xf32>
    %388 = vector.broadcast %387 : vector<16x1xf32> to vector<16x16xf32>
    %389 = arith.subf %385, %388 : vector<16x16xf32>
    %390 = math.exp %389 : vector<16x16xf32>
    %cst_198 = arith.constant dense<0.000000e+00> : vector<16xf32>
    %391 = vector.multi_reduction <add>, %390, %cst_198 [1] : vector<16x16xf32> to vector<16xf32>
    %392 = vector.shape_cast %391 : vector<16xf32> to vector<16x1xf32>
    %393 = tpu.reciprocal %392 {approx = true} : vector<16x1xf32> -> vector<16x1xf32>
    %394 = vector.broadcast %393 : vector<16x1xf32> to vector<16x16xf32>
    %395 = arith.mulf %390, %394 : vector<16x16xf32>
    %cst_199 = arith.constant dense<0.000000e+00> : vector<16x8xf32>
    %396 = tpu.matmul %395, %383, %cst_199 {dimension_numbers = #tpu.dot_dimension_numbers<[1], [0], [0], [1], [0, 0, 1, 1], [], []>} : vector<16x16xf32>, vector<16x8xf32>, vector<16x8xf32> -> vector<16x8xf32>
    %397 = vector.extract_strided_slice %356 {offsets = [8, 0], sizes = [8, 32], strides = [1, 1]} : vector<32x32xf32> to vector<8x32xf32>
    %cst_200 = arith.constant dense<0.000000e+00> : vector<16x32xf32>
    %398 = tpu.matmul %396, %397, %cst_200 {dimension_numbers = #tpu.dot_dimension_numbers<[1], [0], [0], [1], [0, 0, 1, 1], [], []>} : vector<16x8xf32>, vector<8x32xf32>, vector<16x32xf32> -> vector<16x32xf32>
    %399 = arith.addf %378, %398 : vector<16x32xf32>
    %400 = vector.extract_strided_slice %354 {offsets = [0, 16], sizes = [16, 8], strides = [1, 1]} : vector<16x96xf32> to vector<16x8xf32>
    %cst_201 = arith.constant 0.353553385 : f32
    %401 = vector.broadcast %cst_201 : f32 to vector<16x8xf32>
    %402 = arith.mulf %400, %401 : vector<16x8xf32>
    %403 = vector.extract_strided_slice %354 {offsets = [0, 48], sizes = [16, 8], strides = [1, 1]} : vector<16x96xf32> to vector<16x8xf32>
    %404 = vector.extract_strided_slice %354 {offsets = [0, 80], sizes = [16, 8], strides = [1, 1]} : vector<16x96xf32> to vector<16x8xf32>
    %cst_202 = arith.constant dense<0.000000e+00> : vector<16x16xf32>
    %405 = tpu.matmul %402, %403, %cst_202 {dimension_numbers = #tpu.dot_dimension_numbers<[1], [1], [0], [0], [0, 0, 1, 0], [], []>} : vector<16x8xf32>, vector<16x8xf32>, vector<16x16xf32> -> vector<16x16xf32>
    %406 = arith.addf %405, %177 : vector<16x16xf32>
    %cst_203 = arith.constant dense<0xFF800000> : vector<16xf32>
    %407 = vector.multi_reduction <maximumf>, %406, %cst_203 [1] : vector<16x16xf32> to vector<16xf32>
    %408 = vector.shape_cast %407 : vector<16xf32> to vector<16x1xf32>
    %409 = vector.broadcast %408 : vector<16x1xf32> to vector<16x16xf32>
    %410 = arith.subf %406, %409 : vector<16x16xf32>
    %411 = math.exp %410 : vector<16x16xf32>
    %cst_204 = arith.constant dense<0.000000e+00> : vector<16xf32>
    %412 = vector.multi_reduction <add>, %411, %cst_204 [1] : vector<16x16xf32> to vector<16xf32>
    %413 = vector.shape_cast %412 : vector<16xf32> to vector<16x1xf32>
    %414 = tpu.reciprocal %413 {approx = true} : vector<16x1xf32> -> vector<16x1xf32>
    %415 = vector.broadcast %414 : vector<16x1xf32> to vector<16x16xf32>
    %416 = arith.mulf %411, %415 : vector<16x16xf32>
    %cst_205 = arith.constant dense<0.000000e+00> : vector<16x8xf32>
    %417 = tpu.matmul %416, %404, %cst_205 {dimension_numbers = #tpu.dot_dimension_numbers<[1], [0], [0], [1], [0, 0, 1, 1], [], []>} : vector<16x16xf32>, vector<16x8xf32>, vector<16x8xf32> -> vector<16x8xf32>
    %418 = vector.extract_strided_slice %356 {offsets = [16, 0], sizes = [8, 32], strides = [1, 1]} : vector<32x32xf32> to vector<8x32xf32>
    %cst_206 = arith.constant dense<0.000000e+00> : vector<16x32xf32>
    %419 = tpu.matmul %417, %418, %cst_206 {dimension_numbers = #tpu.dot_dimension_numbers<[1], [0], [0], [1], [0, 0, 1, 1], [], []>} : vector<16x8xf32>, vector<8x32xf32>, vector<16x32xf32> -> vector<16x32xf32>
    %420 = arith.addf %399, %419 : vector<16x32xf32>
    %421 = vector.extract_strided_slice %354 {offsets = [0, 24], sizes = [16, 8], strides = [1, 1]} : vector<16x96xf32> to vector<16x8xf32>
    %cst_207 = arith.constant 0.353553385 : f32
    %422 = vector.broadcast %cst_207 : f32 to vector<16x8xf32>
    %423 = arith.mulf %421, %422 : vector<16x8xf32>
    %424 = vector.extract_strided_slice %354 {offsets = [0, 56], sizes = [16, 8], strides = [1, 1]} : vector<16x96xf32> to vector<16x8xf32>
    %425 = vector.extract_strided_slice %354 {offsets = [0, 88], sizes = [16, 8], strides = [1, 1]} : vector<16x96xf32> to vector<16x8xf32>
    %cst_208 = arith.constant dense<0.000000e+00> : vector<16x16xf32>
    %426 = tpu.matmul %423, %424, %cst_208 {dimension_numbers = #tpu.dot_dimension_numbers<[1], [1], [0], [0], [0, 0, 1, 0], [], []>} : vector<16x8xf32>, vector<16x8xf32>, vector<16x16xf32> -> vector<16x16xf32>
    %427 = arith.addf %426, %177 : vector<16x16xf32>
    %cst_209 = arith.constant dense<0xFF800000> : vector<16xf32>
    %428 = vector.multi_reduction <maximumf>, %427, %cst_209 [1] : vector<16x16xf32> to vector<16xf32>
    %429 = vector.shape_cast %428 : vector<16xf32> to vector<16x1xf32>
    %430 = vector.broadcast %429 : vector<16x1xf32> to vector<16x16xf32>
    %431 = arith.subf %427, %430 : vector<16x16xf32>
    %432 = math.exp %431 : vector<16x16xf32>
    %cst_210 = arith.constant dense<0.000000e+00> : vector<16xf32>
    %433 = vector.multi_reduction <add>, %432, %cst_210 [1] : vector<16x16xf32> to vector<16xf32>
    %434 = vector.shape_cast %433 : vector<16xf32> to vector<16x1xf32>
    %435 = tpu.reciprocal %434 {approx = true} : vector<16x1xf32> -> vector<16x1xf32>
    %436 = vector.broadcast %435 : vector<16x1xf32> to vector<16x16xf32>
    %437 = arith.mulf %432, %436 : vector<16x16xf32>
    %cst_211 = arith.constant dense<0.000000e+00> : vector<16x8xf32>
    %438 = tpu.matmul %437, %425, %cst_211 {dimension_numbers = #tpu.dot_dimension_numbers<[1], [0], [0], [1], [0, 0, 1, 1], [], []>} : vector<16x16xf32>, vector<16x8xf32>, vector<16x8xf32> -> vector<16x8xf32>
    %439 = vector.extract_strided_slice %356 {offsets = [24, 0], sizes = [8, 32], strides = [1, 1]} : vector<32x32xf32> to vector<8x32xf32>
    %cst_212 = arith.constant dense<0.000000e+00> : vector<16x32xf32>
    %440 = tpu.matmul %438, %439, %cst_212 {dimension_numbers = #tpu.dot_dimension_numbers<[1], [0], [0], [1], [0, 0, 1, 1], [], []>} : vector<16x8xf32>, vector<8x32xf32>, vector<16x32xf32> -> vector<16x32xf32>
    %441 = arith.addf %420, %440 : vector<16x32xf32>
    %c17 = arith.constant 17 : index
    %c0_213 = arith.constant 0 : index
    %442 = vector.load %arg15[%c17, %c0_213] : memref<24x128xf32, #tpu.memory_space<vmem>>, vector<1x32xf32>
    %443 = vector.broadcast %442 : vector<1x32xf32> to vector<16x32xf32>
    %444 = arith.addf %441, %443 : vector<16x32xf32>
    %445 = arith.addf %348, %444 : vector<16x32xf32>
    %c18 = arith.constant 18 : index
    %c0_214 = arith.constant 0 : index
    %446 = vector.load %arg15[%c18, %c0_214] : memref<24x128xf32, #tpu.memory_space<vmem>>, vector<1x32xf32>
    %c19 = arith.constant 19 : index
    %c0_215 = arith.constant 0 : index
    %447 = vector.load %arg15[%c19, %c0_215] : memref<24x128xf32, #tpu.memory_space<vmem>>, vector<1x32xf32>
    %cst_216 = arith.constant dense<0.000000e+00> : vector<16xf32>
    %448 = vector.multi_reduction <add>, %445, %cst_216 [1] : vector<16x32xf32> to vector<16xf32>
    %449 = vector.shape_cast %448 : vector<16xf32> to vector<16x1xf32>
    %cst_217 = arith.constant 3.200000e+01 : f32
    %450 = vector.broadcast %cst_217 : f32 to vector<16x1xf32>
    %451 = arith.divf %449, %450 : vector<16x1xf32>
    %452 = vector.broadcast %451 : vector<16x1xf32> to vector<16x32xf32>
    %453 = arith.subf %445, %452 : vector<16x32xf32>
    %454 = arith.mulf %453, %453 : vector<16x32xf32>
    %cst_218 = arith.constant dense<0.000000e+00> : vector<16xf32>
    %455 = vector.multi_reduction <add>, %454, %cst_218 [1] : vector<16x32xf32> to vector<16xf32>
    %456 = vector.shape_cast %455 : vector<16xf32> to vector<16x1xf32>
    %cst_219 = arith.constant 3.200000e+01 : f32
    %457 = vector.broadcast %cst_219 : f32 to vector<16x1xf32>
    %458 = arith.divf %456, %457 : vector<16x1xf32>
    %459 = vector.broadcast %451 : vector<16x1xf32> to vector<16x32xf32>
    %460 = arith.subf %445, %459 : vector<16x32xf32>
    %cst_220 = arith.constant 9.99999974E-6 : f32
    %461 = vector.broadcast %cst_220 : f32 to vector<16x1xf32>
    %462 = arith.addf %458, %461 : vector<16x1xf32>
    %463 = math.rsqrt %462 : vector<16x1xf32>
    %464 = vector.broadcast %463 : vector<16x1xf32> to vector<16x32xf32>
    %465 = arith.mulf %460, %464 : vector<16x32xf32>
    %466 = vector.broadcast %446 : vector<1x32xf32> to vector<16x32xf32>
    %467 = arith.mulf %465, %466 : vector<16x32xf32>
    %468 = vector.broadcast %447 : vector<1x32xf32> to vector<16x32xf32>
    %469 = arith.addf %467, %468 : vector<16x32xf32>
    %c1_221 = arith.constant 1 : index
    %c0_222 = arith.constant 0 : index
    %c0_223 = arith.constant 0 : index
    %470 = vector.load %arg12[%c1_221, %c0_222, %c0_223] : memref<2x32x64xf32, #tpu.memory_space<vmem>>, vector<1x32x64xf32>
    %471 = vector.shape_cast %470 : vector<1x32x64xf32> to vector<32x64xf32>
    %cst_224 = arith.constant dense<0.000000e+00> : vector<16x64xf32>
    %472 = tpu.matmul %469, %471, %cst_224 {dimension_numbers = #tpu.dot_dimension_numbers<[1], [0], [0], [1], [0, 0, 1, 1], [], []>} : vector<16x32xf32>, vector<32x64xf32>, vector<16x64xf32> -> vector<16x64xf32>
    %c20 = arith.constant 20 : index
    %c0_225 = arith.constant 0 : index
    %473 = vector.load %arg15[%c20, %c0_225] : memref<24x128xf32, #tpu.memory_space<vmem>>, vector<1x64xf32>
    %474 = vector.broadcast %473 : vector<1x64xf32> to vector<16x64xf32>
    %475 = arith.addf %472, %474 : vector<16x64xf32>
    %cst_226 = arith.constant 5.000000e-01 : f32
    %476 = vector.broadcast %cst_226 : f32 to vector<16x64xf32>
    %477 = arith.mulf %476, %475 : vector<16x64xf32>
    %cst_227 = arith.constant 4.471500e-02 : f32
    %478 = vector.broadcast %cst_227 : f32 to vector<16x64xf32>
    %479 = arith.mulf %478, %475 : vector<16x64xf32>
    %480 = arith.mulf %479, %475 : vector<16x64xf32>
    %481 = arith.mulf %480, %475 : vector<16x64xf32>
    %482 = arith.addf %475, %481 : vector<16x64xf32>
    %cst_228 = arith.constant 0.797884583 : f32
    %483 = vector.broadcast %cst_228 : f32 to vector<16x64xf32>
    %484 = arith.mulf %483, %482 : vector<16x64xf32>
    %485 = math.tanh %484 : vector<16x64xf32>
    %cst_229 = arith.constant 1.000000e+00 : f32
    %486 = vector.broadcast %cst_229 : f32 to vector<16x64xf32>
    %487 = arith.addf %486, %485 : vector<16x64xf32>
    %488 = arith.mulf %477, %487 : vector<16x64xf32>
    %c1_230 = arith.constant 1 : index
    %c0_231 = arith.constant 0 : index
    %c0_232 = arith.constant 0 : index
    %489 = vector.load %arg13[%c1_230, %c0_231, %c0_232] : memref<2x64x32xf32, #tpu.memory_space<vmem>>, vector<1x64x32xf32>
    %490 = vector.shape_cast %489 : vector<1x64x32xf32> to vector<64x32xf32>
    %cst_233 = arith.constant dense<0.000000e+00> : vector<16x32xf32>
    %491 = tpu.matmul %488, %490, %cst_233 {dimension_numbers = #tpu.dot_dimension_numbers<[1], [0], [0], [1], [0, 0, 1, 1], [], []>} : vector<16x64xf32>, vector<64x32xf32>, vector<16x32xf32> -> vector<16x32xf32>
    %c21 = arith.constant 21 : index
    %c0_234 = arith.constant 0 : index
    %492 = vector.load %arg15[%c21, %c0_234] : memref<24x128xf32, #tpu.memory_space<vmem>>, vector<1x32xf32>
    %493 = vector.broadcast %492 : vector<1x32xf32> to vector<16x32xf32>
    %494 = arith.addf %491, %493 : vector<16x32xf32>
    %495 = arith.addf %469, %494 : vector<16x32xf32>
    %c22 = arith.constant 22 : index
    %c0_235 = arith.constant 0 : index
    %496 = vector.load %arg15[%c22, %c0_235] : memref<24x128xf32, #tpu.memory_space<vmem>>, vector<1x32xf32>
    %c23 = arith.constant 23 : index
    %c0_236 = arith.constant 0 : index
    %497 = vector.load %arg15[%c23, %c0_236] : memref<24x128xf32, #tpu.memory_space<vmem>>, vector<1x32xf32>
    %cst_237 = arith.constant dense<0.000000e+00> : vector<16xf32>
    %498 = vector.multi_reduction <add>, %495, %cst_237 [1] : vector<16x32xf32> to vector<16xf32>
    %499 = vector.shape_cast %498 : vector<16xf32> to vector<16x1xf32>
    %cst_238 = arith.constant 3.200000e+01 : f32
    %500 = vector.broadcast %cst_238 : f32 to vector<16x1xf32>
    %501 = arith.divf %499, %500 : vector<16x1xf32>
    %502 = vector.broadcast %501 : vector<16x1xf32> to vector<16x32xf32>
    %503 = arith.subf %495, %502 : vector<16x32xf32>
    %504 = arith.mulf %503, %503 : vector<16x32xf32>
    %cst_239 = arith.constant dense<0.000000e+00> : vector<16xf32>
    %505 = vector.multi_reduction <add>, %504, %cst_239 [1] : vector<16x32xf32> to vector<16xf32>
    %506 = vector.shape_cast %505 : vector<16xf32> to vector<16x1xf32>
    %cst_240 = arith.constant 3.200000e+01 : f32
    %507 = vector.broadcast %cst_240 : f32 to vector<16x1xf32>
    %508 = arith.divf %506, %507 : vector<16x1xf32>
    %509 = vector.broadcast %501 : vector<16x1xf32> to vector<16x32xf32>
    %510 = arith.subf %495, %509 : vector<16x32xf32>
    %cst_241 = arith.constant 9.99999974E-6 : f32
    %511 = vector.broadcast %cst_241 : f32 to vector<16x1xf32>
    %512 = arith.addf %508, %511 : vector<16x1xf32>
    %513 = math.rsqrt %512 : vector<16x1xf32>
    %514 = vector.broadcast %513 : vector<16x1xf32> to vector<16x32xf32>
    %515 = arith.mulf %510, %514 : vector<16x32xf32>
    %516 = vector.broadcast %496 : vector<1x32xf32> to vector<16x32xf32>
    %517 = arith.mulf %515, %516 : vector<16x32xf32>
    %518 = vector.broadcast %497 : vector<1x32xf32> to vector<16x32xf32>
    %519 = arith.addf %517, %518 : vector<16x32xf32>
    %c0_242 = arith.constant 0 : index
    %c0_243 = arith.constant 0 : index
    %520 = vector.load %arg14[%c0_242, %c0_243] : memref<2x16xf32, #tpu.memory_space<vmem>>, vector<2x16xf32>
    %cst_244 = arith.constant dense<0.000000e+00> : vector<2x32xf32>
    %521 = tpu.matmul %520, %519, %cst_244 {dimension_numbers = #tpu.dot_dimension_numbers<[1], [0], [0], [1], [0, 0, 1, 1], [], []>} : vector<2x16xf32>, vector<16x32xf32>, vector<2x32xf32> -> vector<2x32xf32>
    %c0_245 = arith.constant 0 : index
    %c0_246 = arith.constant 0 : index
    %522 = vector.load %arg16[%c0_245, %c0_246] : memref<2x32xf32, #tpu.memory_space<vmem>>, vector<2x32xf32>
    tpu.vector_store %arg16[%c0_245, %c0_246], %521 {strides = array<i32>} : memref<2x32xf32, #tpu.memory_space<vmem>>, vector<2x32xf32>,
    return
  }
}

</mosaic_0001>

<llo_original>
// kernel: w2v2_forward.1
$region0: #{w2v2_forward.1}
  #allocation0 [shape = 'u32[]', space=smem, size = 0x4, offset = 0x4, fixed_abs, tag = 'smem constant byte address 0x4 - core index']
  #allocation1 [shape = 'u32[144,128]{1,0:T(1,128)}', space=vmem, size = 0x12000, scoped, tag = 'internal scratch']
  %s0 = inlined_call_operand.vmem [shape: f32[38,4], index: 0, kind: input, shape index: {}]
  %s1 = inlined_call_operand.vmem [shape: f32[4,16], index: 1, kind: input, shape index: {}]
  %s2 = inlined_call_operand.vmem [shape: f32[2,38], index: 2, kind: input, shape index: {}]
  %s3 = inlined_call_operand.vmem [shape: f32[38,2], index: 3, kind: input, shape index: {}]
  %s4 = inlined_call_operand.vmem [shape: f32[4,16,38], index: 4, kind: input, shape index: {}]
  %s5 = inlined_call_operand.vmem [shape: f32[4,16,32], index: 5, kind: input, shape index: {}]
  %s6 = inlined_call_operand.vmem [shape: f32[32,32], index: 6, kind: input, shape index: {}]
  %s7 = inlined_call_operand.vmem [shape: f32[4,16,16], index: 7, kind: input, shape index: {}]
  %s8 = inlined_call_operand.vmem [shape: f32[4,32,32], index: 8, kind: input, shape index: {}]
  %s9 = inlined_call_operand.vmem [shape: f32[16,16], index: 9, kind: input, shape index: {}]
  %s10 = inlined_call_operand.vmem [shape: f32[2,32,96], index: 10, kind: input, shape index: {}]
  %s11 = inlined_call_operand.vmem [shape: f32[2,32,32], index: 11, kind: input, shape index: {}]
  %s12 = inlined_call_operand.vmem [shape: f32[2,32,64], index: 12, kind: input, shape index: {}]
  %s13 = inlined_call_operand.vmem [shape: f32[2,64,32], index: 13, kind: input, shape index: {}]
  %s14 = inlined_call_operand.vmem [shape: f32[2,16], index: 14, kind: input, shape index: {}]
  %s15 = inlined_call_operand.vmem [shape: f32[24,128], index: 15, kind: input, shape index: {}]
  %s16 = inlined_call_operand.hbm [shape: f32[2,32], index: 16, kind: output, shape index: {}]
  %s17 = sld [smem:[#allocation0]]
  $region74: #{w2v2_forward.1} parent=0
    _
  %s19 = ssub.s32 1, %s17
  %s20 = scalar_select 0, %s19, %s17
  $region1: #{w2v2_forward.1} parent=0
    #allocation2 [shape = 'u8[1024]{0}', space=vmem, size = 0x400, scoped, tag = 'output window, operand 0, single buffered']
    #allocation3 [shape = 's32[1]{0}', space=sflag, size = 0x4, scoped, tag = 'scoped memory for w2v2_forward.1']
    %21 = vsyncpa [#allocation3], 0
    // Predicated region
    $region2: #{w2v2_forward.1} parent=1 // pred_check
      _
    $region3: #{w2v2_forward.1} parent=1 // pred_check_branch
      %23 = sbr.rel (0) target = $region5
    $region4: #{w2v2_forward.1} parent=1 // pred_region
      _
    $region5: #{w2v2_forward.1} parent=1 // pred_fallthru
      _
    // Predicated region
    $region6: #{w2v2_forward.1} parent=1 // pred_check
      _
    $region7: #{w2v2_forward.1} parent=1 // pred_check_branch
      %25 = sbr.rel (0) target = $region9
    $region8: #{w2v2_forward.1} parent=1 // pred_region
      _
    $region9: #{w2v2_forward.1} parent=1 // pred_fallthru
      _
    // Predicated region
    $region10: #{w2v2_forward.1} parent=1 // pred_check
      _
    $region11: #{w2v2_forward.1} parent=1 // pred_check_branch
      %27 = sbr.rel (0) target = $region13
    $region12: #{w2v2_forward.1} parent=1 // pred_region
      _
    $region13: #{w2v2_forward.1} parent=1 // pred_fallthru
      _
    // Predicated region
    $region14: #{w2v2_forward.1} parent=1 // pred_check
      _
    $region15: #{w2v2_forward.1} parent=1 // pred_check_branch
      %29 = sbr.rel (0) target = $region17
    $region16: #{w2v2_forward.1} parent=1 // pred_region
      _
    $region17: #{w2v2_forward.1} parent=1 // pred_fallthru
      _
    // Predicated region
    $region18: #{w2v2_forward.1} parent=1 // pred_check
      _
    $region19: #{w2v2_forward.1} parent=1 // pred_check_branch
      %31 = sbr.rel (0) target = $region21
    $region20: #{w2v2_forward.1} parent=1 // pred_region
      _
    $region21: #{w2v2_forward.1} parent=1 // pred_fallthru
      _
    // Predicated region
    $region22: #{w2v2_forward.1} parent=1 // pred_check
      _
    $region23: #{w2v2_forward.1} parent=1 // pred_check_branch
      %33 = sbr.rel (0) target = $region25
    $region24: #{w2v2_forward.1} parent=1 // pred_region
      _
    $region25: #{w2v2_forward.1} parent=1 // pred_fallthru
      _
    // Predicated region
    $region26: #{w2v2_forward.1} parent=1 // pred_check
      _
    $region27: #{w2v2_forward.1} parent=1 // pred_check_branch
      %35 = sbr.rel (0) target = $region29
    $region28: #{w2v2_forward.1} parent=1 // pred_region
      _
    $region29: #{w2v2_forward.1} parent=1 // pred_fallthru
      _
    // Predicated region
    $region30: #{w2v2_forward.1} parent=1 // pred_check
      _
    $region31: #{w2v2_forward.1} parent=1 // pred_check_branch
      %37 = sbr.rel (0) target = $region33
    $region32: #{w2v2_forward.1} parent=1 // pred_region
      _
    $region33: #{w2v2_forward.1} parent=1 // pred_fallthru
      _
    // Predicated region
    $region34: #{w2v2_forward.1} parent=1 // pred_check
      _
    $region35: #{w2v2_forward.1} parent=1 // pred_check_branch
      %39 = sbr.rel (0) target = $region37
    $region36: #{w2v2_forward.1} parent=1 // pred_region
      _
    $region37: #{w2v2_forward.1} parent=1 // pred_fallthru
      _
    // Predicated region
    $region38: #{w2v2_forward.1} parent=1 // pred_check
      _
    $region39: #{w2v2_forward.1} parent=1 // pred_check_branch
      %41 = sbr.rel (0) target = $region41
    $region40: #{w2v2_forward.1} parent=1 // pred_region
      _
    $region41: #{w2v2_forward.1} parent=1 // pred_fallthru
      _
    // Predicated region
    $region42: #{w2v2_forward.1} parent=1 // pred_check
      _
    $region43: #{w2v2_forward.1} parent=1 // pred_check_branch
      %43 = sbr.rel (0) target = $region45
    $region44: #{w2v2_forward.1} parent=1 // pred_region
      _
    $region45: #{w2v2_forward.1} parent=1 // pred_fallthru
      _
    // Predicated region
    $region46: #{w2v2_forward.1} parent=1 // pred_check
      _
    $region47: #{w2v2_forward.1} parent=1 // pred_check_branch
      %45 = sbr.rel (0) target = $region49
    $region48: #{w2v2_forward.1} parent=1 // pred_region
      _
    $region49: #{w2v2_forward.1} parent=1 // pred_fallthru
      _
    // Predicated region
    $region50: #{w2v2_forward.1} parent=1 // pred_check
      _
    $region51: #{w2v2_forward.1} parent=1 // pred_check_branch
      %47 = sbr.rel (0) target = $region53
    $region52: #{w2v2_forward.1} parent=1 // pred_region
      _
    $region53: #{w2v2_forward.1} parent=1 // pred_fallthru
      _
    // Predicated region
    $region54: #{w2v2_forward.1} parent=1 // pred_check
      _
    $region55: #{w2v2_forward.1} parent=1 // pred_check_branch
      %49 = sbr.rel (0) target = $region57
    $region56: #{w2v2_forward.1} parent=1 // pred_region
      _
    $region57: #{w2v2_forward.1} parent=1 // pred_fallthru
      _
    // Predicated region
    $region58: #{w2v2_forward.1} parent=1 // pred_check
      _
    $region59: #{w2v2_forward.1} parent=1 // pred_check_branch
      %51 = sbr.rel (0) target = $region61
    $region60: #{w2v2_forward.1} parent=1 // pred_region
      _
    $region61: #{w2v2_forward.1} parent=1 // pred_fallthru
      _
    // Predicated region
    $region62: #{w2v2_forward.1} parent=1 // pred_check
      _
    $region63: #{w2v2_forward.1} parent=1 // pred_check_branch
      %53 = sbr.rel (0) target = $region65
    $region64: #{w2v2_forward.1} parent=1 // pred_region
      _
    $region65: #{w2v2_forward.1} parent=1 // pred_fallthru
      _
    %v54 = vld [vmem:[%s0] sm:$0xff]
    %v55 = vld [vmem:[%s0 + $0x8] sm:$0xff]
    %v56 = vld [vmem:[%s0 + $0x10] sm:$0xff]
    %v57 = vld [vmem:[%s0 + $0x18] sm:$0xff]
    %v58 = vld [vmem:[%s0 + $0x20] sm:$0x3f]
    %v59 = vld [vmem:[%s1] sm:$0xf]
    %vm60 = vcmask 31744
    %v62 = vsel %vm60, %v54, 0
    %v65 = vsel %vm60, %v55, 0
    %v68 = vsel %vm60, %v56, 0
    %v71 = vsel %vm60, %v57, 0
    %v74 = vsel %vm60, %v58, 0
    %vm76 = vcmask 1043456
    %v78 = vsel %vm76, %v59, 0
    %80 = vmatprep.subr.mxu0 0.0
    %81 = vmatpush1.msra.mxu0 %v78
    %82 = vmatprep.subr.mxu0 0.0
    %83 = vmatpush1.msra.mxu0 0.0
    %84 = vmatprep.subr.mxu0 0.0
    %85 = vmatpush1.msra.mxu0 0.0
    %86 = vmatprep.subr.mxu0 0.0
    %87 = vmatpush1.msra.mxu0 0.0
    %88 = vmatprep.subr.mxu0 0.0
    %89 = vmatpush1.msra.mxu0 0.0
    %90 = vmatprep.subr.mxu0 0.0
    %91 = vmatpush1.msra.mxu0 0.0
    %92 = vmatprep.subr.mxu0 0.0
    %93 = vmatpush1.msra.mxu0 0.0
    %94 = vmatprep.subr.mxu0 0.0
    %95 = vmatpush1.msra.mxu0 0.0
    %96 = vmatprep.subr.mxu0 0.0
    %97 = vmatpush1.msra.mxu0 0.0
    %98 = vmatprep.subr.mxu0 0.0
    %99 = vmatpush1.msra.mxu0 0.0
    %100 = vmatprep.subr.mxu0 0.0
    %101 = vmatpush1.msra.mxu0 0.0
    %102 = vmatprep.subr.mxu0 0.0
    %103 = vmatpush1.msra.mxu0 0.0
    %104 = vmatprep.subr.mxu0 0.0
    %105 = vmatpush1.msra.mxu0 0.0
    %106 = vmatprep.subr.mxu0 0.0
    %107 = vmatpush1.msra.mxu0 0.0
    %108 = vmatprep.subr.mxu0 0.0
    %109 = vmatpush1.msra.mxu0 0.0
    %110 = vmatprep.subr.mxu0 0.0
    %111 = vmatpush1.msra.mxu0 0.0
    %112 = vmatprep.subr.mxu0 0.0
    %113 = vmatpush1.msra.mxu0 0.0
    %114 = vmatprep.subr.mxu0 0.0
    %115 = vmatpush1.msra.mxu0 0.0
    %116 = vmatprep.subr.mxu0 0.0
    %117 = vmatpush1.msra.mxu0 0.0
    %118 = vmatprep.subr.mxu0 0.0
    %119 = vmatpush1.msra.mxu0 0.0
    %120 = vmatprep.subr.mxu0 0.0
    %121 = vmatpush1.msra.mxu0 0.0
    %122 = vmatprep.subr.mxu0 0.0
    %123 = vmatpush1.msra.mxu0 0.0
    %124 = vmatprep.subr.mxu0 0.0
    %125 = vmatpush1.msra.mxu0 0.0
    %126 = vmatprep.subr.mxu0 0.0
    %127 = vmatpush1.msra.mxu0 0.0
    %128 = vmatprep.subr.mxu0 0.0
    %129 = vmatpush1.msra.mxu0 0.0
    %130 = vmatprep.subr.mxu0 0.0
    %131 = vmatpush1.msra.mxu0 0.0
    %132 = vmatprep.subr.mxu0 0.0
    %133 = vmatpush1.msra.mxu0 0.0
    %134 = vmatprep.subr.mxu0 0.0
    %135 = vmatpush1.msra.mxu0 0.0
    %136 = vmatprep.subr.mxu0 0.0
    %137 = vmatpush1.msra.mxu0 0.0
    %138 = vmatprep.subr.mxu0 0.0
    %139 = vmatpush1.msra.mxu0 0.0
    %140 = vmatprep.subr.mxu0 0.0
    %141 = vmatpush1.msra.mxu0 0.0
    %142 = vmatprep.subr.mxu0 0.0
    %143 = vmatpush1.msra.mxu0 0.0
    %144 = vmatprep.mubr.f32.mxu0 0.0
    %145 = vmatmul.mubr.f32.gmra.mrb[0].mxu0 %v62
    %v146 = vpop.f32.mrb[0].mxu0
    %v147 = vadd.f32 0.0, %v146
    %v148 = vpop.f32.mrb[0].mxu0
    %149 = vmatprep.mubr.f32.mxu0 0.0
    %150 = vmatmul.mubr.f32.gmra.mrb[0].mxu0 %v65
    %v151 = vpop.f32.mrb[0].mxu0
    %v152 = vadd.f32 0.0, %v151
    %v153 = vpop.f32.mrb[0].mxu0
    %154 = vmatprep.mubr.f32.mxu0 0.0
    %155 = vmatmul.mubr.f32.gmra.mrb[0].mxu0 %v68
    %v156 = vpop.f32.mrb[0].mxu0
    %v157 = vadd.f32 0.0, %v156
    %v158 = vpop.f32.mrb[0].mxu0
    %159 = vmatprep.mubr.f32.mxu0 0.0
    %160 = vmatmul.mubr.f32.gmra.mrb[0].mxu0 %v71
    %v161 = vpop.f32.mrb[0].mxu0
    %v162 = vadd.f32 0.0, %v161
    %v163 = vpop.f32.mrb[0].mxu0
    %164 = vmatprep.mubr.f32.mxu0 0.0
    %165 = vmatmul.mubr.f32.gmra.mrb[0].mxu0 %v74
    %v166 = vpop.f32.mrb[0].mxu0
    %v167 = vadd.f32 0.0, %v166
    %v168 = vpop.f32.mrb[0].mxu0
    %169 = vdwg.mxu0
    %v170 = vld [vmem:[%s2] sm:$0x3]
    %vm171 = vcmask 310272
    %v173 = vsel %vm171, %v170, 0
    %vm175 = vcmask 1045504
    %v177 = vsel %vm175, %v167, 0
    %179 = vmatprep.subr.mxu0 0.0
    %180 = vmatpush1.msra.mxu0 %v147
    %181 = vmatprep.subr.mxu0 0.0
    %182 = vmatpush1.msra.mxu0 %v152
    %183 = vmatprep.subr.mxu0 0.0
    %184 = vmatpush1.msra.mxu0 %v157
    %185 = vmatprep.subr.mxu0 0.0
    %186 = vmatpush1.msra.mxu0 %v162
    %187 = vmatprep.subr.mxu0 0.0
    %188 = vmatpush1.msra.mxu0 %v177
    %189 = vmatprep.subr.mxu0 0.0
    %190 = vmatpush1.msra.mxu0 0.0
    %191 = vmatprep.subr.mxu0 0.0
    %192 = vmatpush1.msra.mxu0 0.0
    %193 = vmatprep.subr.mxu0 0.0
    %194 = vmatpush1.msra.mxu0 0.0
    %195 = vmatprep.subr.mxu0 0.0
    %196 = vmatpush1.msra.mxu0 0.0
    %197 = vmatprep.subr.mxu0 0.0
    %198 = vmatpush1.msra.mxu0 0.0
    %199 = vmatprep.subr.mxu0 0.0
    %200 = vmatpush1.msra.mxu0 0.0
    %201 = vmatprep.subr.mxu0 0.0
    %202 = vmatpush1.msra.mxu0 0.0
    %203 = vmatprep.subr.mxu0 0.0
    %204 = vmatpush1.msra.mxu0 0.0
    %205 = vmatprep.subr.mxu0 0.0
    %206 = vmatpush1.msra.mxu0 0.0
    %207 = vmatprep.subr.mxu0 0.0
    %208 = vmatpush1.msra.mxu0 0.0
    %209 = vmatprep.subr.mxu0 0.0
    %210 = vmatpush1.msra.mxu0 0.0
    %211 = vmatprep.subr.mxu0 0.0
    %212 = vmatpush1.msra.mxu0 0.0
    %213 = vmatprep.subr.mxu0 0.0
    %214 = vmatpush1.msra.mxu0 0.0
    %215 = vmatprep.subr.mxu0 0.0
    %216 = vmatpush1.msra.mxu0 0.0
    %217 = vmatprep.subr.mxu0 0.0
    %218 = vmatpush1.msra.mxu0 0.0
    %219 = vmatprep.subr.mxu0 0.0
    %220 = vmatpush1.msra.mxu0 0.0
    %221 = vmatprep.subr.mxu0 0.0
    %222 = vmatpush1.msra.mxu0 0.0
    %223 = vmatprep.subr.mxu0 0.0
    %224 = vmatpush1.msra.mxu0 0.0
    %225 = vmatprep.subr.mxu0 0.0
    %226 = vmatpush1.msra.mxu0 0.0
    %227 = vmatprep.subr.mxu0 0.0
    %228 = vmatpush1.msra.mxu0 0.0
    %229 = vmatprep.subr.mxu0 0.0
    %230 = vmatpush1.msra.mxu0 0.0
    %231 = vmatprep.subr.mxu0 0.0
    %232 = vmatpush1.msra.mxu0 0.0
    %233 = vmatprep.subr.mxu0 0.0
    %234 = vmatpush1.msra.mxu0 0.0
    %235 = vmatprep.subr.mxu0 0.0
    %236 = vmatpush1.msra.mxu0 0.0
    %237 = vmatprep.subr.mxu0 0.0
    %238 = vmatpush1.msra.mxu0 0.0
    %239 = vmatprep.subr.mxu0 0.0
    %240 = vmatpush1.msra.mxu0 0.0
    %241 = vmatprep.subr.mxu0 0.0
    %242 = vmatpush1.msra.mxu0 0.0
    %243 = vmatprep.mubr.f32.mxu0 0.0
    %244 = vmatmul.mubr.f32.gmra.mrb[0].mxu0 %v173
    %v245 = vpop.f32.mrb[0].mxu0
    %v246 = vadd.f32 0.0, %v245
    %v247 = vpop.f32.mrb[0].mxu0
    %248 = vdwg.mxu0
    %v249 = vld [vmem:[%s3] sm:$0xff]
    %v250 = vld [vmem:[%s3 + $0x8] sm:$0xff]
    %v251 = vld [vmem:[%s3 + $0x10] sm:$0xff]
    %v252 = vld [vmem:[%s3 + $0x18] sm:$0xff]
    %v253 = vld [vmem:[%s3 + $0x20] sm:$0x3f]
    %vm254 = vcmask 15360
    %v256 = vsel %vm254, %v249, 0
    %v259 = vsel %vm254, %v250, 0
    %v262 = vsel %vm254, %v251, 0
    %v265 = vsel %vm254, %v252, 0
    %v268 = vsel %vm254, %v253, 0
    %vm270 = vcmask 1041408
    %v272 = vsel %vm270, %v246, 0
    %274 = vmatprep.subr.mxu0 0.0
    %275 = vmatpush1.msra.mxu0 %v272
    %276 = vmatprep.subr.mxu0 0.0
    %277 = vmatpush1.msra.mxu0 0.0
    %278 = vmatprep.subr.mxu0 0.0
    %279 = vmatpush1.msra.mxu0 0.0
    %280 = vmatprep.subr.mxu0 0.0
    %281 = vmatpush1.msra.mxu0 0.0
    %282 = vmatprep.subr.mxu0 0.0
    %283 = vmatpush1.msra.mxu0 0.0
    %284 = vmatprep.subr.mxu0 0.0
    %285 = vmatpush1.msra.mxu0 0.0
    %286 = vmatprep.subr.mxu0 0.0
    %287 = vmatpush1.msra.mxu0 0.0
    %288 = vmatprep.subr.mxu0 0.0
    %289 = vmatpush1.msra.mxu0 0.0
    %290 = vmatprep.subr.mxu0 0.0
    %291 = vmatpush1.msra.mxu0 0.0
    %292 = vmatprep.subr.mxu0 0.0
    %293 = vmatpush1.msra.mxu0 0.0
    %294 = vmatprep.subr.mxu0 0.0
    %295 = vmatpush1.msra.mxu0 0.0
    %296 = vmatprep.subr.mxu0 0.0
    %297 = vmatpush1.msra.mxu0 0.0
    %298 = vmatprep.subr.mxu0 0.0
    %299 = vmatpush1.msra.mxu0 0.0
    %300 = vmatprep.subr.mxu0 0.0
    %301 = vmatpush1.msra.mxu0 0.0
    %302 = vmatprep.subr.mxu0 0.0
    %303 = vmatpush1.msra.mxu0 0.0
    %304 = vmatprep.subr.mxu0 0.0
    %305 = vmatpush1.msra.mxu0 0.0
    %306 = vmatprep.subr.mxu0 0.0
    %307 = vmatpush1.msra.mxu0 0.0
    %308 = vmatprep.subr.mxu0 0.0
    %309 = vmatpush1.msra.mxu0 0.0
    %310 = vmatprep.subr.mxu0 0.0
    %311 = vmatpush1.msra.mxu0 0.0
    %312 = vmatprep.subr.mxu0 0.0
    %313 = vmatpush1.msra.mxu0 0.0
    %314 = vmatprep.subr.mxu0 0.0
    %315 = vmatpush1.msra.mxu0 0.0
    %316 = vmatprep.subr.mxu0 0.0
    %317 = vmatpush1.msra.mxu0 0.0
    %318 = vmatprep.subr.mxu0 0.0
    %319 = vmatpush1.msra.mxu0 0.0
    %320 = vmatprep.subr.mxu0 0.0
    %321 = vmatpush1.msra.mxu0 0.0
    %322 = vmatprep.subr.mxu0 0.0
    %323 = vmatpush1.msra.mxu0 0.0
    %324 = vmatprep.subr.mxu0 0.0
    %325 = vmatpush1.msra.mxu0 0.0
    %326 = vmatprep.subr.mxu0 0.0
    %327 = vmatpush1.msra.mxu0 0.0
    %328 = vmatprep.subr.mxu0 0.0
    %329 = vmatpush1.msra.mxu0 0.0
    %330 = vmatprep.subr.mxu0 0.0
    %331 = vmatpush1.msra.mxu0 0.0
    %332 = vmatprep.subr.mxu0 0.0
    %333 = vmatpush1.msra.mxu0 0.0
    %334 = vmatprep.subr.mxu0 0.0
    %335 = vmatpush1.msra.mxu0 0.0
    %336 = vmatprep.subr.mxu0 0.0
    %337 = vmatpush1.msra.mxu0 0.0
    %338 = vmatprep.mubr.f32.mxu0 0.0
    %339 = vmatmul.mubr.f32.gmra.mrb[0].mxu0 %v256
    %v340 = vpop.f32.mrb[0].mxu0
    %v341 = vadd.f32 0.0, %v340
    %v342 = vpop.f32.mrb[0].mxu0
    %343 = vmatprep.mubr.f32.mxu0 0.0
    %344 = vmatmul.mubr.f32.gmra.mrb[0].mxu0 %v259
    %v345 = vpop.f32.mrb[0].mxu0
    %v346 = vadd.f32 0.0, %v345
    %v347 = vpop.f32.mrb[0].mxu0
    %348 = vmatprep.mubr.f32.mxu0 0.0
    %349 = vmatmul.mubr.f32.gmra.mrb[0].mxu0 %v262
    %v350 = vpop.f32.mrb[0].mxu0
    %v351 = vadd.f32 0.0, %v350
    %v352 = vpop.f32.mrb[0].mxu0
    %353 = vmatprep.mubr.f32.mxu0 0.0
    %354 = vmatmul.mubr.f32.gmra.mrb[0].mxu0 %v265
    %v355 = vpop.f32.mrb[0].mxu0
    %v356 = vadd.f32 0.0, %v355
    %v357 = vpop.f32.mrb[0].mxu0
    %358 = vmatprep.mubr.f32.mxu0 0.0
    %359 = vmatmul.mubr.f32.gmra.mrb[0].mxu0 %v268
    %v360 = vpop.f32.mrb[0].mxu0
    %v361 = vadd.f32 0.0, %v360
    %v362 = vpop.f32.mrb[0].mxu0
    %363 = vdwg.mxu0
    %v364 = vsub.f32 %v147, %v341
    %v365 = vsub.f32 %v152, %v346
    %v366 = vsub.f32 %v157, %v351
    %v367 = vsub.f32 %v162, %v356
    %v368 = vsub.f32 %v167, %v361
    %v369 = vmul.f32 %v364, %v364
    %v370 = vmul.f32 %v365, %v365
    %v371 = vmul.f32 %v366, %v366
    %v372 = vmul.f32 %v367, %v367
    %v373 = vmul.f32 %v368, %v368
    %v375 = vsel %vm175, %v373, 0
    %377 = vmatprep.subr.mxu0 0.0
    %378 = vmatpush1.msra.mxu0 %v369
    %379 = vmatprep.subr.mxu0 0.0
    %380 = vmatpush1.msra.mxu0 %v370
    %381 = vmatprep.subr.mxu0 0.0
    %382 = vmatpush1.msra.mxu0 %v371
    %383 = vmatprep.subr.mxu0 0.0
    %384 = vmatpush1.msra.mxu0 %v372
    %385 = vmatprep.subr.mxu0 0.0
    %386 = vmatpush1.msra.mxu0 %v375
    %387 = vmatprep.subr.mxu0 0.0
    %388 = vmatpush1.msra.mxu0 0.0
    %389 = vmatprep.subr.mxu0 0.0
    %390 = vmatpush1.msra.mxu0 0.0
    %391 = vmatprep.subr.mxu0 0.0
    %392 = vmatpush1.msra.mxu0 0.0
    %393 = vmatprep.subr.mxu0 0.0
    %394 = vmatpush1.msra.mxu0 0.0
    %395 = vmatprep.subr.mxu0 0.0
    %396 = vmatpush1.msra.mxu0 0.0
    %397 = vmatprep.subr.mxu0 0.0
    %398 = vmatpush1.msra.mxu0 0.0
    %399 = vmatprep.subr.mxu0 0.0
    %400 = vmatpush1.msra.mxu0 0.0
    %401 = vmatprep.subr.mxu0 0.0
    %402 = vmatpush1.msra.mxu0 0.0
    %403 = vmatprep.subr.mxu0 0.0
    %404 = vmatpush1.msra.mxu0 0.0
    %405 = vmatprep.subr.mxu0 0.0
    %406 = vmatpush1.msra.mxu0 0.0
    %407 = vmatprep.subr.mxu0 0.0
    %408 = vmatpush1.msra.mxu0 0.0
    %409 = vmatprep.subr.mxu0 0.0
    %410 = vmatpush1.msra.mxu0 0.0
    %411 = vmatprep.subr.mxu0 0.0
    %412 = vmatpush1.msra.mxu0 0.0
    %413 = vmatprep.subr.mxu0 0.0
    %414 = vmatpush1.msra.mxu0 0.0
    %415 = vmatprep.subr.mxu0 0.0
    %416 = vmatpush1.msra.mxu0 0.0
    %417 = vmatprep.subr.mxu0 0.0
    %418 = vmatpush1.msra.mxu0 0.0
    %419 = vmatprep.subr.mxu0 0.0
    %420 = vmatpush1.msra.mxu0 0.0
    %421 = vmatprep.subr.mxu0 0.0
    %422 = vmatpush1.msra.mxu0 0.0
    %423 = vmatprep.subr.mxu0 0.0
    %424 = vmatpush1.msra.mxu0 0.0
    %425 = vmatprep.subr.mxu0 0.0
    %426 = vmatpush1.msra.mxu0 0.0
    %427 = vmatprep.subr.mxu0 0.0
    %428 = vmatpush1.msra.mxu0 0.0
    %429 = vmatprep.subr.mxu0 0.0
    %430 = vmatpush1.msra.mxu0 0.0
    %431 = vmatprep.subr.mxu0 0.0
    %432 = vmatpush1.msra.mxu0 0.0
    %433 = vmatprep.subr.mxu0 0.0
    %434 = vmatpush1.msra.mxu0 0.0
    %435 = vmatprep.subr.mxu0 0.0
    %436 = vmatpush1.msra.mxu0 0.0
    %437 = vmatprep.subr.mxu0 0.0
    %438 = vmatpush1.msra.mxu0 0.0
    %439 = vmatprep.subr.mxu0 0.0
    %440 = vmatpush1.msra.mxu0 0.0
    %441 = vmatprep.mubr.f32.mxu0 0.0
    %442 = vmatmul.mubr.f32.gmra.mrb[0].mxu0 %v173
    %v443 = vpop.f32.mrb[0].mxu0
    %v444 = vadd.f32 0.0, %v443
    %v445 = vpop.f32.mrb[0].mxu0
    %446 = vdwg.mxu0
    %v448 = vsel %vm270, %v444, 0
    %450 = vmatprep.subr.mxu0 0.0
    %451 = vmatpush1.msra.mxu0 %v448
    %452 = vmatprep.subr.mxu0 0.0
    %453 = vmatpush1.msra.mxu0 0.0
    %454 = vmatprep.subr.mxu0 0.0
    %455 = vmatpush1.msra.mxu0 0.0
    %456 = vmatprep.subr.mxu0 0.0
    %457 = vmatpush1.msra.mxu0 0.0
    %458 = vmatprep.subr.mxu0 0.0
    %459 = vmatpush1.msra.mxu0 0.0
    %460 = vmatprep.subr.mxu0 0.0
    %461 = vmatpush1.msra.mxu0 0.0
    %462 = vmatprep.subr.mxu0 0.0
    %463 = vmatpush1.msra.mxu0 0.0
    %464 = vmatprep.subr.mxu0 0.0
    %465 = vmatpush1.msra.mxu0 0.0
    %466 = vmatprep.subr.mxu0 0.0
    %467 = vmatpush1.msra.mxu0 0.0
    %468 = vmatprep.subr.mxu0 0.0
    %469 = vmatpush1.msra.mxu0 0.0
    %470 = vmatprep.subr.mxu0 0.0
    %471 = vmatpush1.msra.mxu0 0.0
    %472 = vmatprep.subr.mxu0 0.0
    %473 = vmatpush1.msra.mxu0 0.0
    %474 = vmatprep.subr.mxu0 0.0
    %475 = vmatpush1.msra.mxu0 0.0
    %476 = vmatprep.subr.mxu0 0.0
    %477 = vmatpush1.msra.mxu0 0.0
    %478 = vmatprep.subr.mxu0 0.0
    %479 = vmatpush1.msra.mxu0 0.0
    %480 = vmatprep.subr.mxu0 0.0
    %481 = vmatpush1.msra.mxu0 0.0
    %482 = vmatprep.subr.mxu0 0.0
    %483 = vmatpush1.msra.mxu0 0.0
    %484 = vmatprep.subr.mxu0 0.0
    %485 = vmatpush1.msra.mxu0 0.0
    %486 = vmatprep.subr.mxu0 0.0
    %487 = vmatpush1.msra.mxu0 0.0
    %488 = vmatprep.subr.mxu0 0.0
    %489 = vmatpush1.msra.mxu0 0.0
    %490 = vmatprep.subr.mxu0 0.0
    %491 = vmatpush1.msra.mxu0 0.0
    %492 = vmatprep.subr.mxu0 0.0
    %493 = vmatpush1.msra.mxu0 0.0
    %494 = vmatprep.subr.mxu0 0.0
    %495 = vmatpush1.msra.mxu0 0.0
    %496 = vmatprep.subr.mxu0 0.0
    %497 = vmatpush1.msra.mxu0 0.0
    %498 = vmatprep.subr.mxu0 0.0
    %499 = vmatpush1.msra.mxu0 0.0
    %500 = vmatprep.subr.mxu0 0.0
    %501 = vmatpush1.msra.mxu0 0.0
    %502 = vmatprep.subr.mxu0 0.0
    %503 = vmatpush1.msra.mxu0 0.0
    %504 = vmatprep.subr.mxu0 0.0
    %505 = vmatpush1.msra.mxu0 0.0
    %506 = vmatprep.subr.mxu0 0.0
    %507 = vmatpush1.msra.mxu0 0.0
    %508 = vmatprep.subr.mxu0 0.0
    %509 = vmatpush1.msra.mxu0 0.0
    %510 = vmatprep.subr.mxu0 0.0
    %511 = vmatpush1.msra.mxu0 0.0
    %512 = vmatprep.subr.mxu0 0.0
    %513 = vmatpush1.msra.mxu0 0.0
    %514 = vmatprep.mubr.f32.mxu0 0.0
    %515 = vmatmul.mubr.f32.gmra.mrb[0].mxu0 %v256
    %v516 = vpop.f32.mrb[0].mxu0
    %v517 = vadd.f32 1e-05, %v516
    %v518 = vpop.f32.mrb[0].mxu0
    %519 = vmatprep.mubr.f32.mxu0 0.0
    %520 = vmatmul.mubr.f32.gmra.mrb[0].mxu0 %v259
    %v521 = vpop.f32.mrb[0].mxu0
    %v522 = vadd.f32 1e-05, %v521
    %v523 = vpop.f32.mrb[0].mxu0
    %524 = vmatprep.mubr.f32.mxu0 0.0
    %525 = vmatmul.mubr.f32.gmra.mrb[0].mxu0 %v262
    %v526 = vpop.f32.mrb[0].mxu0
    %v527 = vadd.f32 1e-05, %v526
    %v528 = vpop.f32.mrb[0].mxu0
    %529 = vmatprep.mubr.f32.mxu0 0.0
    %530 = vmatmul.mubr.f32.gmra.mrb[0].mxu0 %v265
    %v531 = vpop.f32.mrb[0].mxu0
    %v532 = vadd.f32 1e-05, %v531
    %v533 = vpop.f32.mrb[0].mxu0
    %534 = vmatprep.mubr.f32.mxu0 0.0
    %535 = vmatmul.mubr.f32.gmra.mrb[0].mxu0 %v268
    %v536 = vpop.f32.mrb[0].mxu0
    %v537 = vadd.f32 1e-05, %v536
    %v538 = vpop.f32.mrb[0].mxu0
    %539 = vdwg.mxu0
    %v540 = vrsqrt.pop %v517
    %v541 = vrsqrt.pop %v522
    %v542 = vrsqrt.pop %v527
    %v543 = vrsqrt.pop %v532
    %v544 = vrsqrt.pop %v537
    %v545 = vmul.f32 %v364, %v540
    %v546 = vmul.f32 %v365, %v541
    %v547 = vmul.f32 %v366, %v542
    %v548 = vmul.f32 %v367, %v543
    %v549 = vmul.f32 %v368, %v544
    %v550 = vld [vmem:[%s15] sm:$0x1]
    %v551 = vlaneseq
    %v552 = vshrl.u32 %v551, 7
    %v553 = vsub.s32 0, %v552
    %v554 = vrot.slane %v550, %v553
    %v555 = vmul.f32 %v545, %v554
    %v556 = vmul.f32 %v546, %v554
    %v557 = vmul.f32 %v547, %v554
    %v558 = vmul.f32 %v548, %v554
    %v559 = vmul.f32 %v549, %v554
    %v560 = vld [vmem:[%s15 + $0x1] sm:$0x1]
    %v561 = vlaneseq
    %v562 = vshrl.u32 %v561, 7
    %v563 = vsub.s32 0, %v562
    %v564 = vrot.slane %v560, %v563
    %v565 = vadd.f32 %v555, %v564
    %v566 = vadd.f32 %v556, %v564
    %v567 = vadd.f32 %v557, %v564
    %v568 = vadd.f32 %v558, %v564
    %v569 = vadd.f32 %v559, %v564
    %v570 = vmul.f32 %v565, 0.5
    %v571 = vmul.f32 %v566, 0.5
    %v572 = vmul.f32 %v567, 0.5
    %v573 = vmul.f32 %v568, 0.5
    %v574 = vmul.f32 %v569, 0.5
    %v575 = vmul.f32 %v565, 0.044715
    %v576 = vmul.f32 %v566, 0.044715
    %v577 = vmul.f32 %v567, 0.044715
    %v578 = vmul.f32 %v568, 0.044715
    %v579 = vmul.f32 %v569, 0.044715
    %v580 = vmul.f32 %v575, %v565
    %v581 = vmul.f32 %v576, %v566
    %v582 = vmul.f32 %v577, %v567
    %v583 = vmul.f32 %v578, %v568
    %v584 = vmul.f32 %v579, %v569
    %v585 = vmul.f32 %v580, %v565
    %v586 = vmul.f32 %v581, %v566
    %v587 = vmul.f32 %v582, %v567
    %v588 = vmul.f32 %v583, %v568
    %v589 = vmul.f32 %v584, %v569
    %v590 = vadd.f32 %v565, %v585
    %v591 = vadd.f32 %v566, %v586
    %v592 = vadd.f32 %v567, %v587
    %v593 = vadd.f32 %v568, %v588
    %v594 = vadd.f32 %v569, %v589
    %v595 = vmul.f32 %v590, 0.7978846
    %v596 = vmul.f32 %v591, 0.7978846
    %v597 = vmul.f32 %v592, 0.7978846
    %v598 = vmul.f32 %v593, 0.7978846
    %v599 = vmul.f32 %v594, 0.7978846
    %v600 = vtanh.pop %v595
    %v601 = vtanh.pop %v596
    %v602 = vtanh.pop %v597
    %v603 = vtanh.pop %v598
    %v604 = vtanh.pop %v599
    %v605 = vadd.f32 %v600, 1.0
    %v606 = vadd.f32 %v601, 1.0
    %v607 = vadd.f32 %v602, 1.0
    %v608 = vadd.f32 %v603, 1.0
    %v609 = vadd.f32 %v604, 1.0
    %v610 = vmul.f32 %v570, %v605
    %v611 = vmul.f32 %v571, %v606
    %v612 = vmul.f32 %v572, %v607
    %v613 = vmul.f32 %v573, %v608
    %v614 = vmul.f32 %v574, %v609
    %v615 = vld [vmem:[%s4] sm:$0xff]
    %v616 = vld [vmem:[%s4 + $0x8] sm:$0xff]
    %v618 = vsel %vm171, %v615, 0
    %v621 = vsel %vm171, %v616, 0
    %v624 = vsel %vm175, %v614, 0
    %626 = vmatprep.subr.mxu0 0.0
    %627 = vmatpush1.msra.mxu0 %v610
    %628 = vmatprep.subr.mxu0 0.0
    %629 = vmatpush1.msra.mxu0 %v611
    %630 = vmatprep.subr.mxu0 0.0
    %631 = vmatpush1.msra.mxu0 %v612
    %632 = vmatprep.subr.mxu0 0.0
    %633 = vmatpush1.msra.mxu0 %v613
    %634 = vmatprep.subr.mxu0 0.0
    %635 = vmatpush1.msra.mxu0 %v624
    %636 = vmatprep.subr.mxu0 0.0
    %637 = vmatpush1.msra.mxu0 0.0
    %638 = vmatprep.subr.mxu0 0.0
    %639 = vmatpush1.msra.mxu0 0.0
    %640 = vmatprep.subr.mxu0 0.0
    %641 = vmatpush1.msra.mxu0 0.0
    %642 = vmatprep.subr.mxu0 0.0
    %643 = vmatpush1.msra.mxu0 0.0
    %644 = vmatprep.subr.mxu0 0.0
    %645 = vmatpush1.msra.mxu0 0.0
    %646 = vmatprep.subr.mxu0 0.0
    %647 = vmatpush1.msra.mxu0 0.0
    %648 = vmatprep.subr.mxu0 0.0
    %649 = vmatpush1.msra.mxu0 0.0
    %650 = vmatprep.subr.mxu0 0.0
    %651 = vmatpush1.msra.mxu0 0.0
    %652 = vmatprep.subr.mxu0 0.0
    %653 = vmatpush1.msra.mxu0 0.0
    %654 = vmatprep.subr.mxu0 0.0
    %655 = vmatpush1.msra.mxu0 0.0
    %656 = vmatprep.subr.mxu0 0.0
    %657 = vmatpush1.msra.mxu0 0.0
    %658 = vmatprep.subr.mxu0 0.0
    %659 = vmatpush1.msra.mxu0 0.0
    %660 = vmatprep.subr.mxu0 0.0
    %661 = vmatpush1.msra.mxu0 0.0
    %662 = vmatprep.subr.mxu0 0.0
    %663 = vmatpush1.msra.mxu0 0.0
    %664 = vmatprep.subr.mxu0 0.0
    %665 = vmatpush1.msra.mxu0 0.0
    %666 = vmatprep.subr.mxu0 0.0
    %667 = vmatpush1.msra.mxu0 0.0
    %668 = vmatprep.subr.mxu0 0.0
    %669 = vmatpush1.msra.mxu0 0.0
    %670 = vmatprep.subr.mxu0 0.0
    %671 = vmatpush1.msra.mxu0 0.0
    %672 = vmatprep.subr.mxu0 0.0
    %673 = vmatpush1.msra.mxu0 0.0
    %674 = vmatprep.subr.mxu0 0.0
    %675 = vmatpush1.msra.mxu0 0.0
    %676 = vmatprep.subr.mxu0 0.0
    %677 = vmatpush1.msra.mxu0 0.0
    %678 = vmatprep.subr.mxu0 0.0
    %679 = vmatpush1.msra.mxu0 0.0
    %680 = vmatprep.subr.mxu0 0.0
    %681 = vmatpush1.msra.mxu0 0.0
    %682 = vmatprep.subr.mxu0 0.0
    %683 = vmatpush1.msra.mxu0 0.0
    %684 = vmatprep.subr.mxu0 0.0
    %685 = vmatpush1.msra.mxu0 0.0
    %686 = vmatprep.subr.mxu0 0.0
    %687 = vmatpush1.msra.mxu0 0.0
    %688 = vmatprep.subr.mxu0 0.0
    %689 = vmatpush1.msra.mxu0 0.0
    %690 = vmatprep.mubr.f32.mxu0 0.0
    %691 = vmatmul.mubr.f32.gmra.mrb[0].mxu0 %v618
    %v692 = vpop.f32.mrb[0].mxu0
    %v693 = vadd.f32 0.0, %v692
    %v694 = vpop.f32.mrb[0].mxu0
    %695 = vmatprep.mubr.f32.mxu0 0.0
    %696 = vmatmul.mubr.f32.gmra.mrb[0].mxu0 %v621
    %v697 = vpop.f32.mrb[0].mxu0
    %v698 = vadd.f32 0.0, %v697
    %v699 = vpop.f32.mrb[0].mxu0
    %700 = vdwg.mxu0
    %v701 = vld [vmem:[%s5] sm:$0xff]
    %v702 = vld [vmem:[%s5 + $0x8] sm:$0xff]
    %s703 = scalar_lea.vmem %s4, 16
    %v704 = vld [vmem:[%s703] sm:$0xff]
    %v705 = vld [vmem:[%s703 + $0x8] sm:$0xff]
    %v707 = vsel %vm171, %v704, 0
    %v710 = vsel %vm171, %v705, 0
    %712 = vmatprep.subr.mxu0 0.0
    %713 = vmatpush1.msra.mxu0 %v610
    %714 = vmatprep.subr.mxu0 0.0
    %715 = vmatpush1.msra.mxu0 %v611
    %716 = vmatprep.subr.mxu0 0.0
    %717 = vmatpush1.msra.mxu0 %v612
    %718 = vmatprep.subr.mxu0 0.0
    %719 = vmatpush1.msra.mxu0 %v613
    %720 = vmatprep.subr.mxu0 0.0
    %721 = vmatpush1.msra.mxu0 %v624
    %722 = vmatprep.subr.mxu0 0.0
    %723 = vmatpush1.msra.mxu0 0.0
    %724 = vmatprep.subr.mxu0 0.0
    %725 = vmatpush1.msra.mxu0 0.0
    %726 = vmatprep.subr.mxu0 0.0
    %727 = vmatpush1.msra.mxu0 0.0
    %728 = vmatprep.subr.mxu0 0.0
    %729 = vmatpush1.msra.mxu0 0.0
    %730 = vmatprep.subr.mxu0 0.0
    %731 = vmatpush1.msra.mxu0 0.0
    %732 = vmatprep.subr.mxu0 0.0
    %733 = vmatpush1.msra.mxu0 0.0
    %734 = vmatprep.subr.mxu0 0.0
    %735 = vmatpush1.msra.mxu0 0.0
    %736 = vmatprep.subr.mxu0 0.0
    %737 = vmatpush1.msra.mxu0 0.0
    %738 = vmatprep.subr.mxu0 0.0
    %739 = vmatpush1.msra.mxu0 0.0
    %740 = vmatprep.subr.mxu0 0.0
    %741 = vmatpush1.msra.mxu0 0.0
    %742 = vmatprep.subr.mxu0 0.0
    %743 = vmatpush1.msra.mxu0 0.0
    %744 = vmatprep.subr.mxu0 0.0
    %745 = vmatpush1.msra.mxu0 0.0
    %746 = vmatprep.subr.mxu0 0.0
    %747 = vmatpush1.msra.mxu0 0.0
    %748 = vmatprep.subr.mxu0 0.0
    %749 = vmatpush1.msra.mxu0 0.0
    %750 = vmatprep.subr.mxu0 0.0
    %751 = vmatpush1.msra.mxu0 0.0
    %752 = vmatprep.subr.mxu0 0.0
    %753 = vmatpush1.msra.mxu0 0.0
    %754 = vmatprep.subr.mxu0 0.0
    %755 = vmatpush1.msra.mxu0 0.0
    %756 = vmatprep.subr.mxu0 0.0
    %757 = vmatpush1.msra.mxu0 0.0
    %758 = vmatprep.subr.mxu0 0.0
    %759 = vmatpush1.msra.mxu0 0.0
    %760 = vmatprep.subr.mxu0 0.0
    %761 = vmatpush1.msra.mxu0 0.0
    %762 = vmatprep.subr.mxu0 0.0
    %763 = vmatpush1.msra.mxu0 0.0
    %764 = vmatprep.subr.mxu0 0.0
    %765 = vmatpush1.msra.mxu0 0.0
    %766 = vmatprep.subr.mxu0 0.0
    %767 = vmatpush1.msra.mxu0 0.0
    %768 = vmatprep.subr.mxu0 0.0
    %769 = vmatpush1.msra.mxu0 0.0
    %770 = vmatprep.subr.mxu0 0.0
    %771 = vmatpush1.msra.mxu0 0.0
    %772 = vmatprep.subr.mxu0 0.0
    %773 = vmatpush1.msra.mxu0 0.0
    %774 = vmatprep.subr.mxu0 0.0
    %775 = vmatpush1.msra.mxu0 0.0
    %776 = vmatprep.mubr.f32.mxu0 0.0
    %777 = vmatmul.mubr.f32.gmra.mrb[0].mxu0 %v707
    %v778 = vpop.f32.mrb[0].mxu0
    %v779 = vadd.f32 0.0, %v778
    %v780 = vpop.f32.mrb[0].mxu0
    %781 = vmatprep.mubr.f32.mxu0 0.0
    %782 = vmatmul.mubr.f32.gmra.mrb[0].mxu0 %v710
    %v783 = vpop.f32.mrb[0].mxu0
    %v784 = vadd.f32 0.0, %v783
    %v785 = vpop.f32.mrb[0].mxu0
    %786 = vdwg.mxu0
    %s787 = scalar_lea.vmem %s5, 16
    %v788 = vld [vmem:[%s787] sm:$0xff]
    %v789 = vld [vmem:[%s787 + $0x8] sm:$0xff]
    %vm790 = vcmask 130048
    %v792 = vsel %vm790, %v779, 0
    %v795 = vsel %vm790, %v784, 0
    %797 = vmatprep.subr.mxu0 0.0
    %798 = vmatpush1.msra.mxu0 %v788
    %799 = vmatprep.subr.mxu0 0.0
    %800 = vmatpush1.msra.mxu0 %v789
    %801 = vmatprep.subr.mxu0 0.0
    %802 = vmatpush1.msra.mxu0 0.0
    %803 = vmatprep.subr.mxu0 0.0
    %804 = vmatpush1.msra.mxu0 0.0
    %805 = vmatprep.subr.mxu0 0.0
    %806 = vmatpush1.msra.mxu0 0.0
    %807 = vmatprep.subr.mxu0 0.0
    %808 = vmatpush1.msra.mxu0 0.0
    %809 = vmatprep.subr.mxu0 0.0
    %810 = vmatpush1.msra.mxu0 0.0
    %811 = vmatprep.subr.mxu0 0.0
    %812 = vmatpush1.msra.mxu0 0.0
    %813 = vmatprep.subr.mxu0 0.0
    %814 = vmatpush1.msra.mxu0 0.0
    %815 = vmatprep.subr.mxu0 0.0
    %816 = vmatpush1.msra.mxu0 0.0
    %817 = vmatprep.subr.mxu0 0.0
    %818 = vmatpush1.msra.mxu0 0.0
    %819 = vmatprep.subr.mxu0 0.0
    %820 = vmatpush1.msra.mxu0 0.0
    %821 = vmatprep.subr.mxu0 0.0
    %822 = vmatpush1.msra.mxu0 0.0
    %823 = vmatprep.subr.mxu0 0.0
    %824 = vmatpush1.msra.mxu0 0.0
    %825 = vmatprep.subr.mxu0 0.0
    %826 = vmatpush1.msra.mxu0 0.0
    %827 = vmatprep.subr.mxu0 0.0
    %828 = vmatpush1.msra.mxu0 0.0
    %829 = vmatprep.subr.mxu0 0.0
    %830 = vmatpush1.msra.mxu0 0.0
    %831 = vmatprep.subr.mxu0 0.0
    %832 = vmatpush1.msra.mxu0 0.0
    %833 = vmatprep.subr.mxu0 0.0
    %834 = vmatpush1.msra.mxu0 0.0
    %835 = vmatprep.subr.mxu0 0.0
    %836 = vmatpush1.msra.mxu0 0.0
    %837 = vmatprep.subr.mxu0 0.0
    %838 = vmatpush1.msra.mxu0 0.0
    %839 = vmatprep.subr.mxu0 0.0
    %840 = vmatpush1.msra.mxu0 0.0
    %841 = vmatprep.subr.mxu0 0.0
    %842 = vmatpush1.msra.mxu0 0.0
    %843 = vmatprep.subr.mxu0 0.0
    %844 = vmatpush1.msra.mxu0 0.0
    %845 = vmatprep.subr.mxu0 0.0
    %846 = vmatpush1.msra.mxu0 0.0
    %847 = vmatprep.subr.mxu0 0.0
    %848 = vmatpush1.msra.mxu0 0.0
    %849 = vmatprep.subr.mxu0 0.0
    %850 = vmatpush1.msra.mxu0 0.0
    %851 = vmatprep.subr.mxu0 0.0
    %852 = vmatpush1.msra.mxu0 0.0
    %853 = vmatprep.subr.mxu0 0.0
    %854 = vmatpush1.msra.mxu0 0.0
    %855 = vmatprep.subr.mxu0 0.0
    %856 = vmatpush1.msra.mxu0 0.0
    %857 = vmatprep.subr.mxu0 0.0
    %858 = vmatpush1.msra.mxu0 0.0
    %859 = vmatprep.subr.mxu0 0.0
    %860 = vmatpush1.msra.mxu0 0.0
    %861 = vmatprep.mubr.f32.mxu0 0.0
    %862 = vmatmul.mubr.f32.gmra.mrb[0].mxu0 %v792
    %v863 = vpop.f32.mrb[0].mxu0
    %v864 = vadd.f32 0.0, %v863
    %v865 = vpop.f32.mrb[0].mxu0
    %866 = vmatprep.mubr.f32.mxu0 0.0
    %867 = vmatmul.mubr.f32.gmra.mrb[0].mxu0 %v795
    %v868 = vpop.f32.mrb[0].mxu0
    %v869 = vadd.f32 0.0, %v868
    %v870 = vpop.f32.mrb[0].mxu0
    %871 = vdwg.mxu0
    %v873 = vsel %vm790, %v693, 0
    %v876 = vsel %vm790, %v698, 0
    %878 = vmatprep.subr.mxu0 0.0
    %879 = vmatpush1.msra.mxu0 %v701
    %880 = vmatprep.subr.mxu0 0.0
    %881 = vmatpush1.msra.mxu0 %v702
    %882 = vmatprep.subr.mxu0 0.0
    %883 = vmatpush1.msra.mxu0 0.0
    %884 = vmatprep.subr.mxu0 0.0
    %885 = vmatpush1.msra.mxu0 0.0
    %886 = vmatprep.subr.mxu0 0.0
    %887 = vmatpush1.msra.mxu0 0.0
    %888 = vmatprep.subr.mxu0 0.0
    %889 = vmatpush1.msra.mxu0 0.0
    %890 = vmatprep.subr.mxu0 0.0
    %891 = vmatpush1.msra.mxu0 0.0
    %892 = vmatprep.subr.mxu0 0.0
    %893 = vmatpush1.msra.mxu0 0.0
    %894 = vmatprep.subr.mxu0 0.0
    %895 = vmatpush1.msra.mxu0 0.0
    %896 = vmatprep.subr.mxu0 0.0
    %897 = vmatpush1.msra.mxu0 0.0
    %898 = vmatprep.subr.mxu0 0.0
    %899 = vmatpush1.msra.mxu0 0.0
    %900 = vmatprep.subr.mxu0 0.0
    %901 = vmatpush1.msra.mxu0 0.0
    %902 = vmatprep.subr.mxu0 0.0
    %903 = vmatpush1.msra.mxu0 0.0
    %904 = vmatprep.subr.mxu0 0.0
    %905 = vmatpush1.msra.mxu0 0.0
    %906 = vmatprep.subr.mxu0 0.0
    %907 = vmatpush1.msra.mxu0 0.0
    %908 = vmatprep.subr.mxu0 0.0
    %909 = vmatpush1.msra.mxu0 0.0
    %910 = vmatprep.subr.mxu0 0.0
    %911 = vmatpush1.msra.mxu0 0.0
    %912 = vmatprep.subr.mxu0 0.0
    %913 = vmatpush1.msra.mxu0 0.0
    %914 = vmatprep.subr.mxu0 0.0
    %915 = vmatpush1.msra.mxu0 0.0
    %916 = vmatprep.subr.mxu0 0.0
    %917 = vmatpush1.msra.mxu0 0.0
    %918 = vmatprep.subr.mxu0 0.0
    %919 = vmatpush1.msra.mxu0 0.0
    %920 = vmatprep.subr.mxu0 0.0
    %921 = vmatpush1.msra.mxu0 0.0
    %922 = vmatprep.subr.mxu0 0.0
    %923 = vmatpush1.msra.mxu0 0.0
    %924 = vmatprep.subr.mxu0 0.0
    %925 = vmatpush1.msra.mxu0 0.0
    %926 = vmatprep.subr.mxu0 0.0
    %927 = vmatpush1.msra.mxu0 0.0
    %928 = vmatprep.subr.mxu0 0.0
    %929 = vmatpush1.msra.mxu0 0.0
    %930 = vmatprep.subr.mxu0 0.0
    %931 = vmatpush1.msra.mxu0 0.0
    %932 = vmatprep.subr.mxu0 0.0
    %933 = vmatpush1.msra.mxu0 0.0
    %934 = vmatprep.subr.mxu0 0.0
    %935 = vmatpush1.msra.mxu0 0.0
    %936 = vmatprep.subr.mxu0 0.0
    %937 = vmatpush1.msra.mxu0 0.0
    %938 = vmatprep.subr.mxu0 0.0
    %939 = vmatpush1.msra.mxu0 0.0
    %940 = vmatprep.subr.mxu0 0.0
    %941 = vmatpush1.msra.mxu0 0.0
    %942 = vmatprep.mubr.f32.mxu0 0.0
    %943 = vmatmul.mubr.f32.gmra.mrb[0].mxu0 %v873
    %v944 = vpop.f32.mrb[0].mxu0
    %v945 = vadd.f32 %v864, %v944
    %v946 = vpop.f32.mrb[0].mxu0
    %947 = vmatprep.mubr.f32.mxu0 0.0
    %948 = vmatmul.mubr.f32.gmra.mrb[0].mxu0 %v876
    %v949 = vpop.f32.mrb[0].mxu0
    %v950 = vadd.f32 %v869, %v949
    %v951 = vpop.f32.mrb[0].mxu0
    %952 = vdwg.mxu0
    %s953 = scalar_lea.vmem %s4, 32
    %v954 = vld [vmem:[%s953] sm:$0xff]
    %v955 = vld [vmem:[%s953 + $0x8] sm:$0xff]
    %v957 = vsel %vm171, %v954, 0
    %v960 = vsel %vm171, %v955, 0
    %962 = vmatprep.subr.mxu0 0.0
    %963 = vmatpush1.msra.mxu0 %v610
    %964 = vmatprep.subr.mxu0 0.0
    %965 = vmatpush1.msra.mxu0 %v611
    %966 = vmatprep.subr.mxu0 0.0
    %967 = vmatpush1.msra.mxu0 %v612
    %968 = vmatprep.subr.mxu0 0.0
    %969 = vmatpush1.msra.mxu0 %v613
    %970 = vmatprep.subr.mxu0 0.0
    %971 = vmatpush1.msra.mxu0 %v624
    %972 = vmatprep.subr.mxu0 0.0
    %973 = vmatpush1.msra.mxu0 0.0
    %974 = vmatprep.subr.mxu0 0.0
    %975 = vmatpush1.msra.mxu0 0.0
    %976 = vmatprep.subr.mxu0 0.0
    %977 = vmatpush1.msra.mxu0 0.0
    %978 = vmatprep.subr.mxu0 0.0
    %979 = vmatpush1.msra.mxu0 0.0
    %980 = vmatprep.subr.mxu0 0.0
    %981 = vmatpush1.msra.mxu0 0.0
    %982 = vmatprep.subr.mxu0 0.0
    %983 = vmatpush1.msra.mxu0 0.0
    %984 = vmatprep.subr.mxu0 0.0
    %985 = vmatpush1.msra.mxu0 0.0
    %986 = vmatprep.subr.mxu0 0.0
    %987 = vmatpush1.msra.mxu0 0.0
    %988 = vmatprep.subr.mxu0 0.0
    %989 = vmatpush1.msra.mxu0 0.0
    %990 = vmatprep.subr.mxu0 0.0
    %991 = vmatpush1.msra.mxu0 0.0
    %992 = vmatprep.subr.mxu0 0.0
    %993 = vmatpush1.msra.mxu0 0.0
    %994 = vmatprep.subr.mxu0 0.0
    %995 = vmatpush1.msra.mxu0 0.0
    %996 = vmatprep.subr.mxu0 0.0
    %997 = vmatpush1.msra.mxu0 0.0
    %998 = vmatprep.subr.mxu0 0.0
    %999 = vmatpush1.msra.mxu0 0.0
    %1000 = vmatprep.subr.mxu0 0.0
    %1001 = vmatpush1.msra.mxu0 0.0
    %1002 = vmatprep.subr.mxu0 0.0
    %1003 = vmatpush1.msra.mxu0 0.0
    %1004 = vmatprep.subr.mxu0 0.0
    %1005 = vmatpush1.msra.mxu0 0.0
    %1006 = vmatprep.subr.mxu0 0.0
    %1007 = vmatpush1.msra.mxu0 0.0
    %1008 = vmatprep.subr.mxu0 0.0
    %1009 = vmatpush1.msra.mxu0 0.0
    %1010 = vmatprep.subr.mxu0 0.0
    %1011 = vmatpush1.msra.mxu0 0.0
    %1012 = vmatprep.subr.mxu0 0.0
    %1013 = vmatpush1.msra.mxu0 0.0
    %1014 = vmatprep.subr.mxu0 0.0
    %1015 = vmatpush1.msra.mxu0 0.0
    %1016 = vmatprep.subr.mxu0 0.0
    %1017 = vmatpush1.msra.mxu0 0.0
    %1018 = vmatprep.subr.mxu0 0.0
    %1019 = vmatpush1.msra.mxu0 0.0
    %1020 = vmatprep.subr.mxu0 0.0
    %1021 = vmatpush1.msra.mxu0 0.0
    %1022 = vmatprep.subr.mxu0 0.0
    %1023 = vmatpush1.msra.mxu0 0.0
    %1024 = vmatprep.subr.mxu0 0.0
    %1025 = vmatpush1.msra.mxu0 0.0
    %1026 = vmatprep.mubr.f32.mxu0 0.0
    %1027 = vmatmul.mubr.f32.gmra.mrb[0].mxu0 %v957
    %v1028 = vpop.f32.mrb[0].mxu0
    %v1029 = vadd.f32 0.0, %v1028
    %v1030 = vpop.f32.mrb[0].mxu0
    %1031 = vmatprep.mubr.f32.mxu0 0.0
    %1032 = vmatmul.mubr.f32.gmra.mrb[0].mxu0 %v960
    %v1033 = vpop.f32.mrb[0].mxu0
    %v1034 = vadd.f32 0.0, %v1033
    %v1035 = vpop.f32.mrb[0].mxu0
    %1036 = vdwg.mxu0
    %s1037 = scalar_lea.vmem %s5, 32
    %v1038 = vld [vmem:[%s1037] sm:$0xff]
    %v1039 = vld [vmem:[%s1037 + $0x8] sm:$0xff]
    %v1041 = vsel %vm790, %v1029, 0
    %v1044 = vsel %vm790, %v1034, 0
    %1046 = vmatprep.subr.mxu0 0.0
    %1047 = vmatpush1.msra.mxu0 %v1038
    %1048 = vmatprep.subr.mxu0 0.0
    %1049 = vmatpush1.msra.mxu0 %v1039
    %1050 = vmatprep.subr.mxu0 0.0
    %1051 = vmatpush1.msra.mxu0 0.0
    %1052 = vmatprep.subr.mxu0 0.0
    %1053 = vmatpush1.msra.mxu0 0.0
    %1054 = vmatprep.subr.mxu0 0.0
    %1055 = vmatpush1.msra.mxu0 0.0
    %1056 = vmatprep.subr.mxu0 0.0
    %1057 = vmatpush1.msra.mxu0 0.0
    %1058 = vmatprep.subr.mxu0 0.0
    %1059 = vmatpush1.msra.mxu0 0.0
    %1060 = vmatprep.subr.mxu0 0.0
    %1061 = vmatpush1.msra.mxu0 0.0
    %1062 = vmatprep.subr.mxu0 0.0
    %1063 = vmatpush1.msra.mxu0 0.0
    %1064 = vmatprep.subr.mxu0 0.0
    %1065 = vmatpush1.msra.mxu0 0.0
    %1066 = vmatprep.subr.mxu0 0.0
    %1067 = vmatpush1.msra.mxu0 0.0
    %1068 = vmatprep.subr.mxu0 0.0
    %1069 = vmatpush1.msra.mxu0 0.0
    %1070 = vmatprep.subr.mxu0 0.0
    %1071 = vmatpush1.msra.mxu0 0.0
    %1072 = vmatprep.subr.mxu0 0.0
    %1073 = vmatpush1.msra.mxu0 0.0
    %1074 = vmatprep.subr.mxu0 0.0
    %1075 = vmatpush1.msra.mxu0 0.0
    %1076 = vmatprep.subr.mxu0 0.0
    %1077 = vmatpush1.msra.mxu0 0.0
    %1078 = vmatprep.subr.mxu0 0.0
    %1079 = vmatpush1.msra.mxu0 0.0
    %1080 = vmatprep.subr.mxu0 0.0
    %1081 = vmatpush1.msra.mxu0 0.0
    %1082 = vmatprep.subr.mxu0 0.0
    %1083 = vmatpush1.msra.mxu0 0.0
    %1084 = vmatprep.subr.mxu0 0.0
    %1085 = vmatpush1.msra.mxu0 0.0
    %1086 = vmatprep.subr.mxu0 0.0
    %1087 = vmatpush1.msra.mxu0 0.0
    %1088 = vmatprep.subr.mxu0 0.0
    %1089 = vmatpush1.msra.mxu0 0.0
    %1090 = vmatprep.subr.mxu0 0.0
    %1091 = vmatpush1.msra.mxu0 0.0
    %1092 = vmatprep.subr.mxu0 0.0
    %1093 = vmatpush1.msra.mxu0 0.0
    %1094 = vmatprep.subr.mxu0 0.0
    %1095 = vmatpush1.msra.mxu0 0.0
    %1096 = vmatprep.subr.mxu0 0.0
    %1097 = vmatpush1.msra.mxu0 0.0
    %1098 = vmatprep.subr.mxu0 0.0
    %1099 = vmatpush1.msra.mxu0 0.0
    %1100 = vmatprep.subr.mxu0 0.0
    %1101 = vmatpush1.msra.mxu0 0.0
    %1102 = vmatprep.subr.mxu0 0.0
    %1103 = vmatpush1.msra.mxu0 0.0
    %1104 = vmatprep.subr.mxu0 0.0
    %1105 = vmatpush1.msra.mxu0 0.0
    %1106 = vmatprep.subr.mxu0 0.0
    %1107 = vmatpush1.msra.mxu0 0.0
    %1108 = vmatprep.subr.mxu0 0.0
    %1109 = vmatpush1.msra.mxu0 0.0
    %1110 = vmatprep.mubr.f32.mxu0 0.0
    %1111 = vmatmul.mubr.f32.gmra.mrb[0].mxu0 %v1041
    %v1112 = vpop.f32.mrb[0].mxu0
    %v1113 = vadd.f32 0.0, %v1112
    %v1114 = vpop.f32.mrb[0].mxu0
    %1115 = vmatprep.mubr.f32.mxu0 0.0
    %1116 = vmatmul.mubr.f32.gmra.mrb[0].mxu0 %v1044
    %v1117 = vpop.f32.mrb[0].mxu0
    %v1118 = vadd.f32 0.0, %v1117
    %v1119 = vpop.f32.mrb[0].mxu0
    %1120 = vdwg.mxu0
    %v1121 = vadd.f32 %v945, %v1113
    %v1122 = vadd.f32 %v950, %v1118
    %s1123 = scalar_lea.vmem %s4, 48
    %v1124 = vld [vmem:[%s1123] sm:$0xff]
    %v1125 = vld [vmem:[%s1123 + $0x8] sm:$0xff]
    %v1127 = vsel %vm171, %v1124, 0
    %v1130 = vsel %vm171, %v1125, 0
    %1132 = vmatprep.subr.mxu0 0.0
    %1133 = vmatpush1.msra.mxu0 %v610
    %1134 = vmatprep.subr.mxu0 0.0
    %1135 = vmatpush1.msra.mxu0 %v611
    %1136 = vmatprep.subr.mxu0 0.0
    %1137 = vmatpush1.msra.mxu0 %v612
    %1138 = vmatprep.subr.mxu0 0.0
    %1139 = vmatpush1.msra.mxu0 %v613
    %1140 = vmatprep.subr.mxu0 0.0
    %1141 = vmatpush1.msra.mxu0 %v624
    %1142 = vmatprep.subr.mxu0 0.0
    %1143 = vmatpush1.msra.mxu0 0.0
    %1144 = vmatprep.subr.mxu0 0.0
    %1145 = vmatpush1.msra.mxu0 0.0
    %1146 = vmatprep.subr.mxu0 0.0
    %1147 = vmatpush1.msra.mxu0 0.0
    %1148 = vmatprep.subr.mxu0 0.0
    %1149 = vmatpush1.msra.mxu0 0.0
    %1150 = vmatprep.subr.mxu0 0.0
    %1151 = vmatpush1.msra.mxu0 0.0
    %1152 = vmatprep.subr.mxu0 0.0
    %1153 = vmatpush1.msra.mxu0 0.0
    %1154 = vmatprep.subr.mxu0 0.0
    %1155 = vmatpush1.msra.mxu0 0.0
    %1156 = vmatprep.subr.mxu0 0.0
    %1157 = vmatpush1.msra.mxu0 0.0
    %1158 = vmatprep.subr.mxu0 0.0
    %1159 = vmatpush1.msra.mxu0 0.0
    %1160 = vmatprep.subr.mxu0 0.0
    %1161 = vmatpush1.msra.mxu0 0.0
    %1162 = vmatprep.subr.mxu0 0.0
    %1163 = vmatpush1.msra.mxu0 0.0
    %1164 = vmatprep.subr.mxu0 0.0
    %1165 = vmatpush1.msra.mxu0 0.0
    %1166 = vmatprep.subr.mxu0 0.0
    %1167 = vmatpush1.msra.mxu0 0.0
    %1168 = vmatprep.subr.mxu0 0.0
    %1169 = vmatpush1.msra.mxu0 0.0
    %1170 = vmatprep.subr.mxu0 0.0
    %1171 = vmatpush1.msra.mxu0 0.0
    %1172 = vmatprep.subr.mxu0 0.0
    %1173 = vmatpush1.msra.mxu0 0.0
    %1174 = vmatprep.subr.mxu0 0.0
    %1175 = vmatpush1.msra.mxu0 0.0
    %1176 = vmatprep.subr.mxu0 0.0
    %1177 = vmatpush1.msra.mxu0 0.0
    %1178 = vmatprep.subr.mxu0 0.0
    %1179 = vmatpush1.msra.mxu0 0.0
    %1180 = vmatprep.subr.mxu0 0.0
    %1181 = vmatpush1.msra.mxu0 0.0
    %1182 = vmatprep.subr.mxu0 0.0
    %1183 = vmatpush1.msra.mxu0 0.0
    %1184 = vmatprep.subr.mxu0 0.0
    %1185 = vmatpush1.msra.mxu0 0.0
    %1186 = vmatprep.subr.mxu0 0.0
    %1187 = vmatpush1.msra.mxu0 0.0
    %1188 = vmatprep.subr.mxu0 0.0
    %1189 = vmatpush1.msra.mxu0 0.0
    %1190 = vmatprep.subr.mxu0 0.0
    %1191 = vmatpush1.msra.mxu0 0.0
    %1192 = vmatprep.subr.mxu0 0.0
    %1193 = vmatpush1.msra.mxu0 0.0
    %1194 = vmatprep.subr.mxu0 0.0
    %1195 = vmatpush1.msra.mxu0 0.0
    %1196 = vmatprep.mubr.f32.mxu0 0.0
    %1197 = vmatmul.mubr.f32.gmra.mrb[0].mxu0 %v1127
    %v1198 = vpop.f32.mrb[0].mxu0
    %v1199 = vadd.f32 0.0, %v1198
    %v1200 = vpop.f32.mrb[0].mxu0
    %1201 = vmatprep.mubr.f32.mxu0 0.0
    %1202 = vmatmul.mubr.f32.gmra.mrb[0].mxu0 %v1130
    %v1203 = vpop.f32.mrb[0].mxu0
    %v1204 = vadd.f32 0.0, %v1203
    %v1205 = vpop.f32.mrb[0].mxu0
    %1206 = vdwg.mxu0
    %s1207 = scalar_lea.vmem %s5, 48
    %v1208 = vld [vmem:[%s1207] sm:$0xff]
    %v1209 = vld [vmem:[%s1207 + $0x8] sm:$0xff]
    %v1211 = vsel %vm790, %v1199, 0
    %v1214 = vsel %vm790, %v1204, 0
    %1216 = vmatprep.subr.mxu0 0.0
    %1217 = vmatpush1.msra.mxu0 %v1208
    %1218 = vmatprep.subr.mxu0 0.0
    %1219 = vmatpush1.msra.mxu0 %v1209
    %1220 = vmatprep.subr.mxu0 0.0
    %1221 = vmatpush1.msra.mxu0 0.0
    %1222 = vmatprep.subr.mxu0 0.0
    %1223 = vmatpush1.msra.mxu0 0.0
    %1224 = vmatprep.subr.mxu0 0.0
    %1225 = vmatpush1.msra.mxu0 0.0
    %1226 = vmatprep.subr.mxu0 0.0
    %1227 = vmatpush1.msra.mxu0 0.0
    %1228 = vmatprep.subr.mxu0 0.0
    %1229 = vmatpush1.msra.mxu0 0.0
    %1230 = vmatprep.subr.mxu0 0.0
    %1231 = vmatpush1.msra.mxu0 0.0
    %1232 = vmatprep.subr.mxu0 0.0
    %1233 = vmatpush1.msra.mxu0 0.0
    %1234 = vmatprep.subr.mxu0 0.0
    %1235 = vmatpush1.msra.mxu0 0.0
    %1236 = vmatprep.subr.mxu0 0.0
    %1237 = vmatpush1.msra.mxu0 0.0
    %1238 = vmatprep.subr.mxu0 0.0
    %1239 = vmatpush1.msra.mxu0 0.0
    %1240 = vmatprep.subr.mxu0 0.0
    %1241 = vmatpush1.msra.mxu0 0.0
    %1242 = vmatprep.subr.mxu0 0.0
    %1243 = vmatpush1.msra.mxu0 0.0
    %1244 = vmatprep.subr.mxu0 0.0
    %1245 = vmatpush1.msra.mxu0 0.0
    %1246 = vmatprep.subr.mxu0 0.0
    %1247 = vmatpush1.msra.mxu0 0.0
    %1248 = vmatprep.subr.mxu0 0.0
    %1249 = vmatpush1.msra.mxu0 0.0
    %1250 = vmatprep.subr.mxu0 0.0
    %1251 = vmatpush1.msra.mxu0 0.0
    %1252 = vmatprep.subr.mxu0 0.0
    %1253 = vmatpush1.msra.mxu0 0.0
    %1254 = vmatprep.subr.mxu0 0.0
    %1255 = vmatpush1.msra.mxu0 0.0
    %1256 = vmatprep.subr.mxu0 0.0
    %1257 = vmatpush1.msra.mxu0 0.0
    %1258 = vmatprep.subr.mxu0 0.0
    %1259 = vmatpush1.msra.mxu0 0.0
    %1260 = vmatprep.subr.mxu0 0.0
    %1261 = vmatpush1.msra.mxu0 0.0
    %1262 = vmatprep.subr.mxu0 0.0
    %1263 = vmatpush1.msra.mxu0 0.0
    %1264 = vmatprep.subr.mxu0 0.0
    %1265 = vmatpush1.msra.mxu0 0.0
    %1266 = vmatprep.subr.mxu0 0.0
    %1267 = vmatpush1.msra.mxu0 0.0
    %1268 = vmatprep.subr.mxu0 0.0
    %1269 = vmatpush1.msra.mxu0 0.0
    %1270 = vmatprep.subr.mxu0 0.0
    %1271 = vmatpush1.msra.mxu0 0.0
    %1272 = vmatprep.subr.mxu0 0.0
    %1273 = vmatpush1.msra.mxu0 0.0
    %1274 = vmatprep.subr.mxu0 0.0
    %1275 = vmatpush1.msra.mxu0 0.0
    %1276 = vmatprep.subr.mxu0 0.0
    %1277 = vmatpush1.msra.mxu0 0.0
    %1278 = vmatprep.subr.mxu0 0.0
    %1279 = vmatpush1.msra.mxu0 0.0
    %1280 = vmatprep.mubr.f32.mxu0 0.0
    %1281 = vmatmul.mubr.f32.gmra.mrb[0].mxu0 %v1211
    %v1282 = vpop.f32.mrb[0].mxu0
    %v1283 = vadd.f32 0.0, %v1282
    %v1284 = vpop.f32.mrb[0].mxu0
    %1285 = vmatprep.mubr.f32.mxu0 0.0
    %1286 = vmatmul.mubr.f32.gmra.mrb[0].mxu0 %v1214
    %v1287 = vpop.f32.mrb[0].mxu0
    %v1288 = vadd.f32 0.0, %v1287
    %v1289 = vpop.f32.mrb[0].mxu0
    %1290 = vdwg.mxu0
    %v1291 = vadd.f32 %v1121, %v1283
    %v1292 = vadd.f32 %v1122, %v1288
    %v1293 = vmul.f32 %v1291, 0.5
    %v1294 = vmul.f32 %v1292, 0.5
    %v1295 = vmul.f32 %v1291, 0.044715
    %v1296 = vmul.f32 %v1292, 0.044715
    %v1297 = vmul.f32 %v1295, %v1291
    %v1298 = vmul.f32 %v1296, %v1292
    %v1299 = vmul.f32 %v1297, %v1291
    %v1300 = vmul.f32 %v1298, %v1292
    %v1301 = vadd.f32 %v1291, %v1299
    %v1302 = vadd.f32 %v1292, %v1300
    %v1303 = vmul.f32 %v1301, 0.7978846
    %v1304 = vmul.f32 %v1302, 0.7978846
    %v1305 = vtanh.pop %v1303
    %v1306 = vtanh.pop %v1304
    %v1307 = vadd.f32 %v1305, 1.0
    %v1308 = vadd.f32 %v1306, 1.0
    %v1309 = vmul.f32 %v1293, %v1307
    %v1310 = vmul.f32 %v1294, %v1308
    %v1311 = vld [vmem:[%s15 + $0x2] sm:$0x1]
    %v1312 = vld [vmem:[%s15 + $0x3] sm:$0x1]
    %vm1313 = vcmask 261120
    %v1314 = vsel %vm1313, %v1309, 0.0
    %1315 = vadd.xlane.f32.xlu0 %v1314
    %v1316 = vpop.xlane.xlu0 %1315
    %v1317 = vsel %vm1313, %v1310, 0.0
    %1318 = vadd.xlane.f32.xlu0 %v1317
    %v1319 = vpop.xlane.xlu0 %1318
    %v1320 = vrcp.pop 32.0
    %v1321 = vmul.f32 %v1316, %v1320
    %v1322 = vmul.f32 %v1319, %v1320
    %v1323 = vsub.f32 %v1309, %v1321
    %v1324 = vsub.f32 %v1310, %v1322
    %v1325 = vmul.f32 %v1323, %v1323
    %v1326 = vmul.f32 %v1324, %v1324
    %v1327 = vsel %vm1313, %v1325, 0.0
    %1328 = vadd.xlane.f32.xlu0 %v1327
    %v1329 = vpop.xlane.xlu0 %1328
    %v1330 = vsel %vm1313, %v1326, 0.0
    %1331 = vadd.xlane.f32.xlu0 %v1330
    %v1332 = vpop.xlane.xlu0 %1331
    %v1333 = vmul.f32 %v1329, %v1320
    %v1334 = vmul.f32 %v1332, %v1320
    %v1335 = vadd.f32 %v1333, 1e-05
    %v1336 = vadd.f32 %v1334, 1e-05
    %v1337 = vrsqrt.pop %v1335
    %v1338 = vrsqrt.pop %v1336
    %v1339 = vmul.f32 %v1323, %v1337
    %v1340 = vmul.f32 %v1324, %v1338
    %v1341 = vlaneseq
    %v1342 = vshrl.u32 %v1341, 7
    %v1343 = vsub.s32 0, %v1342
    %v1344 = vrot.slane %v1311, %v1343
    %v1345 = vmul.f32 %v1339, %v1344
    %v1346 = vmul.f32 %v1340, %v1344
    %v1347 = vlaneseq
    %v1348 = vshrl.u32 %v1347, 7
    %v1349 = vsub.s32 0, %v1348
    %v1350 = vrot.slane %v1312, %v1349
    %v1351 = vadd.f32 %v1345, %v1350
    %v1352 = vadd.f32 %v1346, %v1350
    %v1353 = vld [vmem:[%s6] sm:$0xff]
    %v1354 = vld [vmem:[%s6 + $0x8] sm:$0xff]
    %v1355 = vld [vmem:[%s6 + $0x10] sm:$0xff]
    %v1356 = vld [vmem:[%s6 + $0x18] sm:$0xff]
    %v1357 = vld [vmem:[%s15 + $0x4] sm:$0x1]
    %v1358 = vlaneseq
    %v1359 = vshrl.u32 %v1358, 7
    %v1360 = vsub.s32 0, %v1359
    %v1361 = vrot.slane %v1357, %v1360
    %v1363 = vsel %vm1313, %v1351, 0
    %v1366 = vsel %vm1313, %v1352, 0
    %1368 = vmatprep.subr.mxu0 0.0
    %1369 = vmatpush1.msra.mxu0 %v1353
    %1370 = vmatprep.subr.mxu0 0.0
    %1371 = vmatpush1.msra.mxu0 %v1354
    %1372 = vmatprep.subr.mxu0 0.0
    %1373 = vmatpush1.msra.mxu0 %v1355
    %1374 = vmatprep.subr.mxu0 0.0
    %1375 = vmatpush1.msra.mxu0 %v1356
    %1376 = vmatprep.subr.mxu0 0.0
    %1377 = vmatpush1.msra.mxu0 0.0
    %1378 = vmatprep.subr.mxu0 0.0
    %1379 = vmatpush1.msra.mxu0 0.0
    %1380 = vmatprep.subr.mxu0 0.0
    %1381 = vmatpush1.msra.mxu0 0.0
    %1382 = vmatprep.subr.mxu0 0.0
    %1383 = vmatpush1.msra.mxu0 0.0
    %1384 = vmatprep.subr.mxu0 0.0
    %1385 = vmatpush1.msra.mxu0 0.0
    %1386 = vmatprep.subr.mxu0 0.0
    %1387 = vmatpush1.msra.mxu0 0.0
    %1388 = vmatprep.subr.mxu0 0.0
    %1389 = vmatpush1.msra.mxu0 0.0
    %1390 = vmatprep.subr.mxu0 0.0
    %1391 = vmatpush1.msra.mxu0 0.0
    %1392 = vmatprep.subr.mxu0 0.0
    %1393 = vmatpush1.msra.mxu0 0.0
    %1394 = vmatprep.subr.mxu0 0.0
    %1395 = vmatpush1.msra.mxu0 0.0
    %1396 = vmatprep.subr.mxu0 0.0
    %1397 = vmatpush1.msra.mxu0 0.0
    %1398 = vmatprep.subr.mxu0 0.0
    %1399 = vmatpush1.msra.mxu0 0.0
    %1400 = vmatprep.subr.mxu0 0.0
    %1401 = vmatpush1.msra.mxu0 0.0
    %1402 = vmatprep.subr.mxu0 0.0
    %1403 = vmatpush1.msra.mxu0 0.0
    %1404 = vmatprep.subr.mxu0 0.0
    %1405 = vmatpush1.msra.mxu0 0.0
    %1406 = vmatprep.subr.mxu0 0.0
    %1407 = vmatpush1.msra.mxu0 0.0
    %1408 = vmatprep.subr.mxu0 0.0
    %1409 = vmatpush1.msra.mxu0 0.0
    %1410 = vmatprep.subr.mxu0 0.0
    %1411 = vmatpush1.msra.mxu0 0.0
    %1412 = vmatprep.subr.mxu0 0.0
    %1413 = vmatpush1.msra.mxu0 0.0
    %1414 = vmatprep.subr.mxu0 0.0
    %1415 = vmatpush1.msra.mxu0 0.0
    %1416 = vmatprep.subr.mxu0 0.0
    %1417 = vmatpush1.msra.mxu0 0.0
    %1418 = vmatprep.subr.mxu0 0.0
    %1419 = vmatpush1.msra.mxu0 0.0
    %1420 = vmatprep.subr.mxu0 0.0
    %1421 = vmatpush1.msra.mxu0 0.0
    %1422 = vmatprep.subr.mxu0 0.0
    %1423 = vmatpush1.msra.mxu0 0.0
    %1424 = vmatprep.subr.mxu0 0.0
    %1425 = vmatpush1.msra.mxu0 0.0
    %1426 = vmatprep.subr.mxu0 0.0
    %1427 = vmatpush1.msra.mxu0 0.0
    %1428 = vmatprep.subr.mxu0 0.0
    %1429 = vmatpush1.msra.mxu0 0.0
    %1430 = vmatprep.subr.mxu0 0.0
    %1431 = vmatpush1.msra.mxu0 0.0
    %1432 = vmatprep.mubr.f32.mxu0 0.0
    %1433 = vmatmul.mubr.f32.gmra.mrb[0].mxu0 %v1363
    %v1434 = vpop.f32.mrb[0].mxu0
    %v1435 = vadd.f32 %v1361, %v1434
    %v1436 = vpop.f32.mrb[0].mxu0
    %1437 = vmatprep.mubr.f32.mxu0 0.0
    %1438 = vmatmul.mubr.f32.gmra.mrb[0].mxu0 %v1366
    %v1439 = vpop.f32.mrb[0].mxu0
    %v1440 = vadd.f32 %v1361, %v1439
    %v1441 = vpop.f32.mrb[0].mxu0
    %1442 = vdwg.mxu0
    %v1443 = vld [vmem:[%s7] sm:$0xff]
    %v1444 = vld [vmem:[%s7 + $0x8] sm:$0xff]
    %v1446 = vsel %vm790, %v1443, 0
    %v1449 = vsel %vm790, %v1444, 0
    %1451 = vmatprep.subr.mxu0 0.0
    %1452 = vmatpush1.msra.mxu0 %v1435
    %1453 = vmatprep.subr.mxu0 0.0
    %1454 = vmatpush1.msra.mxu0 %v1440
    %1455 = vmatprep.subr.mxu0 0.0
    %1456 = vmatpush1.msra.mxu0 0.0
    %1457 = vmatprep.subr.mxu0 0.0
    %1458 = vmatpush1.msra.mxu0 0.0
    %1459 = vmatprep.subr.mxu0 0.0
    %1460 = vmatpush1.msra.mxu0 0.0
    %1461 = vmatprep.subr.mxu0 0.0
    %1462 = vmatpush1.msra.mxu0 0.0
    %1463 = vmatprep.subr.mxu0 0.0
    %1464 = vmatpush1.msra.mxu0 0.0
    %1465 = vmatprep.subr.mxu0 0.0
    %1466 = vmatpush1.msra.mxu0 0.0
    %1467 = vmatprep.subr.mxu0 0.0
    %1468 = vmatpush1.msra.mxu0 0.0
    %1469 = vmatprep.subr.mxu0 0.0
    %1470 = vmatpush1.msra.mxu0 0.0
    %1471 = vmatprep.subr.mxu0 0.0
    %1472 = vmatpush1.msra.mxu0 0.0
    %1473 = vmatprep.subr.mxu0 0.0
    %1474 = vmatpush1.msra.mxu0 0.0
    %1475 = vmatprep.subr.mxu0 0.0
    %1476 = vmatpush1.msra.mxu0 0.0
    %1477 = vmatprep.subr.mxu0 0.0
    %1478 = vmatpush1.msra.mxu0 0.0
    %1479 = vmatprep.subr.mxu0 0.0
    %1480 = vmatpush1.msra.mxu0 0.0
    %1481 = vmatprep.subr.mxu0 0.0
    %1482 = vmatpush1.msra.mxu0 0.0
    %1483 = vmatprep.subr.mxu0 0.0
    %1484 = vmatpush1.msra.mxu0 0.0
    %1485 = vmatprep.subr.mxu0 0.0
    %1486 = vmatpush1.msra.mxu0 0.0
    %1487 = vmatprep.subr.mxu0 0.0
    %1488 = vmatpush1.msra.mxu0 0.0
    %1489 = vmatprep.subr.mxu0 0.0
    %1490 = vmatpush1.msra.mxu0 0.0
    %1491 = vmatprep.subr.mxu0 0.0
    %1492 = vmatpush1.msra.mxu0 0.0
    %1493 = vmatprep.subr.mxu0 0.0
    %1494 = vmatpush1.msra.mxu0 0.0
    %1495 = vmatprep.subr.mxu0 0.0
    %1496 = vmatpush1.msra.mxu0 0.0
    %1497 = vmatprep.subr.mxu0 0.0
    %1498 = vmatpush1.msra.mxu0 0.0
    %1499 = vmatprep.subr.mxu0 0.0
    %1500 = vmatpush1.msra.mxu0 0.0
    %1501 = vmatprep.subr.mxu0 0.0
    %1502 = vmatpush1.msra.mxu0 0.0
    %1503 = vmatprep.subr.mxu0 0.0
    %1504 = vmatpush1.msra.mxu0 0.0
    %1505 = vmatprep.subr.mxu0 0.0
    %1506 = vmatpush1.msra.mxu0 0.0
    %1507 = vmatprep.subr.mxu0 0.0
    %1508 = vmatpush1.msra.mxu0 0.0
    %1509 = vmatprep.subr.mxu0 0.0
    %1510 = vmatpush1.msra.mxu0 0.0
    %1511 = vmatprep.subr.mxu0 0.0
    %1512 = vmatpush1.msra.mxu0 0.0
    %1513 = vmatprep.subr.mxu0 0.0
    %1514 = vmatpush1.msra.mxu0 0.0
    %1515 = vmatprep.mubr.f32.mxu0 0.0
    %1516 = vmatmul.mubr.f32.gmra.mrb[0].mxu0 %v1446
    %v1517 = vpop.f32.mrb[0].mxu0
    %v1518 = vadd.f32 0.0, %v1517
    %v1519 = vpop.f32.mrb[0].mxu0
    %1520 = vmatprep.mubr.f32.mxu0 0.0
    %1521 = vmatmul.mubr.f32.gmra.mrb[0].mxu0 %v1449
    %v1522 = vpop.f32.mrb[0].mxu0
    %v1523 = vadd.f32 0.0, %v1522
    %v1524 = vpop.f32.mrb[0].mxu0
    %1525 = vdwg.mxu0
    %v1526 = vld [vmem:[%s8] sm:$0xff]
    %v1527 = vld [vmem:[%s8 + $0x8] sm:$0xff]
    %v1528 = vld [vmem:[%s8 + $0x10] sm:$0xff]
    %v1529 = vld [vmem:[%s8 + $0x18] sm:$0xff]
    %s1530 = scalar_lea.vmem %s7, 16
    %v1531 = vld [vmem:[%s1530] sm:$0xff]
    %v1532 = vld [vmem:[%s1530 + $0x8] sm:$0xff]
    %v1534 = vsel %vm790, %v1531, 0
    %v1537 = vsel %vm790, %v1532, 0
    %1539 = vmatprep.subr.mxu0 0.0
    %1540 = vmatpush1.msra.mxu0 %v1435
    %1541 = vmatprep.subr.mxu0 0.0
    %1542 = vmatpush1.msra.mxu0 %v1440
    %1543 = vmatprep.subr.mxu0 0.0
    %1544 = vmatpush1.msra.mxu0 0.0
    %1545 = vmatprep.subr.mxu0 0.0
    %1546 = vmatpush1.msra.mxu0 0.0
    %1547 = vmatprep.subr.mxu0 0.0
    %1548 = vmatpush1.msra.mxu0 0.0
    %1549 = vmatprep.subr.mxu0 0.0
    %1550 = vmatpush1.msra.mxu0 0.0
    %1551 = vmatprep.subr.mxu0 0.0
    %1552 = vmatpush1.msra.mxu0 0.0
    %1553 = vmatprep.subr.mxu0 0.0
    %1554 = vmatpush1.msra.mxu0 0.0
    %1555 = vmatprep.subr.mxu0 0.0
    %1556 = vmatpush1.msra.mxu0 0.0
    %1557 = vmatprep.subr.mxu0 0.0
    %1558 = vmatpush1.msra.mxu0 0.0
    %1559 = vmatprep.subr.mxu0 0.0
    %1560 = vmatpush1.msra.mxu0 0.0
    %1561 = vmatprep.subr.mxu0 0.0
    %1562 = vmatpush1.msra.mxu0 0.0
    %1563 = vmatprep.subr.mxu0 0.0
    %1564 = vmatpush1.msra.mxu0 0.0
    %1565 = vmatprep.subr.mxu0 0.0
    %1566 = vmatpush1.msra.mxu0 0.0
    %1567 = vmatprep.subr.mxu0 0.0
    %1568 = vmatpush1.msra.mxu0 0.0
    %1569 = vmatprep.subr.mxu0 0.0
    %1570 = vmatpush1.msra.mxu0 0.0
    %1571 = vmatprep.subr.mxu0 0.0
    %1572 = vmatpush1.msra.mxu0 0.0
    %1573 = vmatprep.subr.mxu0 0.0
    %1574 = vmatpush1.msra.mxu0 0.0
    %1575 = vmatprep.subr.mxu0 0.0
    %1576 = vmatpush1.msra.mxu0 0.0
    %1577 = vmatprep.subr.mxu0 0.0
    %1578 = vmatpush1.msra.mxu0 0.0
    %1579 = vmatprep.subr.mxu0 0.0
    %1580 = vmatpush1.msra.mxu0 0.0
    %1581 = vmatprep.subr.mxu0 0.0
    %1582 = vmatpush1.msra.mxu0 0.0
    %1583 = vmatprep.subr.mxu0 0.0
    %1584 = vmatpush1.msra.mxu0 0.0
    %1585 = vmatprep.subr.mxu0 0.0
    %1586 = vmatpush1.msra.mxu0 0.0
    %1587 = vmatprep.subr.mxu0 0.0
    %1588 = vmatpush1.msra.mxu0 0.0
    %1589 = vmatprep.subr.mxu0 0.0
    %1590 = vmatpush1.msra.mxu0 0.0
    %1591 = vmatprep.subr.mxu0 0.0
    %1592 = vmatpush1.msra.mxu0 0.0
    %1593 = vmatprep.subr.mxu0 0.0
    %1594 = vmatpush1.msra.mxu0 0.0
    %1595 = vmatprep.subr.mxu0 0.0
    %1596 = vmatpush1.msra.mxu0 0.0
    %1597 = vmatprep.subr.mxu0 0.0
    %1598 = vmatpush1.msra.mxu0 0.0
    %1599 = vmatprep.subr.mxu0 0.0
    %1600 = vmatpush1.msra.mxu0 0.0
    %1601 = vmatprep.subr.mxu0 0.0
    %1602 = vmatpush1.msra.mxu0 0.0
    %1603 = vmatprep.mubr.f32.mxu0 0.0
    %1604 = vmatmul.mubr.f32.gmra.mrb[0].mxu0 %v1534
    %v1605 = vpop.f32.mrb[0].mxu0
    %v1606 = vadd.f32 0.0, %v1605
    %v1607 = vpop.f32.mrb[0].mxu0
    %1608 = vmatprep.mubr.f32.mxu0 0.0
    %1609 = vmatmul.mubr.f32.gmra.mrb[0].mxu0 %v1537
    %v1610 = vpop.f32.mrb[0].mxu0
    %v1611 = vadd.f32 0.0, %v1610
    %v1612 = vpop.f32.mrb[0].mxu0
    %1613 = vdwg.mxu0
    %s1614 = scalar_lea.vmem %s8, 32
    %v1615 = vld [vmem:[%s1614] sm:$0xff]
    %v1616 = vld [vmem:[%s1614 + $0x8] sm:$0xff]
    %v1617 = vld [vmem:[%s1614 + $0x10] sm:$0xff]
    %v1618 = vld [vmem:[%s1614 + $0x18] sm:$0xff]
    %v1620 = vsel %vm1313, %v1606, 0
    %v1623 = vsel %vm1313, %v1611, 0
    %1625 = vmatprep.subr.mxu0 0.0
    %1626 = vmatpush1.msra.mxu0 %v1615
    %1627 = vmatprep.subr.mxu0 0.0
    %1628 = vmatpush1.msra.mxu0 %v1616
    %1629 = vmatprep.subr.mxu0 0.0
    %1630 = vmatpush1.msra.mxu0 %v1617
    %1631 = vmatprep.subr.mxu0 0.0
    %1632 = vmatpush1.msra.mxu0 %v1618
    %1633 = vmatprep.subr.mxu0 0.0
    %1634 = vmatpush1.msra.mxu0 0.0
    %1635 = vmatprep.subr.mxu0 0.0
    %1636 = vmatpush1.msra.mxu0 0.0
    %1637 = vmatprep.subr.mxu0 0.0
    %1638 = vmatpush1.msra.mxu0 0.0
    %1639 = vmatprep.subr.mxu0 0.0
    %1640 = vmatpush1.msra.mxu0 0.0
    %1641 = vmatprep.subr.mxu0 0.0
    %1642 = vmatpush1.msra.mxu0 0.0
    %1643 = vmatprep.subr.mxu0 0.0
    %1644 = vmatpush1.msra.mxu0 0.0
    %1645 = vmatprep.subr.mxu0 0.0
    %1646 = vmatpush1.msra.mxu0 0.0
    %1647 = vmatprep.subr.mxu0 0.0
    %1648 = vmatpush1.msra.mxu0 0.0
    %1649 = vmatprep.subr.mxu0 0.0
    %1650 = vmatpush1.msra.mxu0 0.0
    %1651 = vmatprep.subr.mxu0 0.0
    %1652 = vmatpush1.msra.mxu0 0.0
    %1653 = vmatprep.subr.mxu0 0.0
    %1654 = vmatpush1.msra.mxu0 0.0
    %1655 = vmatprep.subr.mxu0 0.0
    %1656 = vmatpush1.msra.mxu0 0.0
    %1657 = vmatprep.subr.mxu0 0.0
    %1658 = vmatpush1.msra.mxu0 0.0
    %1659 = vmatprep.subr.mxu0 0.0
    %1660 = vmatpush1.msra.mxu0 0.0
    %1661 = vmatprep.subr.mxu0 0.0
    %1662 = vmatpush1.msra.mxu0 0.0
    %1663 = vmatprep.subr.mxu0 0.0
    %1664 = vmatpush1.msra.mxu0 0.0
    %1665 = vmatprep.subr.mxu0 0.0
    %1666 = vmatpush1.msra.mxu0 0.0
    %1667 = vmatprep.subr.mxu0 0.0
    %1668 = vmatpush1.msra.mxu0 0.0
    %1669 = vmatprep.subr.mxu0 0.0
    %1670 = vmatpush1.msra.mxu0 0.0
    %1671 = vmatprep.subr.mxu0 0.0
    %1672 = vmatpush1.msra.mxu0 0.0
    %1673 = vmatprep.subr.mxu0 0.0
    %1674 = vmatpush1.msra.mxu0 0.0
    %1675 = vmatprep.subr.mxu0 0.0
    %1676 = vmatpush1.msra.mxu0 0.0
    %1677 = vmatprep.subr.mxu0 0.0
    %1678 = vmatpush1.msra.mxu0 0.0
    %1679 = vmatprep.subr.mxu0 0.0
    %1680 = vmatpush1.msra.mxu0 0.0
    %1681 = vmatprep.subr.mxu0 0.0
    %1682 = vmatpush1.msra.mxu0 0.0
    %1683 = vmatprep.subr.mxu0 0.0
    %1684 = vmatpush1.msra.mxu0 0.0
    %1685 = vmatprep.subr.mxu0 0.0
    %1686 = vmatpush1.msra.mxu0 0.0
    %1687 = vmatprep.subr.mxu0 0.0
    %1688 = vmatpush1.msra.mxu0 0.0
    %1689 = vmatprep.mubr.f32.mxu0 0.0
    %1690 = vmatmul.mubr.f32.gmra.mrb[0].mxu0 %v1620
    %v1691 = vpop.f32.mrb[0].mxu0
    %v1692 = vadd.f32 0.0, %v1691
    %v1693 = vpop.f32.mrb[0].mxu0
    %1694 = vmatprep.mubr.f32.mxu0 0.0
    %1695 = vmatmul.mubr.f32.gmra.mrb[0].mxu0 %v1623
    %v1696 = vpop.f32.mrb[0].mxu0
    %v1697 = vadd.f32 0.0, %v1696
    %v1698 = vpop.f32.mrb[0].mxu0
    %1699 = vdwg.mxu0
    %v1701 = vsel %vm1313, %v1518, 0
    %v1704 = vsel %vm1313, %v1523, 0
    %1706 = vmatprep.subr.mxu0 0.0
    %1707 = vmatpush1.msra.mxu0 %v1526
    %1708 = vmatprep.subr.mxu0 0.0
    %1709 = vmatpush1.msra.mxu0 %v1527
    %1710 = vmatprep.subr.mxu0 0.0
    %1711 = vmatpush1.msra.mxu0 %v1528
    %1712 = vmatprep.subr.mxu0 0.0
    %1713 = vmatpush1.msra.mxu0 %v1529
    %1714 = vmatprep.subr.mxu0 0.0
    %1715 = vmatpush1.msra.mxu0 0.0
    %1716 = vmatprep.subr.mxu0 0.0
    %1717 = vmatpush1.msra.mxu0 0.0
    %1718 = vmatprep.subr.mxu0 0.0
    %1719 = vmatpush1.msra.mxu0 0.0
    %1720 = vmatprep.subr.mxu0 0.0
    %1721 = vmatpush1.msra.mxu0 0.0
    %1722 = vmatprep.subr.mxu0 0.0
    %1723 = vmatpush1.msra.mxu0 0.0
    %1724 = vmatprep.subr.mxu0 0.0
    %1725 = vmatpush1.msra.mxu0 0.0
    %1726 = vmatprep.subr.mxu0 0.0
    %1727 = vmatpush1.msra.mxu0 0.0
    %1728 = vmatprep.subr.mxu0 0.0
    %1729 = vmatpush1.msra.mxu0 0.0
    %1730 = vmatprep.subr.mxu0 0.0
    %1731 = vmatpush1.msra.mxu0 0.0
    %1732 = vmatprep.subr.mxu0 0.0
    %1733 = vmatpush1.msra.mxu0 0.0
    %1734 = vmatprep.subr.mxu0 0.0
    %1735 = vmatpush1.msra.mxu0 0.0
    %1736 = vmatprep.subr.mxu0 0.0
    %1737 = vmatpush1.msra.mxu0 0.0
    %1738 = vmatprep.subr.mxu0 0.0
    %1739 = vmatpush1.msra.mxu0 0.0
    %1740 = vmatprep.subr.mxu0 0.0
    %1741 = vmatpush1.msra.mxu0 0.0
    %1742 = vmatprep.subr.mxu0 0.0
    %1743 = vmatpush1.msra.mxu0 0.0
    %1744 = vmatprep.subr.mxu0 0.0
    %1745 = vmatpush1.msra.mxu0 0.0
    %1746 = vmatprep.subr.mxu0 0.0
    %1747 = vmatpush1.msra.mxu0 0.0
    %1748 = vmatprep.subr.mxu0 0.0
    %1749 = vmatpush1.msra.mxu0 0.0
    %1750 = vmatprep.subr.mxu0 0.0
    %1751 = vmatpush1.msra.mxu0 0.0
    %1752 = vmatprep.subr.mxu0 0.0
    %1753 = vmatpush1.msra.mxu0 0.0
    %1754 = vmatprep.subr.mxu0 0.0
    %1755 = vmatpush1.msra.mxu0 0.0
    %1756 = vmatprep.subr.mxu0 0.0
    %1757 = vmatpush1.msra.mxu0 0.0
    %1758 = vmatprep.subr.mxu0 0.0
    %1759 = vmatpush1.msra.mxu0 0.0
    %1760 = vmatprep.subr.mxu0 0.0
    %1761 = vmatpush1.msra.mxu0 0.0
    %1762 = vmatprep.subr.mxu0 0.0
    %1763 = vmatpush1.msra.mxu0 0.0
    %1764 = vmatprep.subr.mxu0 0.0
    %1765 = vmatpush1.msra.mxu0 0.0
    %1766 = vmatprep.subr.mxu0 0.0
    %1767 = vmatpush1.msra.mxu0 0.0
    %1768 = vmatprep.subr.mxu0 0.0
    %1769 = vmatpush1.msra.mxu0 0.0
    %1770 = vmatprep.mubr.f32.mxu0 0.0
    %1771 = vmatmul.mubr.f32.gmra.mrb[0].mxu0 %v1701
    %v1772 = vpop.f32.mrb[0].mxu0
    %v1773 = vadd.f32 %v1692, %v1772
    %v1774 = vpop.f32.mrb[0].mxu0
    %1775 = vmatprep.mubr.f32.mxu0 0.0
    %1776 = vmatmul.mubr.f32.gmra.mrb[0].mxu0 %v1704
    %v1777 = vpop.f32.mrb[0].mxu0
    %v1778 = vadd.f32 %v1697, %v1777
    %v1779 = vpop.f32.mrb[0].mxu0
    %1780 = vdwg.mxu0
    %s1781 = scalar_lea.vmem %s7, 32
    %v1782 = vld [vmem:[%s1781] sm:$0xff]
    %v1783 = vld [vmem:[%s1781 + $0x8] sm:$0xff]
    %v1785 = vsel %vm790, %v1782, 0
    %v1788 = vsel %vm790, %v1783, 0
    %1790 = vmatprep.subr.mxu0 0.0
    %1791 = vmatpush1.msra.mxu0 %v1435
    %1792 = vmatprep.subr.mxu0 0.0
    %1793 = vmatpush1.msra.mxu0 %v1440
    %1794 = vmatprep.subr.mxu0 0.0
    %1795 = vmatpush1.msra.mxu0 0.0
    %1796 = vmatprep.subr.mxu0 0.0
    %1797 = vmatpush1.msra.mxu0 0.0
    %1798 = vmatprep.subr.mxu0 0.0
    %1799 = vmatpush1.msra.mxu0 0.0
    %1800 = vmatprep.subr.mxu0 0.0
    %1801 = vmatpush1.msra.mxu0 0.0
    %1802 = vmatprep.subr.mxu0 0.0
    %1803 = vmatpush1.msra.mxu0 0.0
    %1804 = vmatprep.subr.mxu0 0.0
    %1805 = vmatpush1.msra.mxu0 0.0
    %1806 = vmatprep.subr.mxu0 0.0
    %1807 = vmatpush1.msra.mxu0 0.0
    %1808 = vmatprep.subr.mxu0 0.0
    %1809 = vmatpush1.msra.mxu0 0.0
    %1810 = vmatprep.subr.mxu0 0.0
    %1811 = vmatpush1.msra.mxu0 0.0
    %1812 = vmatprep.subr.mxu0 0.0
    %1813 = vmatpush1.msra.mxu0 0.0
    %1814 = vmatprep.subr.mxu0 0.0
    %1815 = vmatpush1.msra.mxu0 0.0
    %1816 = vmatprep.subr.mxu0 0.0
    %1817 = vmatpush1.msra.mxu0 0.0
    %1818 = vmatprep.subr.mxu0 0.0
    %1819 = vmatpush1.msra.mxu0 0.0
    %1820 = vmatprep.subr.mxu0 0.0
    %1821 = vmatpush1.msra.mxu0 0.0
    %1822 = vmatprep.subr.mxu0 0.0
    %1823 = vmatpush1.msra.mxu0 0.0
    %1824 = vmatprep.subr.mxu0 0.0
    %1825 = vmatpush1.msra.mxu0 0.0
    %1826 = vmatprep.subr.mxu0 0.0
    %1827 = vmatpush1.msra.mxu0 0.0
    %1828 = vmatprep.subr.mxu0 0.0
    %1829 = vmatpush1.msra.mxu0 0.0
    %1830 = vmatprep.subr.mxu0 0.0
    %1831 = vmatpush1.msra.mxu0 0.0
    %1832 = vmatprep.subr.mxu0 0.0
    %1833 = vmatpush1.msra.mxu0 0.0
    %1834 = vmatprep.subr.mxu0 0.0
    %1835 = vmatpush1.msra.mxu0 0.0
    %1836 = vmatprep.subr.mxu0 0.0
    %1837 = vmatpush1.msra.mxu0 0.0
    %1838 = vmatprep.subr.mxu0 0.0
    %1839 = vmatpush1.msra.mxu0 0.0
    %1840 = vmatprep.subr.mxu0 0.0
    %1841 = vmatpush1.msra.mxu0 0.0
    %1842 = vmatprep.subr.mxu0 0.0
    %1843 = vmatpush1.msra.mxu0 0.0
    %1844 = vmatprep.subr.mxu0 0.0
    %1845 = vmatpush1.msra.mxu0 0.0
    %1846 = vmatprep.subr.mxu0 0.0
    %1847 = vmatpush1.msra.mxu0 0.0
    %1848 = vmatprep.subr.mxu0 0.0
    %1849 = vmatpush1.msra.mxu0 0.0
    %1850 = vmatprep.subr.mxu0 0.0
    %1851 = vmatpush1.msra.mxu0 0.0
    %1852 = vmatprep.subr.mxu0 0.0
    %1853 = vmatpush1.msra.mxu0 0.0
    %1854 = vmatprep.mubr.f32.mxu0 0.0
    %1855 = vmatmul.mubr.f32.gmra.mrb[0].mxu0 %v1785
    %v1856 = vpop.f32.mrb[0].mxu0
    %v1857 = vadd.f32 0.0, %v1856
    %v1858 = vpop.f32.mrb[0].mxu0
    %1859 = vmatprep.mubr.f32.mxu0 0.0
    %1860 = vmatmul.mubr.f32.gmra.mrb[0].mxu0 %v1788
    %v1861 = vpop.f32.mrb[0].mxu0
    %v1862 = vadd.f32 0.0, %v1861
    %v1863 = vpop.f32.mrb[0].mxu0
    %1864 = vdwg.mxu0
    %s1865 = scalar_lea.vmem %s8, 64
    %v1866 = vld [vmem:[%s1865] sm:$0xff]
    %v1867 = vld [vmem:[%s1865 + $0x8] sm:$0xff]
    %v1868 = vld [vmem:[%s1865 + $0x10] sm:$0xff]
    %v1869 = vld [vmem:[%s1865 + $0x18] sm:$0xff]
    %v1871 = vsel %vm1313, %v1857, 0
    %v1874 = vsel %vm1313, %v1862, 0
    %1876 = vmatprep.subr.mxu0 0.0
    %1877 = vmatpush1.msra.mxu0 %v1866
    %1878 = vmatprep.subr.mxu0 0.0
    %1879 = vmatpush1.msra.mxu0 %v1867
    %1880 = vmatprep.subr.mxu0 0.0
    %1881 = vmatpush1.msra.mxu0 %v1868
    %1882 = vmatprep.subr.mxu0 0.0
    %1883 = vmatpush1.msra.mxu0 %v1869
    %1884 = vmatprep.subr.mxu0 0.0
    %1885 = vmatpush1.msra.mxu0 0.0
    %1886 = vmatprep.subr.mxu0 0.0
    %1887 = vmatpush1.msra.mxu0 0.0
    %1888 = vmatprep.subr.mxu0 0.0
    %1889 = vmatpush1.msra.mxu0 0.0
    %1890 = vmatprep.subr.mxu0 0.0
    %1891 = vmatpush1.msra.mxu0 0.0
    %1892 = vmatprep.subr.mxu0 0.0
    %1893 = vmatpush1.msra.mxu0 0.0
    %1894 = vmatprep.subr.mxu0 0.0
    %1895 = vmatpush1.msra.mxu0 0.0
    %1896 = vmatprep.subr.mxu0 0.0
    %1897 = vmatpush1.msra.mxu0 0.0
    %1898 = vmatprep.subr.mxu0 0.0
    %1899 = vmatpush1.msra.mxu0 0.0
    %1900 = vmatprep.subr.mxu0 0.0
    %1901 = vmatpush1.msra.mxu0 0.0
    %1902 = vmatprep.subr.mxu0 0.0
    %1903 = vmatpush1.msra.mxu0 0.0
    %1904 = vmatprep.subr.mxu0 0.0
    %1905 = vmatpush1.msra.mxu0 0.0
    %1906 = vmatprep.subr.mxu0 0.0
    %1907 = vmatpush1.msra.mxu0 0.0
    %1908 = vmatprep.subr.mxu0 0.0
    %1909 = vmatpush1.msra.mxu0 0.0
    %1910 = vmatprep.subr.mxu0 0.0
    %1911 = vmatpush1.msra.mxu0 0.0
    %1912 = vmatprep.subr.mxu0 0.0
    %1913 = vmatpush1.msra.mxu0 0.0
    %1914 = vmatprep.subr.mxu0 0.0
    %1915 = vmatpush1.msra.mxu0 0.0
    %1916 = vmatprep.subr.mxu0 0.0
    %1917 = vmatpush1.msra.mxu0 0.0
    %1918 = vmatprep.subr.mxu0 0.0
    %1919 = vmatpush1.msra.mxu0 0.0
    %1920 = vmatprep.subr.mxu0 0.0
    %1921 = vmatpush1.msra.mxu0 0.0
    %1922 = vmatprep.subr.mxu0 0.0
    %1923 = vmatpush1.msra.mxu0 0.0
    %1924 = vmatprep.subr.mxu0 0.0
    %1925 = vmatpush1.msra.mxu0 0.0
    %1926 = vmatprep.subr.mxu0 0.0
    %1927 = vmatpush1.msra.mxu0 0.0
    %1928 = vmatprep.subr.mxu0 0.0
    %1929 = vmatpush1.msra.mxu0 0.0
    %1930 = vmatprep.subr.mxu0 0.0
    %1931 = vmatpush1.msra.mxu0 0.0
    %1932 = vmatprep.subr.mxu0 0.0
    %1933 = vmatpush1.msra.mxu0 0.0
    %1934 = vmatprep.subr.mxu0 0.0
    %1935 = vmatpush1.msra.mxu0 0.0
    %1936 = vmatprep.subr.mxu0 0.0
    %1937 = vmatpush1.msra.mxu0 0.0
    %1938 = vmatprep.subr.mxu0 0.0
    %1939 = vmatpush1.msra.mxu0 0.0
    %1940 = vmatprep.mubr.f32.mxu0 0.0
    %1941 = vmatmul.mubr.f32.gmra.mrb[0].mxu0 %v1871
    %v1942 = vpop.f32.mrb[0].mxu0
    %v1943 = vadd.f32 0.0, %v1942
    %v1944 = vpop.f32.mrb[0].mxu0
    %1945 = vmatprep.mubr.f32.mxu0 0.0
    %1946 = vmatmul.mubr.f32.gmra.mrb[0].mxu0 %v1874
    %v1947 = vpop.f32.mrb[0].mxu0
    %v1948 = vadd.f32 0.0, %v1947
    %v1949 = vpop.f32.mrb[0].mxu0
    %1950 = vdwg.mxu0
    %v1951 = vadd.f32 %v1773, %v1943
    %v1952 = vadd.f32 %v1778, %v1948
    %s1953 = scalar_lea.vmem %s7, 48
    %v1954 = vld [vmem:[%s1953] sm:$0xff]
    %v1955 = vld [vmem:[%s1953 + $0x8] sm:$0xff]
    %v1957 = vsel %vm790, %v1954, 0
    %v1960 = vsel %vm790, %v1955, 0
    %1962 = vmatprep.subr.mxu0 0.0
    %1963 = vmatpush1.msra.mxu0 %v1435
    %1964 = vmatprep.subr.mxu0 0.0
    %1965 = vmatpush1.msra.mxu0 %v1440
    %1966 = vmatprep.subr.mxu0 0.0
    %1967 = vmatpush1.msra.mxu0 0.0
    %1968 = vmatprep.subr.mxu0 0.0
    %1969 = vmatpush1.msra.mxu0 0.0
    %1970 = vmatprep.subr.mxu0 0.0
    %1971 = vmatpush1.msra.mxu0 0.0
    %1972 = vmatprep.subr.mxu0 0.0
    %1973 = vmatpush1.msra.mxu0 0.0
    %1974 = vmatprep.subr.mxu0 0.0
    %1975 = vmatpush1.msra.mxu0 0.0
    %1976 = vmatprep.subr.mxu0 0.0
    %1977 = vmatpush1.msra.mxu0 0.0
    %1978 = vmatprep.subr.mxu0 0.0
    %1979 = vmatpush1.msra.mxu0 0.0
    %1980 = vmatprep.subr.mxu0 0.0
    %1981 = vmatpush1.msra.mxu0 0.0
    %1982 = vmatprep.subr.mxu0 0.0
    %1983 = vmatpush1.msra.mxu0 0.0
    %1984 = vmatprep.subr.mxu0 0.0
    %1985 = vmatpush1.msra.mxu0 0.0
    %1986 = vmatprep.subr.mxu0 0.0
    %1987 = vmatpush1.msra.mxu0 0.0
    %1988 = vmatprep.subr.mxu0 0.0
    %1989 = vmatpush1.msra.mxu0 0.0
    %1990 = vmatprep.subr.mxu0 0.0
    %1991 = vmatpush1.msra.mxu0 0.0
    %1992 = vmatprep.subr.mxu0 0.0
    %1993 = vmatpush1.msra.mxu0 0.0
    %1994 = vmatprep.subr.mxu0 0.0
    %1995 = vmatpush1.msra.mxu0 0.0
    %1996 = vmatprep.subr.mxu0 0.0
    %1997 = vmatpush1.msra.mxu0 0.0
    %1998 = vmatprep.subr.mxu0 0.0
    %1999 = vmatpush1.msra.mxu0 0.0
    %2000 = vmatprep.subr.mxu0 0.0
    %2001 = vmatpush1.msra.mxu0 0.0
    %2002 = vmatprep.subr.mxu0 0.0
    %2003 = vmatpush1.msra.mxu0 0.0
    %2004 = vmatprep.subr.mxu0 0.0
    %2005 = vmatpush1.msra.mxu0 0.0
    %2006 = vmatprep.subr.mxu0 0.0
    %2007 = vmatpush1.msra.mxu0 0.0
    %2008 = vmatprep.subr.mxu0 0.0
    %2009 = vmatpush1.msra.mxu0 0.0
    %2010 = vmatprep.subr.mxu0 0.0
    %2011 = vmatpush1.msra.mxu0 0.0
    %2012 = vmatprep.subr.mxu0 0.0
    %2013 = vmatpush1.msra.mxu0 0.0
    %2014 = vmatprep.subr.mxu0 0.0
    %2015 = vmatpush1.msra.mxu0 0.0
    %2016 = vmatprep.subr.mxu0 0.0
    %2017 = vmatpush1.msra.mxu0 0.0
    %2018 = vmatprep.subr.mxu0 0.0
    %2019 = vmatpush1.msra.mxu0 0.0
    %2020 = vmatprep.subr.mxu0 0.0
    %2021 = vmatpush1.msra.mxu0 0.0
    %2022 = vmatprep.subr.mxu0 0.0
    %2023 = vmatpush1.msra.mxu0 0.0
    %2024 = vmatprep.subr.mxu0 0.0
    %2025 = vmatpush1.msra.mxu0 0.0
    %2026 = vmatprep.mubr.f32.mxu0 0.0
    %2027 = vmatmul.mubr.f32.gmra.mrb[0].mxu0 %v1957
    %v2028 = vpop.f32.mrb[0].mxu0
    %v2029 = vadd.f32 0.0, %v2028
    %v2030 = vpop.f32.mrb[0].mxu0
    %2031 = vmatprep.mubr.f32.mxu0 0.0
    %2032 = vmatmul.mubr.f32.gmra.mrb[0].mxu0 %v1960
    %v2033 = vpop.f32.mrb[0].mxu0
    %v2034 = vadd.f32 0.0, %v2033
    %v2035 = vpop.f32.mrb[0].mxu0
    %2036 = vdwg.mxu0
    %s2037 = scalar_lea.vmem %s8, 96
    %v2038 = vld [vmem:[%s2037] sm:$0xff]
    %v2039 = vld [vmem:[%s2037 + $0x8] sm:$0xff]
    %v2040 = vld [vmem:[%s2037 + $0x10] sm:$0xff]
    %v2041 = vld [vmem:[%s2037 + $0x18] sm:$0xff]
    %v2043 = vsel %vm1313, %v2029, 0
    %v2046 = vsel %vm1313, %v2034, 0
    %2048 = vmatprep.subr.mxu0 0.0
    %2049 = vmatpush1.msra.mxu0 %v2038
    %2050 = vmatprep.subr.mxu0 0.0
    %2051 = vmatpush1.msra.mxu0 %v2039
    %2052 = vmatprep.subr.mxu0 0.0
    %2053 = vmatpush1.msra.mxu0 %v2040
    %2054 = vmatprep.subr.mxu0 0.0
    %2055 = vmatpush1.msra.mxu0 %v2041
    %2056 = vmatprep.subr.mxu0 0.0
    %2057 = vmatpush1.msra.mxu0 0.0
    %2058 = vmatprep.subr.mxu0 0.0
    %2059 = vmatpush1.msra.mxu0 0.0
    %2060 = vmatprep.subr.mxu0 0.0
    %2061 = vmatpush1.msra.mxu0 0.0
    %2062 = vmatprep.subr.mxu0 0.0
    %2063 = vmatpush1.msra.mxu0 0.0
    %2064 = vmatprep.subr.mxu0 0.0
    %2065 = vmatpush1.msra.mxu0 0.0
    %2066 = vmatprep.subr.mxu0 0.0
    %2067 = vmatpush1.msra.mxu0 0.0
    %2068 = vmatprep.subr.mxu0 0.0
    %2069 = vmatpush1.msra.mxu0 0.0
    %2070 = vmatprep.subr.mxu0 0.0
    %2071 = vmatpush1.msra.mxu0 0.0
    %2072 = vmatprep.subr.mxu0 0.0
    %2073 = vmatpush1.msra.mxu0 0.0
    %2074 = vmatprep.subr.mxu0 0.0
    %2075 = vmatpush1.msra.mxu0 0.0
    %2076 = vmatprep.subr.mxu0 0.0
    %2077 = vmatpush1.msra.mxu0 0.0
    %2078 = vmatprep.subr.mxu0 0.0
    %2079 = vmatpush1.msra.mxu0 0.0
    %2080 = vmatprep.subr.mxu0 0.0
    %2081 = vmatpush1.msra.mxu0 0.0
    %2082 = vmatprep.subr.mxu0 0.0
    %2083 = vmatpush1.msra.mxu0 0.0
    %2084 = vmatprep.subr.mxu0 0.0
    %2085 = vmatpush1.msra.mxu0 0.0
    %2086 = vmatprep.subr.mxu0 0.0
    %2087 = vmatpush1.msra.mxu0 0.0
    %2088 = vmatprep.subr.mxu0 0.0
    %2089 = vmatpush1.msra.mxu0 0.0
    %2090 = vmatprep.subr.mxu0 0.0
    %2091 = vmatpush1.msra.mxu0 0.0
    %2092 = vmatprep.subr.mxu0 0.0
    %2093 = vmatpush1.msra.mxu0 0.0
    %2094 = vmatprep.subr.mxu0 0.0
    %2095 = vmatpush1.msra.mxu0 0.0
    %2096 = vmatprep.subr.mxu0 0.0
    %2097 = vmatpush1.msra.mxu0 0.0
    %2098 = vmatprep.subr.mxu0 0.0
    %2099 = vmatpush1.msra.mxu0 0.0
    %2100 = vmatprep.subr.mxu0 0.0
    %2101 = vmatpush1.msra.mxu0 0.0
    %2102 = vmatprep.subr.mxu0 0.0
    %2103 = vmatpush1.msra.mxu0 0.0
    %2104 = vmatprep.subr.mxu0 0.0
    %2105 = vmatpush1.msra.mxu0 0.0
    %2106 = vmatprep.subr.mxu0 0.0
    %2107 = vmatpush1.msra.mxu0 0.0
    %2108 = vmatprep.subr.mxu0 0.0
    %2109 = vmatpush1.msra.mxu0 0.0
    %2110 = vmatprep.subr.mxu0 0.0
    %2111 = vmatpush1.msra.mxu0 0.0
    %2112 = vmatprep.mubr.f32.mxu0 0.0
    %2113 = vmatmul.mubr.f32.gmra.mrb[0].mxu0 %v2043
    %v2114 = vpop.f32.mrb[0].mxu0
    %v2115 = vadd.f32 0.0, %v2114
    %v2116 = vpop.f32.mrb[0].mxu0
    %2117 = vmatprep.mubr.f32.mxu0 0.0
    %2118 = vmatmul.mubr.f32.gmra.mrb[0].mxu0 %v2046
    %v2119 = vpop.f32.mrb[0].mxu0
    %v2120 = vadd.f32 0.0, %v2119
    %v2121 = vpop.f32.mrb[0].mxu0
    %2122 = vdwg.mxu0
    %v2123 = vadd.f32 %v1951, %v2115
    %v2124 = vadd.f32 %v1952, %v2120
    %v2125 = vld [vmem:[%s15 + $0x5] sm:$0x1]
    %v2126 = vlaneseq
    %v2127 = vshrl.u32 %v2126, 7
    %v2128 = vsub.s32 0, %v2127
    %v2129 = vrot.slane %v2125, %v2128
    %v2130 = vadd.f32 %v2123, %v2129
    %v2131 = vadd.f32 %v2124, %v2129
    %v2132 = vmul.f32 %v2130, 0.5
    %v2133 = vmul.f32 %v2131, 0.5
    %v2134 = vmul.f32 %v2130, 0.044715
    %v2135 = vmul.f32 %v2131, 0.044715
    %v2136 = vmul.f32 %v2134, %v2130
    %v2137 = vmul.f32 %v2135, %v2131
    %v2138 = vmul.f32 %v2136, %v2130
    %v2139 = vmul.f32 %v2137, %v2131
    %v2140 = vadd.f32 %v2130, %v2138
    %v2141 = vadd.f32 %v2131, %v2139
    %v2142 = vmul.f32 %v2140, 0.7978846
    %v2143 = vmul.f32 %v2141, 0.7978846
    %v2144 = vtanh.pop %v2142
    %v2145 = vtanh.pop %v2143
    %v2146 = vadd.f32 %v2144, 1.0
    %v2147 = vadd.f32 %v2145, 1.0
    %v2148 = vmul.f32 %v2132, %v2146
    %v2149 = vmul.f32 %v2133, %v2147
    %v2150 = vadd.f32 %v1435, %v2148
    %v2151 = vadd.f32 %v1440, %v2149
    %v2152 = vld [vmem:[%s15 + $0x6] sm:$0x1]
    %v2153 = vld [vmem:[%s15 + $0x7] sm:$0x1]
    %v2154 = vsel %vm1313, %v2150, 0.0
    %2155 = vadd.xlane.f32.xlu0 %v2154
    %v2156 = vpop.xlane.xlu0 %2155
    %v2157 = vsel %vm1313, %v2151, 0.0
    %2158 = vadd.xlane.f32.xlu0 %v2157
    %v2159 = vpop.xlane.xlu0 %2158
    %v2160 = vmul.f32 %v2156, %v1320
    %v2161 = vmul.f32 %v2159, %v1320
    %v2162 = vsub.f32 %v2150, %v2160
    %v2163 = vsub.f32 %v2151, %v2161
    %v2164 = vmul.f32 %v2162, %v2162
    %v2165 = vmul.f32 %v2163, %v2163
    %v2166 = vsel %vm1313, %v2164, 0.0
    %2167 = vadd.xlane.f32.xlu0 %v2166
    %v2168 = vpop.xlane.xlu0 %2167
    %v2169 = vsel %vm1313, %v2165, 0.0
    %2170 = vadd.xlane.f32.xlu0 %v2169
    %v2171 = vpop.xlane.xlu0 %2170
    %v2172 = vmul.f32 %v2168, %v1320
    %v2173 = vmul.f32 %v2171, %v1320
    %v2174 = vadd.f32 %v2172, 1e-05
    %v2175 = vadd.f32 %v2173, 1e-05
    %v2176 = vrsqrt.pop %v2174
    %v2177 = vrsqrt.pop %v2175
    %v2178 = vmul.f32 %v2162, %v2176
    %v2179 = vmul.f32 %v2163, %v2177
    %v2180 = vlaneseq
    %v2181 = vshrl.u32 %v2180, 7
    %v2182 = vsub.s32 0, %v2181
    %v2183 = vrot.slane %v2152, %v2182
    %v2184 = vmul.f32 %v2178, %v2183
    %v2185 = vmul.f32 %v2179, %v2183
    %v2186 = vlaneseq
    %v2187 = vshrl.u32 %v2186, 7
    %v2188 = vsub.s32 0, %v2187
    %v2189 = vrot.slane %v2153, %v2188
    %v2190 = vadd.f32 %v2184, %v2189
    %v2191 = vadd.f32 %v2185, %v2189
    %v2192 = vld [vmem:[%s9] sm:$0xff]
    %v2193 = vld [vmem:[%s9 + $0x8] sm:$0xff]
    %v2194 = vld [vmem:[%s10] sm:$0xff]
    %v2195 = vld [vmem:[%s10 + $0x8] sm:$0xff]
    %v2196 = vld [vmem:[%s10 + $0x10] sm:$0xff]
    %v2197 = vld [vmem:[%s10 + $0x18] sm:$0xff]
    %v2198 = vld [vmem:[%s15 + $0x8] sm:$0x1]
    %v2199 = vlaneseq
    %v2200 = vshrl.u32 %v2199, 7
    %v2201 = vsub.s32 0, %v2200
    %v2202 = vrot.slane %v2198, %v2201
    %v2204 = vsel %vm1313, %v2190, 0
    %v2207 = vsel %vm1313, %v2191, 0
    %2209 = vmatprep.subr.mxu0 0.0
    %2210 = vmatpush1.msra.mxu0 %v2194
    %2211 = vmatprep.subr.mxu0 0.0
    %2212 = vmatpush1.msra.mxu0 %v2195
    %2213 = vmatprep.subr.mxu0 0.0
    %2214 = vmatpush1.msra.mxu0 %v2196
    %2215 = vmatprep.subr.mxu0 0.0
    %2216 = vmatpush1.msra.mxu0 %v2197
    %2217 = vmatprep.subr.mxu0 0.0
    %2218 = vmatpush1.msra.mxu0 0.0
    %2219 = vmatprep.subr.mxu0 0.0
    %2220 = vmatpush1.msra.mxu0 0.0
    %2221 = vmatprep.subr.mxu0 0.0
    %2222 = vmatpush1.msra.mxu0 0.0
    %2223 = vmatprep.subr.mxu0 0.0
    %2224 = vmatpush1.msra.mxu0 0.0
    %2225 = vmatprep.subr.mxu0 0.0
    %2226 = vmatpush1.msra.mxu0 0.0
    %2227 = vmatprep.subr.mxu0 0.0
    %2228 = vmatpush1.msra.mxu0 0.0
    %2229 = vmatprep.subr.mxu0 0.0
    %2230 = vmatpush1.msra.mxu0 0.0
    %2231 = vmatprep.subr.mxu0 0.0
    %2232 = vmatpush1.msra.mxu0 0.0
    %2233 = vmatprep.subr.mxu0 0.0
    %2234 = vmatpush1.msra.mxu0 0.0
    %2235 = vmatprep.subr.mxu0 0.0
    %2236 = vmatpush1.msra.mxu0 0.0
    %2237 = vmatprep.subr.mxu0 0.0
    %2238 = vmatpush1.msra.mxu0 0.0
    %2239 = vmatprep.subr.mxu0 0.0
    %2240 = vmatpush1.msra.mxu0 0.0
    %2241 = vmatprep.subr.mxu0 0.0
    %2242 = vmatpush1.msra.mxu0 0.0
    %2243 = vmatprep.subr.mxu0 0.0
    %2244 = vmatpush1.msra.mxu0 0.0
    %2245 = vmatprep.subr.mxu0 0.0
    %2246 = vmatpush1.msra.mxu0 0.0
    %2247 = vmatprep.subr.mxu0 0.0
    %2248 = vmatpush1.msra.mxu0 0.0
    %2249 = vmatprep.subr.mxu0 0.0
    %2250 = vmatpush1.msra.mxu0 0.0
    %2251 = vmatprep.subr.mxu0 0.0
    %2252 = vmatpush1.msra.mxu0 0.0
    %2253 = vmatprep.subr.mxu0 0.0
    %2254 = vmatpush1.msra.mxu0 0.0
    %2255 = vmatprep.subr.mxu0 0.0
    %2256 = vmatpush1.msra.mxu0 0.0
    %2257 = vmatprep.subr.mxu0 0.0
    %2258 = vmatpush1.msra.mxu0 0.0
    %2259 = vmatprep.subr.mxu0 0.0
    %2260 = vmatpush1.msra.mxu0 0.0
    %2261 = vmatprep.subr.mxu0 0.0
    %2262 = vmatpush1.msra.mxu0 0.0
    %2263 = vmatprep.subr.mxu0 0.0
    %2264 = vmatpush1.msra.mxu0 0.0
    %2265 = vmatprep.subr.mxu0 0.0
    %2266 = vmatpush1.msra.mxu0 0.0
    %2267 = vmatprep.subr.mxu0 0.0
    %2268 = vmatpush1.msra.mxu0 0.0
    %2269 = vmatprep.subr.mxu0 0.0
    %2270 = vmatpush1.msra.mxu0 0.0
    %2271 = vmatprep.subr.mxu0 0.0
    %2272 = vmatpush1.msra.mxu0 0.0
    %2273 = vmatprep.mubr.f32.mxu0 0.0
    %2274 = vmatmul.mubr.f32.gmra.mrb[0].mxu0 %v2204
    %v2275 = vpop.f32.mrb[0].mxu0
    %v2276 = vadd.f32 %v2202, %v2275
    %v2277 = vpop.f32.mrb[0].mxu0
    %2278 = vmatprep.mubr.f32.mxu0 0.0
    %2279 = vmatmul.mubr.f32.gmra.mrb[0].mxu0 %v2207
    %v2280 = vpop.f32.mrb[0].mxu0
    %v2281 = vadd.f32 %v2202, %v2280
    %v2282 = vpop.f32.mrb[0].mxu0
    %2283 = vdwg.mxu0
    %v2284 = vld [vmem:[%s11] sm:$0xff]
    %v2285 = vld [vmem:[%s11 + $0x8] sm:$0xff]
    %v2286 = vld [vmem:[%s11 + $0x10] sm:$0xff]
    %v2287 = vld [vmem:[%s11 + $0x18] sm:$0xff]
    %v2288 = vmul.f32 %v2276, 0.35355338
    %v2289 = vmul.f32 %v2281, 0.35355338
    %2292 = vrot.lane.b32.xlu0 %v2276, 96
    %v2293 = vpop.permute.xlu0 %2292
    %2294 = vrot.lane.b32.xlu0 %v2281, 96
    %v2295 = vpop.permute.xlu0 %2294
    %vm2296 = vcmask 64512
    %v2298 = vsel %vm2296, %v2288, 0
    %v2301 = vsel %vm2296, %v2289, 0
    %v2303 = vsel %vm2296, %v2293, 0
    %v2305 = vsel %vm2296, %v2295, 0
    %2307 = vmatprep.subr.mxu0 0.0
    %2308 = vmatpush1.xpose.msra.mxu0 %v2303
    %2309 = vmatprep.subr.mxu0 0.0
    %2310 = vmatpush1.xpose.msra.mxu0 %v2305
    %2311 = vmatprep.subr.mxu0 0.0
    %2312 = vmatpush1.xpose.msra.mxu0 0.0
    %2313 = vmatprep.subr.mxu0 0.0
    %2314 = vmatpush1.xpose.msra.mxu0 0.0
    %2315 = vmatprep.subr.mxu0 0.0
    %2316 = vmatpush1.xpose.msra.mxu0 0.0
    %2317 = vmatprep.subr.mxu0 0.0
    %2318 = vmatpush1.xpose.msra.mxu0 0.0
    %2319 = vmatprep.subr.mxu0 0.0
    %2320 = vmatpush1.xpose.msra.mxu0 0.0
    %2321 = vmatprep.subr.mxu0 0.0
    %2322 = vmatpush1.xpose.msra.mxu0 0.0
    %2323 = vmatprep.subr.mxu0 0.0
    %2324 = vmatpush1.xpose.msra.mxu0 0.0
    %2325 = vmatprep.subr.mxu0 0.0
    %2326 = vmatpush1.xpose.msra.mxu0 0.0
    %2327 = vmatprep.subr.mxu0 0.0
    %2328 = vmatpush1.xpose.msra.mxu0 0.0
    %2329 = vmatprep.subr.mxu0 0.0
    %2330 = vmatpush1.xpose.msra.mxu0 0.0
    %2331 = vmatprep.subr.mxu0 0.0
    %2332 = vmatpush1.xpose.msra.mxu0 0.0
    %2333 = vmatprep.subr.mxu0 0.0
    %2334 = vmatpush1.xpose.msra.mxu0 0.0
    %2335 = vmatprep.subr.mxu0 0.0
    %2336 = vmatpush1.xpose.msra.mxu0 0.0
    %2337 = vmatprep.subr.mxu0 0.0
    %2338 = vmatpush1.xpose.msra.mxu0 0.0
    %2339 = vmatprep.subr.mxu0 0.0
    %2340 = vmatpush1.xpose.msra.mxu0 0.0
    %2341 = vmatprep.subr.mxu0 0.0
    %2342 = vmatpush1.xpose.msra.mxu0 0.0
    %2343 = vmatprep.subr.mxu0 0.0
    %2344 = vmatpush1.xpose.msra.mxu0 0.0
    %2345 = vmatprep.subr.mxu0 0.0
    %2346 = vmatpush1.xpose.msra.mxu0 0.0
    %2347 = vmatprep.subr.mxu0 0.0
    %2348 = vmatpush1.xpose.msra.mxu0 0.0
    %2349 = vmatprep.subr.mxu0 0.0
    %2350 = vmatpush1.xpose.msra.mxu0 0.0
    %2351 = vmatprep.subr.mxu0 0.0
    %2352 = vmatpush1.xpose.msra.mxu0 0.0
    %2353 = vmatprep.subr.mxu0 0.0
    %2354 = vmatpush1.xpose.msra.mxu0 0.0
    %2355 = vmatprep.subr.mxu0 0.0
    %2356 = vmatpush1.xpose.msra.mxu0 0.0
    %2357 = vmatprep.subr.mxu0 0.0
    %2358 = vmatpush1.xpose.msra.mxu0 0.0
    %2359 = vmatprep.subr.mxu0 0.0
    %2360 = vmatpush1.xpose.msra.mxu0 0.0
    %2361 = vmatprep.subr.mxu0 0.0
    %2362 = vmatpush1.xpose.msra.mxu0 0.0
    %2363 = vmatprep.subr.mxu0 0.0
    %2364 = vmatpush1.xpose.msra.mxu0 0.0
    %2365 = vmatprep.subr.mxu0 0.0
    %2366 = vmatpush1.xpose.msra.mxu0 0.0
    %2367 = vmatprep.subr.mxu0 0.0
    %2368 = vmatpush1.xpose.msra.mxu0 0.0
    %2369 = vmatprep.subr.mxu0 0.0
    %2370 = vmatpush1.xpose.msra.mxu0 0.0
    %2371 = vmatprep.mubr.f32.mxu0 0.0
    %2372 = vmatmul.mubr.f32.gmra.mrb[0].mxu0 %v2298
    %v2373 = vpop.f32.mrb[0].mxu0
    %v2374 = vadd.f32 %v2192, %v2373
    %v2375 = vpop.f32.mrb[0].mxu0
    %2376 = vmatprep.mubr.f32.mxu0 0.0
    %2377 = vmatmul.mubr.f32.gmra.mrb[0].mxu0 %v2301
    %v2378 = vpop.f32.mrb[0].mxu0
    %v2379 = vadd.f32 %v2193, %v2378
    %v2380 = vpop.f32.mrb[0].mxu0
    %2381 = vdwg.mxu0
    %v2382 = vsel %vm790, %v2374, -inf
    %2383 = vmax.xlane.f32.xlu0 %v2382
    %v2384 = vpop.xlane.xlu0 %2383
    %v2385 = vsel %vm790, %v2379, -inf
    %2386 = vmax.xlane.f32.xlu0 %v2385
    %v2387 = vpop.xlane.xlu0 %2386
    %v2388 = vsub.f32 %v2374, %v2384
    %v2389 = vsub.f32 %v2379, %v2387
    %v2390 = vmul.f32 %v2388, 1.442695
    %v2391 = vpow.pop %v2390
    %v2392 = vmul.f32 %v2389, 1.442695
    %v2393 = vpow.pop %v2392
    %v2394 = vsel %vm790, %v2391, 0.0
    %2395 = vadd.xlane.f32.xlu0 %v2394
    %v2396 = vpop.xlane.xlu0 %2395
    %v2397 = vsel %vm790, %v2393, 0.0
    %2398 = vadd.xlane.f32.xlu0 %v2397
    %v2399 = vpop.xlane.xlu0 %2398
    %v2400 = vrcp.pop %v2396
    %v2401 = vrcp.pop %v2399
    %v2402 = vmul.f32 %v2391, %v2400
    %v2403 = vmul.f32 %v2393, %v2401
    %2404 = vrot.lane.b32.xlu0 %v2276, 64
    %v2405 = vpop.permute.xlu0 %2404
    %2406 = vrot.lane.b32.xlu0 %v2281, 64
    %v2407 = vpop.permute.xlu0 %2406
    %v2411 = vsel %vm790, %v2402, 0
    %v2414 = vsel %vm790, %v2403, 0
    %2416 = vmatprep.subr.mxu0 0.0
    %2417 = vmatpush1.msra.mxu0 %v2405
    %2418 = vmatprep.subr.mxu0 0.0
    %2419 = vmatpush1.msra.mxu0 %v2407
    %2420 = vmatprep.subr.mxu0 0.0
    %2421 = vmatpush1.msra.mxu0 0.0
    %2422 = vmatprep.subr.mxu0 0.0
    %2423 = vmatpush1.msra.mxu0 0.0
    %2424 = vmatprep.subr.mxu0 0.0
    %2425 = vmatpush1.msra.mxu0 0.0
    %2426 = vmatprep.subr.mxu0 0.0
    %2427 = vmatpush1.msra.mxu0 0.0
    %2428 = vmatprep.subr.mxu0 0.0
    %2429 = vmatpush1.msra.mxu0 0.0
    %2430 = vmatprep.subr.mxu0 0.0
    %2431 = vmatpush1.msra.mxu0 0.0
    %2432 = vmatprep.subr.mxu0 0.0
    %2433 = vmatpush1.msra.mxu0 0.0
    %2434 = vmatprep.subr.mxu0 0.0
    %2435 = vmatpush1.msra.mxu0 0.0
    %2436 = vmatprep.subr.mxu0 0.0
    %2437 = vmatpush1.msra.mxu0 0.0
    %2438 = vmatprep.subr.mxu0 0.0
    %2439 = vmatpush1.msra.mxu0 0.0
    %2440 = vmatprep.subr.mxu0 0.0
    %2441 = vmatpush1.msra.mxu0 0.0
    %2442 = vmatprep.subr.mxu0 0.0
    %2443 = vmatpush1.msra.mxu0 0.0
    %2444 = vmatprep.subr.mxu0 0.0
    %2445 = vmatpush1.msra.mxu0 0.0
    %2446 = vmatprep.subr.mxu0 0.0
    %2447 = vmatpush1.msra.mxu0 0.0
    %2448 = vmatprep.subr.mxu0 0.0
    %2449 = vmatpush1.msra.mxu0 0.0
    %2450 = vmatprep.subr.mxu0 0.0
    %2451 = vmatpush1.msra.mxu0 0.0
    %2452 = vmatprep.subr.mxu0 0.0
    %2453 = vmatpush1.msra.mxu0 0.0
    %2454 = vmatprep.subr.mxu0 0.0
    %2455 = vmatpush1.msra.mxu0 0.0
    %2456 = vmatprep.subr.mxu0 0.0
    %2457 = vmatpush1.msra.mxu0 0.0
    %2458 = vmatprep.subr.mxu0 0.0
    %2459 = vmatpush1.msra.mxu0 0.0
    %2460 = vmatprep.subr.mxu0 0.0
    %2461 = vmatpush1.msra.mxu0 0.0
    %2462 = vmatprep.subr.mxu0 0.0
    %2463 = vmatpush1.msra.mxu0 0.0
    %2464 = vmatprep.subr.mxu0 0.0
    %2465 = vmatpush1.msra.mxu0 0.0
    %2466 = vmatprep.subr.mxu0 0.0
    %2467 = vmatpush1.msra.mxu0 0.0
    %2468 = vmatprep.subr.mxu0 0.0
    %2469 = vmatpush1.msra.mxu0 0.0
    %2470 = vmatprep.subr.mxu0 0.0
    %2471 = vmatpush1.msra.mxu0 0.0
    %2472 = vmatprep.subr.mxu0 0.0
    %2473 = vmatpush1.msra.mxu0 0.0
    %2474 = vmatprep.subr.mxu0 0.0
    %2475 = vmatpush1.msra.mxu0 0.0
    %2476 = vmatprep.subr.mxu0 0.0
    %2477 = vmatpush1.msra.mxu0 0.0
    %2478 = vmatprep.subr.mxu0 0.0
    %2479 = vmatpush1.msra.mxu0 0.0
    %2480 = vmatprep.mubr.f32.mxu0 0.0
    %2481 = vmatmul.mubr.f32.gmra.mrb[0].mxu0 %v2411
    %v2482 = vpop.f32.mrb[0].mxu0
    %v2483 = vadd.f32 0.0, %v2482
    %v2484 = vpop.f32.mrb[0].mxu0
    %2485 = vmatprep.mubr.f32.mxu0 0.0
    %2486 = vmatmul.mubr.f32.gmra.mrb[0].mxu0 %v2414
    %v2487 = vpop.f32.mrb[0].mxu0
    %v2488 = vadd.f32 0.0, %v2487
    %v2489 = vpop.f32.mrb[0].mxu0
    %2490 = vdwg.mxu0
    %2491 = vrot.lane.b32.xlu0 %v2288, 120
    %v2492 = vpop.permute.xlu0 %2491
    %2493 = vrot.lane.b32.xlu0 %v2289, 120
    %v2494 = vpop.permute.xlu0 %2493
    %2495 = vrot.lane.b32.xlu0 %v2276, 88
    %v2496 = vpop.permute.xlu0 %2495
    %2497 = vrot.lane.b32.xlu0 %v2281, 88
    %v2498 = vpop.permute.xlu0 %2497
    %v2499 = vsel %vm2296, %v2492, 0
    %v2501 = vsel %vm2296, %v2494, 0
    %v2503 = vsel %vm2296, %v2496, 0
    %v2505 = vsel %vm2296, %v2498, 0
    %2507 = vmatprep.subr.mxu0 0.0
    %2508 = vmatpush1.xpose.msra.mxu0 %v2503
    %2509 = vmatprep.subr.mxu0 0.0
    %2510 = vmatpush1.xpose.msra.mxu0 %v2505
    %2511 = vmatprep.subr.mxu0 0.0
    %2512 = vmatpush1.xpose.msra.mxu0 0.0
    %2513 = vmatprep.subr.mxu0 0.0
    %2514 = vmatpush1.xpose.msra.mxu0 0.0
    %2515 = vmatprep.subr.mxu0 0.0
    %2516 = vmatpush1.xpose.msra.mxu0 0.0
    %2517 = vmatprep.subr.mxu0 0.0
    %2518 = vmatpush1.xpose.msra.mxu0 0.0
    %2519 = vmatprep.subr.mxu0 0.0
    %2520 = vmatpush1.xpose.msra.mxu0 0.0
    %2521 = vmatprep.subr.mxu0 0.0
    %2522 = vmatpush1.xpose.msra.mxu0 0.0
    %2523 = vmatprep.subr.mxu0 0.0
    %2524 = vmatpush1.xpose.msra.mxu0 0.0
    %2525 = vmatprep.subr.mxu0 0.0
    %2526 = vmatpush1.xpose.msra.mxu0 0.0
    %2527 = vmatprep.subr.mxu0 0.0
    %2528 = vmatpush1.xpose.msra.mxu0 0.0
    %2529 = vmatprep.subr.mxu0 0.0
    %2530 = vmatpush1.xpose.msra.mxu0 0.0
    %2531 = vmatprep.subr.mxu0 0.0
    %2532 = vmatpush1.xpose.msra.mxu0 0.0
    %2533 = vmatprep.subr.mxu0 0.0
    %2534 = vmatpush1.xpose.msra.mxu0 0.0
    %2535 = vmatprep.subr.mxu0 0.0
    %2536 = vmatpush1.xpose.msra.mxu0 0.0
    %2537 = vmatprep.subr.mxu0 0.0
    %2538 = vmatpush1.xpose.msra.mxu0 0.0
    %2539 = vmatprep.subr.mxu0 0.0
    %2540 = vmatpush1.xpose.msra.mxu0 0.0
    %2541 = vmatprep.subr.mxu0 0.0
    %2542 = vmatpush1.xpose.msra.mxu0 0.0
    %2543 = vmatprep.subr.mxu0 0.0
    %2544 = vmatpush1.xpose.msra.mxu0 0.0
    %2545 = vmatprep.subr.mxu0 0.0
    %2546 = vmatpush1.xpose.msra.mxu0 0.0
    %2547 = vmatprep.subr.mxu0 0.0
    %2548 = vmatpush1.xpose.msra.mxu0 0.0
    %2549 = vmatprep.subr.mxu0 0.0
    %2550 = vmatpush1.xpose.msra.mxu0 0.0
    %2551 = vmatprep.subr.mxu0 0.0
    %2552 = vmatpush1.xpose.msra.mxu0 0.0
    %2553 = vmatprep.subr.mxu0 0.0
    %2554 = vmatpush1.xpose.msra.mxu0 0.0
    %2555 = vmatprep.subr.mxu0 0.0
    %2556 = vmatpush1.xpose.msra.mxu0 0.0
    %2557 = vmatprep.subr.mxu0 0.0
    %2558 = vmatpush1.xpose.msra.mxu0 0.0
    %2559 = vmatprep.subr.mxu0 0.0
    %2560 = vmatpush1.xpose.msra.mxu0 0.0
    %2561 = vmatprep.subr.mxu0 0.0
    %2562 = vmatpush1.xpose.msra.mxu0 0.0
    %2563 = vmatprep.subr.mxu0 0.0
    %2564 = vmatpush1.xpose.msra.mxu0 0.0
    %2565 = vmatprep.subr.mxu0 0.0
    %2566 = vmatpush1.xpose.msra.mxu0 0.0
    %2567 = vmatprep.subr.mxu0 0.0
    %2568 = vmatpush1.xpose.msra.mxu0 0.0
    %2569 = vmatprep.subr.mxu0 0.0
    %2570 = vmatpush1.xpose.msra.mxu0 0.0
    %2571 = vmatprep.mubr.f32.mxu0 0.0
    %2572 = vmatmul.mubr.f32.gmra.mrb[0].mxu0 %v2499
    %v2573 = vpop.f32.mrb[0].mxu0
    %v2574 = vadd.f32 %v2192, %v2573
    %v2575 = vpop.f32.mrb[0].mxu0
    %2576 = vmatprep.mubr.f32.mxu0 0.0
    %2577 = vmatmul.mubr.f32.gmra.mrb[0].mxu0 %v2501
    %v2578 = vpop.f32.mrb[0].mxu0
    %v2579 = vadd.f32 %v2193, %v2578
    %v2580 = vpop.f32.mrb[0].mxu0
    %2581 = vdwg.mxu0
    %v2582 = vsel %vm790, %v2574, -inf
    %2583 = vmax.xlane.f32.xlu0 %v2582
    %v2584 = vpop.xlane.xlu0 %2583
    %v2585 = vsel %vm790, %v2579, -inf
    %2586 = vmax.xlane.f32.xlu0 %v2585
    %v2587 = vpop.xlane.xlu0 %2586
    %v2588 = vsub.f32 %v2574, %v2584
    %v2589 = vsub.f32 %v2579, %v2587
    %v2590 = vmul.f32 %v2588, 1.442695
    %v2591 = vpow.pop %v2590
    %v2592 = vmul.f32 %v2589, 1.442695
    %v2593 = vpow.pop %v2592
    %v2594 = vsel %vm790, %v2591, 0.0
    %2595 = vadd.xlane.f32.xlu0 %v2594
    %v2596 = vpop.xlane.xlu0 %2595
    %v2597 = vsel %vm790, %v2593, 0.0
    %2598 = vadd.xlane.f32.xlu0 %v2597
    %v2599 = vpop.xlane.xlu0 %2598
    %v2600 = vrcp.pop %v2596
    %v2601 = vrcp.pop %v2599
    %v2602 = vmul.f32 %v2591, %v2600
    %v2603 = vmul.f32 %v2593, %v2601
    %2604 = vrot.lane.b32.xlu0 %v2276, 56
    %v2605 = vpop.permute.xlu0 %2604
    %2606 = vrot.lane.b32.xlu0 %v2281, 56
    %v2607 = vpop.permute.xlu0 %2606
    %v2611 = vsel %vm790, %v2602, 0
    %v2614 = vsel %vm790, %v2603, 0
    %2616 = vmatprep.subr.mxu0 0.0
    %2617 = vmatpush1.msra.mxu0 %v2605
    %2618 = vmatprep.subr.mxu0 0.0
    %2619 = vmatpush1.msra.mxu0 %v2607
    %2620 = vmatprep.subr.mxu0 0.0
    %2621 = vmatpush1.msra.mxu0 0.0
    %2622 = vmatprep.subr.mxu0 0.0
    %2623 = vmatpush1.msra.mxu0 0.0
    %2624 = vmatprep.subr.mxu0 0.0
    %2625 = vmatpush1.msra.mxu0 0.0
    %2626 = vmatprep.subr.mxu0 0.0
    %2627 = vmatpush1.msra.mxu0 0.0
    %2628 = vmatprep.subr.mxu0 0.0
    %2629 = vmatpush1.msra.mxu0 0.0
    %2630 = vmatprep.subr.mxu0 0.0
    %2631 = vmatpush1.msra.mxu0 0.0
    %2632 = vmatprep.subr.mxu0 0.0
    %2633 = vmatpush1.msra.mxu0 0.0
    %2634 = vmatprep.subr.mxu0 0.0
    %2635 = vmatpush1.msra.mxu0 0.0
    %2636 = vmatprep.subr.mxu0 0.0
    %2637 = vmatpush1.msra.mxu0 0.0
    %2638 = vmatprep.subr.mxu0 0.0
    %2639 = vmatpush1.msra.mxu0 0.0
    %2640 = vmatprep.subr.mxu0 0.0
    %2641 = vmatpush1.msra.mxu0 0.0
    %2642 = vmatprep.subr.mxu0 0.0
    %2643 = vmatpush1.msra.mxu0 0.0
    %2644 = vmatprep.subr.mxu0 0.0
    %2645 = vmatpush1.msra.mxu0 0.0
    %2646 = vmatprep.subr.mxu0 0.0
    %2647 = vmatpush1.msra.mxu0 0.0
    %2648 = vmatprep.subr.mxu0 0.0
    %2649 = vmatpush1.msra.mxu0 0.0
    %2650 = vmatprep.subr.mxu0 0.0
    %2651 = vmatpush1.msra.mxu0 0.0
    %2652 = vmatprep.subr.mxu0 0.0
    %2653 = vmatpush1.msra.mxu0 0.0
    %2654 = vmatprep.subr.mxu0 0.0
    %2655 = vmatpush1.msra.mxu0 0.0
    %2656 = vmatprep.subr.mxu0 0.0
    %2657 = vmatpush1.msra.mxu0 0.0
    %2658 = vmatprep.subr.mxu0 0.0
    %2659 = vmatpush1.msra.mxu0 0.0
    %2660 = vmatprep.subr.mxu0 0.0
    %2661 = vmatpush1.msra.mxu0 0.0
    %2662 = vmatprep.subr.mxu0 0.0
    %2663 = vmatpush1.msra.mxu0 0.0
    %2664 = vmatprep.subr.mxu0 0.0
    %2665 = vmatpush1.msra.mxu0 0.0
    %2666 = vmatprep.subr.mxu0 0.0
    %2667 = vmatpush1.msra.mxu0 0.0
    %2668 = vmatprep.subr.mxu0 0.0
    %2669 = vmatpush1.msra.mxu0 0.0
    %2670 = vmatprep.subr.mxu0 0.0
    %2671 = vmatpush1.msra.mxu0 0.0
    %2672 = vmatprep.subr.mxu0 0.0
    %2673 = vmatpush1.msra.mxu0 0.0
    %2674 = vmatprep.subr.mxu0 0.0
    %2675 = vmatpush1.msra.mxu0 0.0
    %2676 = vmatprep.subr.mxu0 0.0
    %2677 = vmatpush1.msra.mxu0 0.0
    %2678 = vmatprep.subr.mxu0 0.0
    %2679 = vmatpush1.msra.mxu0 0.0
    %2680 = vmatprep.mubr.f32.mxu0 0.0
    %2681 = vmatmul.mubr.f32.gmra.mrb[0].mxu0 %v2611
    %v2682 = vpop.f32.mrb[0].mxu0
    %v2683 = vadd.f32 0.0, %v2682
    %v2684 = vpop.f32.mrb[0].mxu0
    %2685 = vmatprep.mubr.f32.mxu0 0.0
    %2686 = vmatmul.mubr.f32.gmra.mrb[0].mxu0 %v2614
    %v2687 = vpop.f32.mrb[0].mxu0
    %v2688 = vadd.f32 0.0, %v2687
    %v2689 = vpop.f32.mrb[0].mxu0
    %2690 = vdwg.mxu0
    %v2692 = vsel %vm2296, %v2683, 0
    %v2695 = vsel %vm2296, %v2688, 0
    %2697 = vmatprep.subr.mxu0 0.0
    %2698 = vmatpush1.msra.mxu0 %v2285
    %2699 = vmatprep.subr.mxu0 0.0
    %2700 = vmatpush1.msra.mxu0 0.0
    %2701 = vmatprep.subr.mxu0 0.0
    %2702 = vmatpush1.msra.mxu0 0.0
    %2703 = vmatprep.subr.mxu0 0.0
    %2704 = vmatpush1.msra.mxu0 0.0
    %2705 = vmatprep.subr.mxu0 0.0
    %2706 = vmatpush1.msra.mxu0 0.0
    %2707 = vmatprep.subr.mxu0 0.0
    %2708 = vmatpush1.msra.mxu0 0.0
    %2709 = vmatprep.subr.mxu0 0.0
    %2710 = vmatpush1.msra.mxu0 0.0
    %2711 = vmatprep.subr.mxu0 0.0
    %2712 = vmatpush1.msra.mxu0 0.0
    %2713 = vmatprep.subr.mxu0 0.0
    %2714 = vmatpush1.msra.mxu0 0.0
    %2715 = vmatprep.subr.mxu0 0.0
    %2716 = vmatpush1.msra.mxu0 0.0
    %2717 = vmatprep.subr.mxu0 0.0
    %2718 = vmatpush1.msra.mxu0 0.0
    %2719 = vmatprep.subr.mxu0 0.0
    %2720 = vmatpush1.msra.mxu0 0.0
    %2721 = vmatprep.subr.mxu0 0.0
    %2722 = vmatpush1.msra.mxu0 0.0
    %2723 = vmatprep.subr.mxu0 0.0
    %2724 = vmatpush1.msra.mxu0 0.0
    %2725 = vmatprep.subr.mxu0 0.0
    %2726 = vmatpush1.msra.mxu0 0.0
    %2727 = vmatprep.subr.mxu0 0.0
    %2728 = vmatpush1.msra.mxu0 0.0
    %2729 = vmatprep.subr.mxu0 0.0
    %2730 = vmatpush1.msra.mxu0 0.0
    %2731 = vmatprep.subr.mxu0 0.0
    %2732 = vmatpush1.msra.mxu0 0.0
    %2733 = vmatprep.subr.mxu0 0.0
    %2734 = vmatpush1.msra.mxu0 0.0
    %2735 = vmatprep.subr.mxu0 0.0
    %2736 = vmatpush1.msra.mxu0 0.0
    %2737 = vmatprep.subr.mxu0 0.0
    %2738 = vmatpush1.msra.mxu0 0.0
    %2739 = vmatprep.subr.mxu0 0.0
    %2740 = vmatpush1.msra.mxu0 0.0
    %2741 = vmatprep.subr.mxu0 0.0
    %2742 = vmatpush1.msra.mxu0 0.0
    %2743 = vmatprep.subr.mxu0 0.0
    %2744 = vmatpush1.msra.mxu0 0.0
    %2745 = vmatprep.subr.mxu0 0.0
    %2746 = vmatpush1.msra.mxu0 0.0
    %2747 = vmatprep.subr.mxu0 0.0
    %2748 = vmatpush1.msra.mxu0 0.0
    %2749 = vmatprep.subr.mxu0 0.0
    %2750 = vmatpush1.msra.mxu0 0.0
    %2751 = vmatprep.subr.mxu0 0.0
    %2752 = vmatpush1.msra.mxu0 0.0
    %2753 = vmatprep.subr.mxu0 0.0
    %2754 = vmatpush1.msra.mxu0 0.0
    %2755 = vmatprep.subr.mxu0 0.0
    %2756 = vmatpush1.msra.mxu0 0.0
    %2757 = vmatprep.subr.mxu0 0.0
    %2758 = vmatpush1.msra.mxu0 0.0
    %2759 = vmatprep.subr.mxu0 0.0
    %2760 = vmatpush1.msra.mxu0 0.0
    %2761 = vmatprep.mubr.f32.mxu0 0.0
    %2762 = vmatmul.mubr.f32.gmra.mrb[0].mxu0 %v2692
    %v2763 = vpop.f32.mrb[0].mxu0
    %v2764 = vadd.f32 0.0, %v2763
    %v2765 = vpop.f32.mrb[0].mxu0
    %2766 = vmatprep.mubr.f32.mxu0 0.0
    %2767 = vmatmul.mubr.f32.gmra.mrb[0].mxu0 %v2695
    %v2768 = vpop.f32.mrb[0].mxu0
    %v2769 = vadd.f32 0.0, %v2768
    %v2770 = vpop.f32.mrb[0].mxu0
    %2771 = vdwg.mxu0
    %v2773 = vsel %vm2296, %v2483, 0
    %v2776 = vsel %vm2296, %v2488, 0
    %2778 = vmatprep.subr.mxu0 0.0
    %2779 = vmatpush1.msra.mxu0 %v2284
    %2780 = vmatprep.subr.mxu0 0.0
    %2781 = vmatpush1.msra.mxu0 0.0
    %2782 = vmatprep.subr.mxu0 0.0
    %2783 = vmatpush1.msra.mxu0 0.0
    %2784 = vmatprep.subr.mxu0 0.0
    %2785 = vmatpush1.msra.mxu0 0.0
    %2786 = vmatprep.subr.mxu0 0.0
    %2787 = vmatpush1.msra.mxu0 0.0
    %2788 = vmatprep.subr.mxu0 0.0
    %2789 = vmatpush1.msra.mxu0 0.0
    %2790 = vmatprep.subr.mxu0 0.0
    %2791 = vmatpush1.msra.mxu0 0.0
    %2792 = vmatprep.subr.mxu0 0.0
    %2793 = vmatpush1.msra.mxu0 0.0
    %2794 = vmatprep.subr.mxu0 0.0
    %2795 = vmatpush1.msra.mxu0 0.0
    %2796 = vmatprep.subr.mxu0 0.0
    %2797 = vmatpush1.msra.mxu0 0.0
    %2798 = vmatprep.subr.mxu0 0.0
    %2799 = vmatpush1.msra.mxu0 0.0
    %2800 = vmatprep.subr.mxu0 0.0
    %2801 = vmatpush1.msra.mxu0 0.0
    %2802 = vmatprep.subr.mxu0 0.0
    %2803 = vmatpush1.msra.mxu0 0.0
    %2804 = vmatprep.subr.mxu0 0.0
    %2805 = vmatpush1.msra.mxu0 0.0
    %2806 = vmatprep.subr.mxu0 0.0
    %2807 = vmatpush1.msra.mxu0 0.0
    %2808 = vmatprep.subr.mxu0 0.0
    %2809 = vmatpush1.msra.mxu0 0.0
    %2810 = vmatprep.subr.mxu0 0.0
    %2811 = vmatpush1.msra.mxu0 0.0
    %2812 = vmatprep.subr.mxu0 0.0
    %2813 = vmatpush1.msra.mxu0 0.0
    %2814 = vmatprep.subr.mxu0 0.0
    %2815 = vmatpush1.msra.mxu0 0.0
    %2816 = vmatprep.subr.mxu0 0.0
    %2817 = vmatpush1.msra.mxu0 0.0
    %2818 = vmatprep.subr.mxu0 0.0
    %2819 = vmatpush1.msra.mxu0 0.0
    %2820 = vmatprep.subr.mxu0 0.0
    %2821 = vmatpush1.msra.mxu0 0.0
    %2822 = vmatprep.subr.mxu0 0.0
    %2823 = vmatpush1.msra.mxu0 0.0
    %2824 = vmatprep.subr.mxu0 0.0
    %2825 = vmatpush1.msra.mxu0 0.0
    %2826 = vmatprep.subr.mxu0 0.0
    %2827 = vmatpush1.msra.mxu0 0.0
    %2828 = vmatprep.subr.mxu0 0.0
    %2829 = vmatpush1.msra.mxu0 0.0
    %2830 = vmatprep.subr.mxu0 0.0
    %2831 = vmatpush1.msra.mxu0 0.0
    %2832 = vmatprep.subr.mxu0 0.0
    %2833 = vmatpush1.msra.mxu0 0.0
    %2834 = vmatprep.subr.mxu0 0.0
    %2835 = vmatpush1.msra.mxu0 0.0
    %2836 = vmatprep.subr.mxu0 0.0
    %2837 = vmatpush1.msra.mxu0 0.0
    %2838 = vmatprep.subr.mxu0 0.0
    %2839 = vmatpush1.msra.mxu0 0.0
    %2840 = vmatprep.subr.mxu0 0.0
    %2841 = vmatpush1.msra.mxu0 0.0
    %2842 = vmatprep.mubr.f32.mxu0 0.0
    %2843 = vmatmul.mubr.f32.gmra.mrb[0].mxu0 %v2773
    %v2844 = vpop.f32.mrb[0].mxu0
    %v2845 = vadd.f32 %v2764, %v2844
    %v2846 = vpop.f32.mrb[0].mxu0
    %2847 = vmatprep.mubr.f32.mxu0 0.0
    %2848 = vmatmul.mubr.f32.gmra.mrb[0].mxu0 %v2776
    %v2849 = vpop.f32.mrb[0].mxu0
    %v2850 = vadd.f32 %v2769, %v2849
    %v2851 = vpop.f32.mrb[0].mxu0
    %2852 = vdwg.mxu0
    %2853 = vrot.lane.b32.xlu0 %v2288, 112
    %v2854 = vpop.permute.xlu0 %2853
    %2855 = vrot.lane.b32.xlu0 %v2289, 112
    %v2856 = vpop.permute.xlu0 %2855
    %2857 = vrot.lane.b32.xlu0 %v2276, 80
    %v2858 = vpop.permute.xlu0 %2857
    %2859 = vrot.lane.b32.xlu0 %v2281, 80
    %v2860 = vpop.permute.xlu0 %2859
    %v2861 = vsel %vm2296, %v2854, 0
    %v2863 = vsel %vm2296, %v2856, 0
    %v2865 = vsel %vm2296, %v2858, 0
    %v2867 = vsel %vm2296, %v2860, 0
    %2869 = vmatprep.subr.mxu0 0.0
    %2870 = vmatpush1.xpose.msra.mxu0 %v2865
    %2871 = vmatprep.subr.mxu0 0.0
    %2872 = vmatpush1.xpose.msra.mxu0 %v2867
    %2873 = vmatprep.subr.mxu0 0.0
    %2874 = vmatpush1.xpose.msra.mxu0 0.0
    %2875 = vmatprep.subr.mxu0 0.0
    %2876 = vmatpush1.xpose.msra.mxu0 0.0
    %2877 = vmatprep.subr.mxu0 0.0
    %2878 = vmatpush1.xpose.msra.mxu0 0.0
    %2879 = vmatprep.subr.mxu0 0.0
    %2880 = vmatpush1.xpose.msra.mxu0 0.0
    %2881 = vmatprep.subr.mxu0 0.0
    %2882 = vmatpush1.xpose.msra.mxu0 0.0
    %2883 = vmatprep.subr.mxu0 0.0
    %2884 = vmatpush1.xpose.msra.mxu0 0.0
    %2885 = vmatprep.subr.mxu0 0.0
    %2886 = vmatpush1.xpose.msra.mxu0 0.0
    %2887 = vmatprep.subr.mxu0 0.0
    %2888 = vmatpush1.xpose.msra.mxu0 0.0
    %2889 = vmatprep.subr.mxu0 0.0
    %2890 = vmatpush1.xpose.msra.mxu0 0.0
    %2891 = vmatprep.subr.mxu0 0.0
    %2892 = vmatpush1.xpose.msra.mxu0 0.0
    %2893 = vmatprep.subr.mxu0 0.0
    %2894 = vmatpush1.xpose.msra.mxu0 0.0
    %2895 = vmatprep.subr.mxu0 0.0
    %2896 = vmatpush1.xpose.msra.mxu0 0.0
    %2897 = vmatprep.subr.mxu0 0.0
    %2898 = vmatpush1.xpose.msra.mxu0 0.0
    %2899 = vmatprep.subr.mxu0 0.0
    %2900 = vmatpush1.xpose.msra.mxu0 0.0
    %2901 = vmatprep.subr.mxu0 0.0
    %2902 = vmatpush1.xpose.msra.mxu0 0.0
    %2903 = vmatprep.subr.mxu0 0.0
    %2904 = vmatpush1.xpose.msra.mxu0 0.0
    %2905 = vmatprep.subr.mxu0 0.0
    %2906 = vmatpush1.xpose.msra.mxu0 0.0
    %2907 = vmatprep.subr.mxu0 0.0
    %2908 = vmatpush1.xpose.msra.mxu0 0.0
    %2909 = vmatprep.subr.mxu0 0.0
    %2910 = vmatpush1.xpose.msra.mxu0 0.0
    %2911 = vmatprep.subr.mxu0 0.0
    %2912 = vmatpush1.xpose.msra.mxu0 0.0
    %2913 = vmatprep.subr.mxu0 0.0
    %2914 = vmatpush1.xpose.msra.mxu0 0.0
    %2915 = vmatprep.subr.mxu0 0.0
    %2916 = vmatpush1.xpose.msra.mxu0 0.0
    %2917 = vmatprep.subr.mxu0 0.0
    %2918 = vmatpush1.xpose.msra.mxu0 0.0
    %2919 = vmatprep.subr.mxu0 0.0
    %2920 = vmatpush1.xpose.msra.mxu0 0.0
    %2921 = vmatprep.subr.mxu0 0.0
    %2922 = vmatpush1.xpose.msra.mxu0 0.0
    %2923 = vmatprep.subr.mxu0 0.0
    %2924 = vmatpush1.xpose.msra.mxu0 0.0
    %2925 = vmatprep.subr.mxu0 0.0
    %2926 = vmatpush1.xpose.msra.mxu0 0.0
    %2927 = vmatprep.subr.mxu0 0.0
    %2928 = vmatpush1.xpose.msra.mxu0 0.0
    %2929 = vmatprep.subr.mxu0 0.0
    %2930 = vmatpush1.xpose.msra.mxu0 0.0
    %2931 = vmatprep.subr.mxu0 0.0
    %2932 = vmatpush1.xpose.msra.mxu0 0.0
    %2933 = vmatprep.mubr.f32.mxu0 0.0
    %2934 = vmatmul.mubr.f32.gmra.mrb[0].mxu0 %v2861
    %v2935 = vpop.f32.mrb[0].mxu0
    %v2936 = vadd.f32 %v2192, %v2935
    %v2937 = vpop.f32.mrb[0].mxu0
    %2938 = vmatprep.mubr.f32.mxu0 0.0
    %2939 = vmatmul.mubr.f32.gmra.mrb[0].mxu0 %v2863
    %v2940 = vpop.f32.mrb[0].mxu0
    %v2941 = vadd.f32 %v2193, %v2940
    %v2942 = vpop.f32.mrb[0].mxu0
    %2943 = vdwg.mxu0
    %v2944 = vsel %vm790, %v2936, -inf
    %2945 = vmax.xlane.f32.xlu0 %v2944
    %v2946 = vpop.xlane.xlu0 %2945
    %v2947 = vsel %vm790, %v2941, -inf
    %2948 = vmax.xlane.f32.xlu0 %v2947
    %v2949 = vpop.xlane.xlu0 %2948
    %v2950 = vsub.f32 %v2936, %v2946
    %v2951 = vsub.f32 %v2941, %v2949
    %v2952 = vmul.f32 %v2950, 1.442695
    %v2953 = vpow.pop %v2952
    %v2954 = vmul.f32 %v2951, 1.442695
    %v2955 = vpow.pop %v2954
    %v2956 = vsel %vm790, %v2953, 0.0
    %2957 = vadd.xlane.f32.xlu0 %v2956
    %v2958 = vpop.xlane.xlu0 %2957
    %v2959 = vsel %vm790, %v2955, 0.0
    %2960 = vadd.xlane.f32.xlu0 %v2959
    %v2961 = vpop.xlane.xlu0 %2960
    %v2962 = vrcp.pop %v2958
    %v2963 = vrcp.pop %v2961
    %v2964 = vmul.f32 %v2953, %v2962
    %v2965 = vmul.f32 %v2955, %v2963
    %2966 = vrot.lane.b32.xlu0 %v2276, 48
    %v2967 = vpop.permute.xlu0 %2966
    %2968 = vrot.lane.b32.xlu0 %v2281, 48
    %v2969 = vpop.permute.xlu0 %2968
    %v2973 = vsel %vm790, %v2964, 0
    %v2976 = vsel %vm790, %v2965, 0
    %2978 = vmatprep.subr.mxu0 0.0
    %2979 = vmatpush1.msra.mxu0 %v2967
    %2980 = vmatprep.subr.mxu0 0.0
    %2981 = vmatpush1.msra.mxu0 %v2969
    %2982 = vmatprep.subr.mxu0 0.0
    %2983 = vmatpush1.msra.mxu0 0.0
    %2984 = vmatprep.subr.mxu0 0.0
    %2985 = vmatpush1.msra.mxu0 0.0
    %2986 = vmatprep.subr.mxu0 0.0
    %2987 = vmatpush1.msra.mxu0 0.0
    %2988 = vmatprep.subr.mxu0 0.0
    %2989 = vmatpush1.msra.mxu0 0.0
    %2990 = vmatprep.subr.mxu0 0.0
    %2991 = vmatpush1.msra.mxu0 0.0
    %2992 = vmatprep.subr.mxu0 0.0
    %2993 = vmatpush1.msra.mxu0 0.0
    %2994 = vmatprep.subr.mxu0 0.0
    %2995 = vmatpush1.msra.mxu0 0.0
    %2996 = vmatprep.subr.mxu0 0.0
    %2997 = vmatpush1.msra.mxu0 0.0
    %2998 = vmatprep.subr.mxu0 0.0
    %2999 = vmatpush1.msra.mxu0 0.0
    %3000 = vmatprep.subr.mxu0 0.0
    %3001 = vmatpush1.msra.mxu0 0.0
    %3002 = vmatprep.subr.mxu0 0.0
    %3003 = vmatpush1.msra.mxu0 0.0
    %3004 = vmatprep.subr.mxu0 0.0
    %3005 = vmatpush1.msra.mxu0 0.0
    %3006 = vmatprep.subr.mxu0 0.0
    %3007 = vmatpush1.msra.mxu0 0.0
    %3008 = vmatprep.subr.mxu0 0.0
    %3009 = vmatpush1.msra.mxu0 0.0
    %3010 = vmatprep.subr.mxu0 0.0
    %3011 = vmatpush1.msra.mxu0 0.0
    %3012 = vmatprep.subr.mxu0 0.0
    %3013 = vmatpush1.msra.mxu0 0.0
    %3014 = vmatprep.subr.mxu0 0.0
    %3015 = vmatpush1.msra.mxu0 0.0
    %3016 = vmatprep.subr.mxu0 0.0
    %3017 = vmatpush1.msra.mxu0 0.0
    %3018 = vmatprep.subr.mxu0 0.0
    %3019 = vmatpush1.msra.mxu0 0.0
    %3020 = vmatprep.subr.mxu0 0.0
    %3021 = vmatpush1.msra.mxu0 0.0
    %3022 = vmatprep.subr.mxu0 0.0
    %3023 = vmatpush1.msra.mxu0 0.0
    %3024 = vmatprep.subr.mxu0 0.0
    %3025 = vmatpush1.msra.mxu0 0.0
    %3026 = vmatprep.subr.mxu0 0.0
    %3027 = vmatpush1.msra.mxu0 0.0
    %3028 = vmatprep.subr.mxu0 0.0
    %3029 = vmatpush1.msra.mxu0 0.0
    %3030 = vmatprep.subr.mxu0 0.0
    %3031 = vmatpush1.msra.mxu0 0.0
    %3032 = vmatprep.subr.mxu0 0.0
    %3033 = vmatpush1.msra.mxu0 0.0
    %3034 = vmatprep.subr.mxu0 0.0
    %3035 = vmatpush1.msra.mxu0 0.0
    %3036 = vmatprep.subr.mxu0 0.0
    %3037 = vmatpush1.msra.mxu0 0.0
    %3038 = vmatprep.subr.mxu0 0.0
    %3039 = vmatpush1.msra.mxu0 0.0
    %3040 = vmatprep.subr.mxu0 0.0
    %3041 = vmatpush1.msra.mxu0 0.0
    %3042 = vmatprep.mubr.f32.mxu0 0.0
    %3043 = vmatmul.mubr.f32.gmra.mrb[0].mxu0 %v2973
    %v3044 = vpop.f32.mrb[0].mxu0
    %v3045 = vadd.f32 0.0, %v3044
    %v3046 = vpop.f32.mrb[0].mxu0
    %3047 = vmatprep.mubr.f32.mxu0 0.0
    %3048 = vmatmul.mubr.f32.gmra.mrb[0].mxu0 %v2976
    %v3049 = vpop.f32.mrb[0].mxu0
    %v3050 = vadd.f32 0.0, %v3049
    %v3051 = vpop.f32.mrb[0].mxu0
    %3052 = vdwg.mxu0
    %v3054 = vsel %vm2296, %v3045, 0
    %v3057 = vsel %vm2296, %v3050, 0
    %3059 = vmatprep.subr.mxu0 0.0
    %3060 = vmatpush1.msra.mxu0 %v2286
    %3061 = vmatprep.subr.mxu0 0.0
    %3062 = vmatpush1.msra.mxu0 0.0
    %3063 = vmatprep.subr.mxu0 0.0
    %3064 = vmatpush1.msra.mxu0 0.0
    %3065 = vmatprep.subr.mxu0 0.0
    %3066 = vmatpush1.msra.mxu0 0.0
    %3067 = vmatprep.subr.mxu0 0.0
    %3068 = vmatpush1.msra.mxu0 0.0
    %3069 = vmatprep.subr.mxu0 0.0
    %3070 = vmatpush1.msra.mxu0 0.0
    %3071 = vmatprep.subr.mxu0 0.0
    %3072 = vmatpush1.msra.mxu0 0.0
    %3073 = vmatprep.subr.mxu0 0.0
    %3074 = vmatpush1.msra.mxu0 0.0
    %3075 = vmatprep.subr.mxu0 0.0
    %3076 = vmatpush1.msra.mxu0 0.0
    %3077 = vmatprep.subr.mxu0 0.0
    %3078 = vmatpush1.msra.mxu0 0.0
    %3079 = vmatprep.subr.mxu0 0.0
    %3080 = vmatpush1.msra.mxu0 0.0
    %3081 = vmatprep.subr.mxu0 0.0
    %3082 = vmatpush1.msra.mxu0 0.0
    %3083 = vmatprep.subr.mxu0 0.0
    %3084 = vmatpush1.msra.mxu0 0.0
    %3085 = vmatprep.subr.mxu0 0.0
    %3086 = vmatpush1.msra.mxu0 0.0
    %3087 = vmatprep.subr.mxu0 0.0
    %3088 = vmatpush1.msra.mxu0 0.0
    %3089 = vmatprep.subr.mxu0 0.0
    %3090 = vmatpush1.msra.mxu0 0.0
    %3091 = vmatprep.subr.mxu0 0.0
    %3092 = vmatpush1.msra.mxu0 0.0
    %3093 = vmatprep.subr.mxu0 0.0
    %3094 = vmatpush1.msra.mxu0 0.0
    %3095 = vmatprep.subr.mxu0 0.0
    %3096 = vmatpush1.msra.mxu0 0.0
    %3097 = vmatprep.subr.mxu0 0.0
    %3098 = vmatpush1.msra.mxu0 0.0
    %3099 = vmatprep.subr.mxu0 0.0
    %3100 = vmatpush1.msra.mxu0 0.0
    %3101 = vmatprep.subr.mxu0 0.0
    %3102 = vmatpush1.msra.mxu0 0.0
    %3103 = vmatprep.subr.mxu0 0.0
    %3104 = vmatpush1.msra.mxu0 0.0
    %3105 = vmatprep.subr.mxu0 0.0
    %3106 = vmatpush1.msra.mxu0 0.0
    %3107 = vmatprep.subr.mxu0 0.0
    %3108 = vmatpush1.msra.mxu0 0.0
    %3109 = vmatprep.subr.mxu0 0.0
    %3110 = vmatpush1.msra.mxu0 0.0
    %3111 = vmatprep.subr.mxu0 0.0
    %3112 = vmatpush1.msra.mxu0 0.0
    %3113 = vmatprep.subr.mxu0 0.0
    %3114 = vmatpush1.msra.mxu0 0.0
    %3115 = vmatprep.subr.mxu0 0.0
    %3116 = vmatpush1.msra.mxu0 0.0
    %3117 = vmatprep.subr.mxu0 0.0
    %3118 = vmatpush1.msra.mxu0 0.0
    %3119 = vmatprep.subr.mxu0 0.0
    %3120 = vmatpush1.msra.mxu0 0.0
    %3121 = vmatprep.subr.mxu0 0.0
    %3122 = vmatpush1.msra.mxu0 0.0
    %3123 = vmatprep.mubr.f32.mxu0 0.0
    %3124 = vmatmul.mubr.f32.gmra.mrb[0].mxu0 %v3054
    %v3125 = vpop.f32.mrb[0].mxu0
    %v3126 = vadd.f32 0.0, %v3125
    %v3127 = vpop.f32.mrb[0].mxu0
    %3128 = vmatprep.mubr.f32.mxu0 0.0
    %3129 = vmatmul.mubr.f32.gmra.mrb[0].mxu0 %v3057
    %v3130 = vpop.f32.mrb[0].mxu0
    %v3131 = vadd.f32 0.0, %v3130
    %v3132 = vpop.f32.mrb[0].mxu0
    %3133 = vdwg.mxu0
    %v3134 = vadd.f32 %v2845, %v3126
    %v3135 = vadd.f32 %v2850, %v3131
    %3136 = vrot.lane.b32.xlu0 %v2288, 104
    %v3137 = vpop.permute.xlu0 %3136
    %3138 = vrot.lane.b32.xlu0 %v2289, 104
    %v3139 = vpop.permute.xlu0 %3138
    %3140 = vrot.lane.b32.xlu0 %v2276, 72
    %v3141 = vpop.permute.xlu0 %3140
    %3142 = vrot.lane.b32.xlu0 %v2281, 72
    %v3143 = vpop.permute.xlu0 %3142
    %v3144 = vsel %vm2296, %v3137, 0
    %v3146 = vsel %vm2296, %v3139, 0
    %v3148 = vsel %vm2296, %v3141, 0
    %v3150 = vsel %vm2296, %v3143, 0
    %3152 = vmatprep.subr.mxu0 0.0
    %3153 = vmatpush1.xpose.msra.mxu0 %v3148
    %3154 = vmatprep.subr.mxu0 0.0
    %3155 = vmatpush1.xpose.msra.mxu0 %v3150
    %3156 = vmatprep.subr.mxu0 0.0
    %3157 = vmatpush1.xpose.msra.mxu0 0.0
    %3158 = vmatprep.subr.mxu0 0.0
    %3159 = vmatpush1.xpose.msra.mxu0 0.0
    %3160 = vmatprep.subr.mxu0 0.0
    %3161 = vmatpush1.xpose.msra.mxu0 0.0
    %3162 = vmatprep.subr.mxu0 0.0
    %3163 = vmatpush1.xpose.msra.mxu0 0.0
    %3164 = vmatprep.subr.mxu0 0.0
    %3165 = vmatpush1.xpose.msra.mxu0 0.0
    %3166 = vmatprep.subr.mxu0 0.0
    %3167 = vmatpush1.xpose.msra.mxu0 0.0
    %3168 = vmatprep.subr.mxu0 0.0
    %3169 = vmatpush1.xpose.msra.mxu0 0.0
    %3170 = vmatprep.subr.mxu0 0.0
    %3171 = vmatpush1.xpose.msra.mxu0 0.0
    %3172 = vmatprep.subr.mxu0 0.0
    %3173 = vmatpush1.xpose.msra.mxu0 0.0
    %3174 = vmatprep.subr.mxu0 0.0
    %3175 = vmatpush1.xpose.msra.mxu0 0.0
    %3176 = vmatprep.subr.mxu0 0.0
    %3177 = vmatpush1.xpose.msra.mxu0 0.0
    %3178 = vmatprep.subr.mxu0 0.0
    %3179 = vmatpush1.xpose.msra.mxu0 0.0
    %3180 = vmatprep.subr.mxu0 0.0
    %3181 = vmatpush1.xpose.msra.mxu0 0.0
    %3182 = vmatprep.subr.mxu0 0.0
    %3183 = vmatpush1.xpose.msra.mxu0 0.0
    %3184 = vmatprep.subr.mxu0 0.0
    %3185 = vmatpush1.xpose.msra.mxu0 0.0
    %3186 = vmatprep.subr.mxu0 0.0
    %3187 = vmatpush1.xpose.msra.mxu0 0.0
    %3188 = vmatprep.subr.mxu0 0.0
    %3189 = vmatpush1.xpose.msra.mxu0 0.0
    %3190 = vmatprep.subr.mxu0 0.0
    %3191 = vmatpush1.xpose.msra.mxu0 0.0
    %3192 = vmatprep.subr.mxu0 0.0
    %3193 = vmatpush1.xpose.msra.mxu0 0.0
    %3194 = vmatprep.subr.mxu0 0.0
    %3195 = vmatpush1.xpose.msra.mxu0 0.0
    %3196 = vmatprep.subr.mxu0 0.0
    %3197 = vmatpush1.xpose.msra.mxu0 0.0
    %3198 = vmatprep.subr.mxu0 0.0
    %3199 = vmatpush1.xpose.msra.mxu0 0.0
    %3200 = vmatprep.subr.mxu0 0.0
    %3201 = vmatpush1.xpose.msra.mxu0 0.0
    %3202 = vmatprep.subr.mxu0 0.0
    %3203 = vmatpush1.xpose.msra.mxu0 0.0
    %3204 = vmatprep.subr.mxu0 0.0
    %3205 = vmatpush1.xpose.msra.mxu0 0.0
    %3206 = vmatprep.subr.mxu0 0.0
    %3207 = vmatpush1.xpose.msra.mxu0 0.0
    %3208 = vmatprep.subr.mxu0 0.0
    %3209 = vmatpush1.xpose.msra.mxu0 0.0
    %3210 = vmatprep.subr.mxu0 0.0
    %3211 = vmatpush1.xpose.msra.mxu0 0.0
    %3212 = vmatprep.subr.mxu0 0.0
    %3213 = vmatpush1.xpose.msra.mxu0 0.0
    %3214 = vmatprep.subr.mxu0 0.0
    %3215 = vmatpush1.xpose.msra.mxu0 0.0
    %3216 = vmatprep.mubr.f32.mxu0 0.0
    %3217 = vmatmul.mubr.f32.gmra.mrb[0].mxu0 %v3144
    %v3218 = vpop.f32.mrb[0].mxu0
    %v3219 = vadd.f32 %v2192, %v3218
    %v3220 = vpop.f32.mrb[0].mxu0
    %3221 = vmatprep.mubr.f32.mxu0 0.0
    %3222 = vmatmul.mubr.f32.gmra.mrb[0].mxu0 %v3146
    %v3223 = vpop.f32.mrb[0].mxu0
    %v3224 = vadd.f32 %v2193, %v3223
    %v3225 = vpop.f32.mrb[0].mxu0
    %3226 = vdwg.mxu0
    %v3227 = vsel %vm790, %v3219, -inf
    %3228 = vmax.xlane.f32.xlu0 %v3227
    %v3229 = vpop.xlane.xlu0 %3228
    %v3230 = vsel %vm790, %v3224, -inf
    %3231 = vmax.xlane.f32.xlu0 %v3230
    %v3232 = vpop.xlane.xlu0 %3231
    %v3233 = vsub.f32 %v3219, %v3229
    %v3234 = vsub.f32 %v3224, %v3232
    %v3235 = vmul.f32 %v3233, 1.442695
    %v3236 = vpow.pop %v3235
    %v3237 = vmul.f32 %v3234, 1.442695
    %v3238 = vpow.pop %v3237
    %v3239 = vsel %vm790, %v3236, 0.0
    %3240 = vadd.xlane.f32.xlu0 %v3239
    %v3241 = vpop.xlane.xlu0 %3240
    %v3242 = vsel %vm790, %v3238, 0.0
    %3243 = vadd.xlane.f32.xlu0 %v3242
    %v3244 = vpop.xlane.xlu0 %3243
    %v3245 = vrcp.pop %v3241
    %v3246 = vrcp.pop %v3244
    %v3247 = vmul.f32 %v3236, %v3245
    %v3248 = vmul.f32 %v3238, %v3246
    %3249 = vrot.lane.b32.xlu0 %v2276, 40
    %v3250 = vpop.permute.xlu0 %3249
    %3251 = vrot.lane.b32.xlu0 %v2281, 40
    %v3252 = vpop.permute.xlu0 %3251
    %v3256 = vsel %vm790, %v3247, 0
    %v3259 = vsel %vm790, %v3248, 0
    %3261 = vmatprep.subr.mxu0 0.0
    %3262 = vmatpush1.msra.mxu0 %v3250
    %3263 = vmatprep.subr.mxu0 0.0
    %3264 = vmatpush1.msra.mxu0 %v3252
    %3265 = vmatprep.subr.mxu0 0.0
    %3266 = vmatpush1.msra.mxu0 0.0
    %3267 = vmatprep.subr.mxu0 0.0
    %3268 = vmatpush1.msra.mxu0 0.0
    %3269 = vmatprep.subr.mxu0 0.0
    %3270 = vmatpush1.msra.mxu0 0.0
    %3271 = vmatprep.subr.mxu0 0.0
    %3272 = vmatpush1.msra.mxu0 0.0
    %3273 = vmatprep.subr.mxu0 0.0
    %3274 = vmatpush1.msra.mxu0 0.0
    %3275 = vmatprep.subr.mxu0 0.0
    %3276 = vmatpush1.msra.mxu0 0.0
    %3277 = vmatprep.subr.mxu0 0.0
    %3278 = vmatpush1.msra.mxu0 0.0
    %3279 = vmatprep.subr.mxu0 0.0
    %3280 = vmatpush1.msra.mxu0 0.0
    %3281 = vmatprep.subr.mxu0 0.0
    %3282 = vmatpush1.msra.mxu0 0.0
    %3283 = vmatprep.subr.mxu0 0.0
    %3284 = vmatpush1.msra.mxu0 0.0
    %3285 = vmatprep.subr.mxu0 0.0
    %3286 = vmatpush1.msra.mxu0 0.0
    %3287 = vmatprep.subr.mxu0 0.0
    %3288 = vmatpush1.msra.mxu0 0.0
    %3289 = vmatprep.subr.mxu0 0.0
    %3290 = vmatpush1.msra.mxu0 0.0
    %3291 = vmatprep.subr.mxu0 0.0
    %3292 = vmatpush1.msra.mxu0 0.0
    %3293 = vmatprep.subr.mxu0 0.0
    %3294 = vmatpush1.msra.mxu0 0.0
    %3295 = vmatprep.subr.mxu0 0.0
    %3296 = vmatpush1.msra.mxu0 0.0
    %3297 = vmatprep.subr.mxu0 0.0
    %3298 = vmatpush1.msra.mxu0 0.0
    %3299 = vmatprep.subr.mxu0 0.0
    %3300 = vmatpush1.msra.mxu0 0.0
    %3301 = vmatprep.subr.mxu0 0.0
    %3302 = vmatpush1.msra.mxu0 0.0
    %3303 = vmatprep.subr.mxu0 0.0
    %3304 = vmatpush1.msra.mxu0 0.0
    %3305 = vmatprep.subr.mxu0 0.0
    %3306 = vmatpush1.msra.mxu0 0.0
    %3307 = vmatprep.subr.mxu0 0.0
    %3308 = vmatpush1.msra.mxu0 0.0
    %3309 = vmatprep.subr.mxu0 0.0
    %3310 = vmatpush1.msra.mxu0 0.0
    %3311 = vmatprep.subr.mxu0 0.0
    %3312 = vmatpush1.msra.mxu0 0.0
    %3313 = vmatprep.subr.mxu0 0.0
    %3314 = vmatpush1.msra.mxu0 0.0
    %3315 = vmatprep.subr.mxu0 0.0
    %3316 = vmatpush1.msra.mxu0 0.0
    %3317 = vmatprep.subr.mxu0 0.0
    %3318 = vmatpush1.msra.mxu0 0.0
    %3319 = vmatprep.subr.mxu0 0.0
    %3320 = vmatpush1.msra.mxu0 0.0
    %3321 = vmatprep.subr.mxu0 0.0
    %3322 = vmatpush1.msra.mxu0 0.0
    %3323 = vmatprep.subr.mxu0 0.0
    %3324 = vmatpush1.msra.mxu0 0.0
    %3325 = vmatprep.mubr.f32.mxu0 0.0
    %3326 = vmatmul.mubr.f32.gmra.mrb[0].mxu0 %v3256
    %v3327 = vpop.f32.mrb[0].mxu0
    %v3328 = vadd.f32 0.0, %v3327
    %v3329 = vpop.f32.mrb[0].mxu0
    %3330 = vmatprep.mubr.f32.mxu0 0.0
    %3331 = vmatmul.mubr.f32.gmra.mrb[0].mxu0 %v3259
    %v3332 = vpop.f32.mrb[0].mxu0
    %v3333 = vadd.f32 0.0, %v3332
    %v3334 = vpop.f32.mrb[0].mxu0
    %3335 = vdwg.mxu0
    %v3337 = vsel %vm2296, %v3328, 0
    %v3340 = vsel %vm2296, %v3333, 0
    %3342 = vmatprep.subr.mxu0 0.0
    %3343 = vmatpush1.msra.mxu0 %v2287
    %3344 = vmatprep.subr.mxu0 0.0
    %3345 = vmatpush1.msra.mxu0 0.0
    %3346 = vmatprep.subr.mxu0 0.0
    %3347 = vmatpush1.msra.mxu0 0.0
    %3348 = vmatprep.subr.mxu0 0.0
    %3349 = vmatpush1.msra.mxu0 0.0
    %3350 = vmatprep.subr.mxu0 0.0
    %3351 = vmatpush1.msra.mxu0 0.0
    %3352 = vmatprep.subr.mxu0 0.0
    %3353 = vmatpush1.msra.mxu0 0.0
    %3354 = vmatprep.subr.mxu0 0.0
    %3355 = vmatpush1.msra.mxu0 0.0
    %3356 = vmatprep.subr.mxu0 0.0
    %3357 = vmatpush1.msra.mxu0 0.0
    %3358 = vmatprep.subr.mxu0 0.0
    %3359 = vmatpush1.msra.mxu0 0.0
    %3360 = vmatprep.subr.mxu0 0.0
    %3361 = vmatpush1.msra.mxu0 0.0
    %3362 = vmatprep.subr.mxu0 0.0
    %3363 = vmatpush1.msra.mxu0 0.0
    %3364 = vmatprep.subr.mxu0 0.0
    %3365 = vmatpush1.msra.mxu0 0.0
    %3366 = vmatprep.subr.mxu0 0.0
    %3367 = vmatpush1.msra.mxu0 0.0
    %3368 = vmatprep.subr.mxu0 0.0
    %3369 = vmatpush1.msra.mxu0 0.0
    %3370 = vmatprep.subr.mxu0 0.0
    %3371 = vmatpush1.msra.mxu0 0.0
    %3372 = vmatprep.subr.mxu0 0.0
    %3373 = vmatpush1.msra.mxu0 0.0
    %3374 = vmatprep.subr.mxu0 0.0
    %3375 = vmatpush1.msra.mxu0 0.0
    %3376 = vmatprep.subr.mxu0 0.0
    %3377 = vmatpush1.msra.mxu0 0.0
    %3378 = vmatprep.subr.mxu0 0.0
    %3379 = vmatpush1.msra.mxu0 0.0
    %3380 = vmatprep.subr.mxu0 0.0
    %3381 = vmatpush1.msra.mxu0 0.0
    %3382 = vmatprep.subr.mxu0 0.0
    %3383 = vmatpush1.msra.mxu0 0.0
    %3384 = vmatprep.subr.mxu0 0.0
    %3385 = vmatpush1.msra.mxu0 0.0
    %3386 = vmatprep.subr.mxu0 0.0
    %3387 = vmatpush1.msra.mxu0 0.0
    %3388 = vmatprep.subr.mxu0 0.0
    %3389 = vmatpush1.msra.mxu0 0.0
    %3390 = vmatprep.subr.mxu0 0.0
    %3391 = vmatpush1.msra.mxu0 0.0
    %3392 = vmatprep.subr.mxu0 0.0
    %3393 = vmatpush1.msra.mxu0 0.0
    %3394 = vmatprep.subr.mxu0 0.0
    %3395 = vmatpush1.msra.mxu0 0.0
    %3396 = vmatprep.subr.mxu0 0.0
    %3397 = vmatpush1.msra.mxu0 0.0
    %3398 = vmatprep.subr.mxu0 0.0
    %3399 = vmatpush1.msra.mxu0 0.0
    %3400 = vmatprep.subr.mxu0 0.0
    %3401 = vmatpush1.msra.mxu0 0.0
    %3402 = vmatprep.subr.mxu0 0.0
    %3403 = vmatpush1.msra.mxu0 0.0
    %3404 = vmatprep.subr.mxu0 0.0
    %3405 = vmatpush1.msra.mxu0 0.0
    %3406 = vmatprep.mubr.f32.mxu0 0.0
    %3407 = vmatmul.mubr.f32.gmra.mrb[0].mxu0 %v3337
    %v3408 = vpop.f32.mrb[0].mxu0
    %v3409 = vadd.f32 0.0, %v3408
    %v3410 = vpop.f32.mrb[0].mxu0
    %3411 = vmatprep.mubr.f32.mxu0 0.0
    %3412 = vmatmul.mubr.f32.gmra.mrb[0].mxu0 %v3340
    %v3413 = vpop.f32.mrb[0].mxu0
    %v3414 = vadd.f32 0.0, %v3413
    %v3415 = vpop.f32.mrb[0].mxu0
    %3416 = vdwg.mxu0
    %v3417 = vadd.f32 %v3134, %v3409
    %v3418 = vadd.f32 %v3135, %v3414
    %v3419 = vld [vmem:[%s15 + $0x9] sm:$0x1]
    %v3420 = vlaneseq
    %v3421 = vshrl.u32 %v3420, 7
    %v3422 = vsub.s32 0, %v3421
    %v3423 = vrot.slane %v3419, %v3422
    %v3424 = vadd.f32 %v3417, %v3423
    %v3425 = vadd.f32 %v3418, %v3423
    %v3426 = vadd.f32 %v2190, %v3424
    %v3427 = vadd.f32 %v2191, %v3425
    %v3428 = vld [vmem:[%s15 + $0xa] sm:$0x1]
    %v3429 = vld [vmem:[%s15 + $0xb] sm:$0x1]
    %v3430 = vsel %vm1313, %v3426, 0.0
    %3431 = vadd.xlane.f32.xlu0 %v3430
    %v3432 = vpop.xlane.xlu0 %3431
    %v3433 = vsel %vm1313, %v3427, 0.0
    %3434 = vadd.xlane.f32.xlu0 %v3433
    %v3435 = vpop.xlane.xlu0 %3434
    %v3436 = vmul.f32 %v3432, %v1320
    %v3437 = vmul.f32 %v3435, %v1320
    %v3438 = vsub.f32 %v3426, %v3436
    %v3439 = vsub.f32 %v3427, %v3437
    %v3440 = vmul.f32 %v3438, %v3438
    %v3441 = vmul.f32 %v3439, %v3439
    %v3442 = vsel %vm1313, %v3440, 0.0
    %3443 = vadd.xlane.f32.xlu0 %v3442
    %v3444 = vpop.xlane.xlu0 %3443
    %v3445 = vsel %vm1313, %v3441, 0.0
    %3446 = vadd.xlane.f32.xlu0 %v3445
    %v3447 = vpop.xlane.xlu0 %3446
    %v3448 = vmul.f32 %v3444, %v1320
    %v3449 = vmul.f32 %v3447, %v1320
    %v3450 = vadd.f32 %v3448, 1e-05
    %v3451 = vadd.f32 %v3449, 1e-05
    %v3452 = vrsqrt.pop %v3450
    %v3453 = vrsqrt.pop %v3451
    %v3454 = vmul.f32 %v3438, %v3452
    %v3455 = vmul.f32 %v3439, %v3453
    %v3456 = vlaneseq
    %v3457 = vshrl.u32 %v3456, 7
    %v3458 = vsub.s32 0, %v3457
    %v3459 = vrot.slane %v3428, %v3458
    %v3460 = vmul.f32 %v3454, %v3459
    %v3461 = vmul.f32 %v3455, %v3459
    %v3462 = vlaneseq
    %v3463 = vshrl.u32 %v3462, 7
    %v3464 = vsub.s32 0, %v3463
    %v3465 = vrot.slane %v3429, %v3464
    %v3466 = vadd.f32 %v3460, %v3465
    %v3467 = vadd.f32 %v3461, %v3465
    %v3468 = vld [vmem:[%s12] sm:$0xff]
    %v3469 = vld [vmem:[%s12 + $0x8] sm:$0xff]
    %v3470 = vld [vmem:[%s12 + $0x10] sm:$0xff]
    %v3471 = vld [vmem:[%s12 + $0x18] sm:$0xff]
    %v3472 = vld [vmem:[%s15 + $0xc] sm:$0x1]
    %v3473 = vlaneseq
    %v3474 = vshrl.u32 %v3473, 7
    %v3475 = vsub.s32 0, %v3474
    %v3476 = vrot.slane %v3472, %v3475
    %v3478 = vsel %vm1313, %v3466, 0
    %v3481 = vsel %vm1313, %v3467, 0
    %3483 = vmatprep.subr.mxu0 0.0
    %3484 = vmatpush1.msra.mxu0 %v3468
    %3485 = vmatprep.subr.mxu0 0.0
    %3486 = vmatpush1.msra.mxu0 %v3469
    %3487 = vmatprep.subr.mxu0 0.0
    %3488 = vmatpush1.msra.mxu0 %v3470
    %3489 = vmatprep.subr.mxu0 0.0
    %3490 = vmatpush1.msra.mxu0 %v3471
    %3491 = vmatprep.subr.mxu0 0.0
    %3492 = vmatpush1.msra.mxu0 0.0
    %3493 = vmatprep.subr.mxu0 0.0
    %3494 = vmatpush1.msra.mxu0 0.0
    %3495 = vmatprep.subr.mxu0 0.0
    %3496 = vmatpush1.msra.mxu0 0.0
    %3497 = vmatprep.subr.mxu0 0.0
    %3498 = vmatpush1.msra.mxu0 0.0
    %3499 = vmatprep.subr.mxu0 0.0
    %3500 = vmatpush1.msra.mxu0 0.0
    %3501 = vmatprep.subr.mxu0 0.0
    %3502 = vmatpush1.msra.mxu0 0.0
    %3503 = vmatprep.subr.mxu0 0.0
    %3504 = vmatpush1.msra.mxu0 0.0
    %3505 = vmatprep.subr.mxu0 0.0
    %3506 = vmatpush1.msra.mxu0 0.0
    %3507 = vmatprep.subr.mxu0 0.0
    %3508 = vmatpush1.msra.mxu0 0.0
    %3509 = vmatprep.subr.mxu0 0.0
    %3510 = vmatpush1.msra.mxu0 0.0
    %3511 = vmatprep.subr.mxu0 0.0
    %3512 = vmatpush1.msra.mxu0 0.0
    %3513 = vmatprep.subr.mxu0 0.0
    %3514 = vmatpush1.msra.mxu0 0.0
    %3515 = vmatprep.subr.mxu0 0.0
    %3516 = vmatpush1.msra.mxu0 0.0
    %3517 = vmatprep.subr.mxu0 0.0
    %3518 = vmatpush1.msra.mxu0 0.0
    %3519 = vmatprep.subr.mxu0 0.0
    %3520 = vmatpush1.msra.mxu0 0.0
    %3521 = vmatprep.subr.mxu0 0.0
    %3522 = vmatpush1.msra.mxu0 0.0
    %3523 = vmatprep.subr.mxu0 0.0
    %3524 = vmatpush1.msra.mxu0 0.0
    %3525 = vmatprep.subr.mxu0 0.0
    %3526 = vmatpush1.msra.mxu0 0.0
    %3527 = vmatprep.subr.mxu0 0.0
    %3528 = vmatpush1.msra.mxu0 0.0
    %3529 = vmatprep.subr.mxu0 0.0
    %3530 = vmatpush1.msra.mxu0 0.0
    %3531 = vmatprep.subr.mxu0 0.0
    %3532 = vmatpush1.msra.mxu0 0.0
    %3533 = vmatprep.subr.mxu0 0.0
    %3534 = vmatpush1.msra.mxu0 0.0
    %3535 = vmatprep.subr.mxu0 0.0
    %3536 = vmatpush1.msra.mxu0 0.0
    %3537 = vmatprep.subr.mxu0 0.0
    %3538 = vmatpush1.msra.mxu0 0.0
    %3539 = vmatprep.subr.mxu0 0.0
    %3540 = vmatpush1.msra.mxu0 0.0
    %3541 = vmatprep.subr.mxu0 0.0
    %3542 = vmatpush1.msra.mxu0 0.0
    %3543 = vmatprep.subr.mxu0 0.0
    %3544 = vmatpush1.msra.mxu0 0.0
    %3545 = vmatprep.subr.mxu0 0.0
    %3546 = vmatpush1.msra.mxu0 0.0
    %3547 = vmatprep.mubr.f32.mxu0 0.0
    %3548 = vmatmul.mubr.f32.gmra.mrb[0].mxu0 %v3478
    %v3549 = vpop.f32.mrb[0].mxu0
    %v3550 = vadd.f32 %v3476, %v3549
    %v3551 = vpop.f32.mrb[0].mxu0
    %3552 = vmatprep.mubr.f32.mxu0 0.0
    %3553 = vmatmul.mubr.f32.gmra.mrb[0].mxu0 %v3481
    %v3554 = vpop.f32.mrb[0].mxu0
    %v3555 = vadd.f32 %v3476, %v3554
    %v3556 = vpop.f32.mrb[0].mxu0
    %3557 = vdwg.mxu0
    %v3558 = vmul.f32 %v3550, 0.5
    %v3559 = vmul.f32 %v3555, 0.5
    %v3560 = vmul.f32 %v3550, 0.044715
    %v3561 = vmul.f32 %v3555, 0.044715
    %v3562 = vmul.f32 %v3560, %v3550
    %v3563 = vmul.f32 %v3561, %v3555
    %v3564 = vmul.f32 %v3562, %v3550
    %v3565 = vmul.f32 %v3563, %v3555
    %v3566 = vadd.f32 %v3550, %v3564
    %v3567 = vadd.f32 %v3555, %v3565
    %v3568 = vmul.f32 %v3566, 0.7978846
    %v3569 = vmul.f32 %v3567, 0.7978846
    %v3570 = vtanh.pop %v3568
    %v3571 = vtanh.pop %v3569
    %v3572 = vadd.f32 %v3570, 1.0
    %v3573 = vadd.f32 %v3571, 1.0
    %v3574 = vmul.f32 %v3558, %v3572
    %v3575 = vmul.f32 %v3559, %v3573
    %v3576 = vld [vmem:[%s13] sm:$0xff]
    %v3577 = vld [vmem:[%s13 + $0x8] sm:$0xff]
    %v3578 = vld [vmem:[%s13 + $0x10] sm:$0xff]
    %v3579 = vld [vmem:[%s13 + $0x18] sm:$0xff]
    %v3580 = vld [vmem:[%s13 + $0x20] sm:$0xff]
    %v3581 = vld [vmem:[%s13 + $0x28] sm:$0xff]
    %v3582 = vld [vmem:[%s13 + $0x30] sm:$0xff]
    %v3583 = vld [vmem:[%s13 + $0x38] sm:$0xff]
    %v3584 = vld [vmem:[%s15 + $0xd] sm:$0x1]
    %v3585 = vlaneseq
    %v3586 = vshrl.u32 %v3585, 7
    %v3587 = vsub.s32 0, %v3586
    %v3588 = vrot.slane %v3584, %v3587
    %vm3589 = vcmask 523264
    %v3591 = vsel %vm3589, %v3574, 0
    %v3594 = vsel %vm3589, %v3575, 0
    %3596 = vmatprep.subr.mxu0 0.0
    %3597 = vmatpush1.msra.mxu0 %v3576
    %3598 = vmatprep.subr.mxu0 0.0
    %3599 = vmatpush1.msra.mxu0 %v3577
    %3600 = vmatprep.subr.mxu0 0.0
    %3601 = vmatpush1.msra.mxu0 %v3578
    %3602 = vmatprep.subr.mxu0 0.0
    %3603 = vmatpush1.msra.mxu0 %v3579
    %3604 = vmatprep.subr.mxu0 0.0
    %3605 = vmatpush1.msra.mxu0 %v3580
    %3606 = vmatprep.subr.mxu0 0.0
    %3607 = vmatpush1.msra.mxu0 %v3581
    %3608 = vmatprep.subr.mxu0 0.0
    %3609 = vmatpush1.msra.mxu0 %v3582
    %3610 = vmatprep.subr.mxu0 0.0
    %3611 = vmatpush1.msra.mxu0 %v3583
    %3612 = vmatprep.subr.mxu0 0.0
    %3613 = vmatpush1.msra.mxu0 0.0
    %3614 = vmatprep.subr.mxu0 0.0
    %3615 = vmatpush1.msra.mxu0 0.0
    %3616 = vmatprep.subr.mxu0 0.0
    %3617 = vmatpush1.msra.mxu0 0.0
    %3618 = vmatprep.subr.mxu0 0.0
    %3619 = vmatpush1.msra.mxu0 0.0
    %3620 = vmatprep.subr.mxu0 0.0
    %3621 = vmatpush1.msra.mxu0 0.0
    %3622 = vmatprep.subr.mxu0 0.0
    %3623 = vmatpush1.msra.mxu0 0.0
    %3624 = vmatprep.subr.mxu0 0.0
    %3625 = vmatpush1.msra.mxu0 0.0
    %3626 = vmatprep.subr.mxu0 0.0
    %3627 = vmatpush1.msra.mxu0 0.0
    %3628 = vmatprep.subr.mxu0 0.0
    %3629 = vmatpush1.msra.mxu0 0.0
    %3630 = vmatprep.subr.mxu0 0.0
    %3631 = vmatpush1.msra.mxu0 0.0
    %3632 = vmatprep.subr.mxu0 0.0
    %3633 = vmatpush1.msra.mxu0 0.0
    %3634 = vmatprep.subr.mxu0 0.0
    %3635 = vmatpush1.msra.mxu0 0.0
    %3636 = vmatprep.subr.mxu0 0.0
    %3637 = vmatpush1.msra.mxu0 0.0
    %3638 = vmatprep.subr.mxu0 0.0
    %3639 = vmatpush1.msra.mxu0 0.0
    %3640 = vmatprep.subr.mxu0 0.0
    %3641 = vmatpush1.msra.mxu0 0.0
    %3642 = vmatprep.subr.mxu0 0.0
    %3643 = vmatpush1.msra.mxu0 0.0
    %3644 = vmatprep.subr.mxu0 0.0
    %3645 = vmatpush1.msra.mxu0 0.0
    %3646 = vmatprep.subr.mxu0 0.0
    %3647 = vmatpush1.msra.mxu0 0.0
    %3648 = vmatprep.subr.mxu0 0.0
    %3649 = vmatpush1.msra.mxu0 0.0
    %3650 = vmatprep.subr.mxu0 0.0
    %3651 = vmatpush1.msra.mxu0 0.0
    %3652 = vmatprep.subr.mxu0 0.0
    %3653 = vmatpush1.msra.mxu0 0.0
    %3654 = vmatprep.subr.mxu0 0.0
    %3655 = vmatpush1.msra.mxu0 0.0
    %3656 = vmatprep.subr.mxu0 0.0
    %3657 = vmatpush1.msra.mxu0 0.0
    %3658 = vmatprep.subr.mxu0 0.0
    %3659 = vmatpush1.msra.mxu0 0.0
    %3660 = vmatprep.mubr.f32.mxu0 0.0
    %3661 = vmatmul.mubr.f32.gmra.mrb[0].mxu0 %v3591
    %v3662 = vpop.f32.mrb[0].mxu0
    %v3663 = vadd.f32 %v3588, %v3662
    %v3664 = vpop.f32.mrb[0].mxu0
    %3665 = vmatprep.mubr.f32.mxu0 0.0
    %3666 = vmatmul.mubr.f32.gmra.mrb[0].mxu0 %v3594
    %v3667 = vpop.f32.mrb[0].mxu0
    %v3668 = vadd.f32 %v3588, %v3667
    %v3669 = vpop.f32.mrb[0].mxu0
    %3670 = vdwg.mxu0
    %v3671 = vadd.f32 %v3466, %v3663
    %v3672 = vadd.f32 %v3467, %v3668
    %v3673 = vld [vmem:[%s15 + $0xe] sm:$0x1]
    %v3674 = vld [vmem:[%s15 + $0xf] sm:$0x1]
    %v3675 = vsel %vm1313, %v3671, 0.0
    %3676 = vadd.xlane.f32.xlu0 %v3675
    %v3677 = vpop.xlane.xlu0 %3676
    %v3678 = vsel %vm1313, %v3672, 0.0
    %3679 = vadd.xlane.f32.xlu0 %v3678
    %v3680 = vpop.xlane.xlu0 %3679
    %v3681 = vmul.f32 %v3677, %v1320
    %v3682 = vmul.f32 %v3680, %v1320
    %v3683 = vsub.f32 %v3671, %v3681
    %v3684 = vsub.f32 %v3672, %v3682
    %v3685 = vmul.f32 %v3683, %v3683
    %v3686 = vmul.f32 %v3684, %v3684
    %v3687 = vsel %vm1313, %v3685, 0.0
    %3688 = vadd.xlane.f32.xlu0 %v3687
    %v3689 = vpop.xlane.xlu0 %3688
    %v3690 = vsel %vm1313, %v3686, 0.0
    %3691 = vadd.xlane.f32.xlu0 %v3690
    %v3692 = vpop.xlane.xlu0 %3691
    %v3693 = vmul.f32 %v3689, %v1320
    %v3694 = vmul.f32 %v3692, %v1320
    %v3695 = vadd.f32 %v3693, 1e-05
    %v3696 = vadd.f32 %v3694, 1e-05
    %v3697 = vrsqrt.pop %v3695
    %v3698 = vrsqrt.pop %v3696
    %v3699 = vmul.f32 %v3683, %v3697
    %v3700 = vmul.f32 %v3684, %v3698
    %v3701 = vlaneseq
    %v3702 = vshrl.u32 %v3701, 7
    %v3703 = vsub.s32 0, %v3702
    %v3704 = vrot.slane %v3673, %v3703
    %v3705 = vmul.f32 %v3699, %v3704
    %v3706 = vmul.f32 %v3700, %v3704
    %v3707 = vlaneseq
    %v3708 = vshrl.u32 %v3707, 7
    %v3709 = vsub.s32 0, %v3708
    %v3710 = vrot.slane %v3674, %v3709
    %v3711 = vadd.f32 %v3705, %v3710
    %v3712 = vadd.f32 %v3706, %v3710
    %s3713 = scalar_lea.vmem %s10, 32
    %v3714 = vld [vmem:[%s3713] sm:$0xff]
    %v3715 = vld [vmem:[%s3713 + $0x8] sm:$0xff]
    %v3716 = vld [vmem:[%s3713 + $0x10] sm:$0xff]
    %v3717 = vld [vmem:[%s3713 + $0x18] sm:$0xff]
    %v3718 = vld [vmem:[%s15 + $0x10] sm:$0x1]
    %v3719 = vlaneseq
    %v3720 = vshrl.u32 %v3719, 7
    %v3721 = vsub.s32 0, %v3720
    %v3722 = vrot.slane %v3718, %v3721
    %v3724 = vsel %vm1313, %v3711, 0
    %v3727 = vsel %vm1313, %v3712, 0
    %3729 = vmatprep.subr.mxu0 0.0
    %3730 = vmatpush1.msra.mxu0 %v3714
    %3731 = vmatprep.subr.mxu0 0.0
    %3732 = vmatpush1.msra.mxu0 %v3715
    %3733 = vmatprep.subr.mxu0 0.0
    %3734 = vmatpush1.msra.mxu0 %v3716
    %3735 = vmatprep.subr.mxu0 0.0
    %3736 = vmatpush1.msra.mxu0 %v3717
    %3737 = vmatprep.subr.mxu0 0.0
    %3738 = vmatpush1.msra.mxu0 0.0
    %3739 = vmatprep.subr.mxu0 0.0
    %3740 = vmatpush1.msra.mxu0 0.0
    %3741 = vmatprep.subr.mxu0 0.0
    %3742 = vmatpush1.msra.mxu0 0.0
    %3743 = vmatprep.subr.mxu0 0.0
    %3744 = vmatpush1.msra.mxu0 0.0
    %3745 = vmatprep.subr.mxu0 0.0
    %3746 = vmatpush1.msra.mxu0 0.0
    %3747 = vmatprep.subr.mxu0 0.0
    %3748 = vmatpush1.msra.mxu0 0.0
    %3749 = vmatprep.subr.mxu0 0.0
    %3750 = vmatpush1.msra.mxu0 0.0
    %3751 = vmatprep.subr.mxu0 0.0
    %3752 = vmatpush1.msra.mxu0 0.0
    %3753 = vmatprep.subr.mxu0 0.0
    %3754 = vmatpush1.msra.mxu0 0.0
    %3755 = vmatprep.subr.mxu0 0.0
    %3756 = vmatpush1.msra.mxu0 0.0
    %3757 = vmatprep.subr.mxu0 0.0
    %3758 = vmatpush1.msra.mxu0 0.0
    %3759 = vmatprep.subr.mxu0 0.0
    %3760 = vmatpush1.msra.mxu0 0.0
    %3761 = vmatprep.subr.mxu0 0.0
    %3762 = vmatpush1.msra.mxu0 0.0
    %3763 = vmatprep.subr.mxu0 0.0
    %3764 = vmatpush1.msra.mxu0 0.0
    %3765 = vmatprep.subr.mxu0 0.0
    %3766 = vmatpush1.msra.mxu0 0.0
    %3767 = vmatprep.subr.mxu0 0.0
    %3768 = vmatpush1.msra.mxu0 0.0
    %3769 = vmatprep.subr.mxu0 0.0
    %3770 = vmatpush1.msra.mxu0 0.0
    %3771 = vmatprep.subr.mxu0 0.0
    %3772 = vmatpush1.msra.mxu0 0.0
    %3773 = vmatprep.subr.mxu0 0.0
    %3774 = vmatpush1.msra.mxu0 0.0
    %3775 = vmatprep.subr.mxu0 0.0
    %3776 = vmatpush1.msra.mxu0 0.0
    %3777 = vmatprep.subr.mxu0 0.0
    %3778 = vmatpush1.msra.mxu0 0.0
    %3779 = vmatprep.subr.mxu0 0.0
    %3780 = vmatpush1.msra.mxu0 0.0
    %3781 = vmatprep.subr.mxu0 0.0
    %3782 = vmatpush1.msra.mxu0 0.0
    %3783 = vmatprep.subr.mxu0 0.0
    %3784 = vmatpush1.msra.mxu0 0.0
    %3785 = vmatprep.subr.mxu0 0.0
    %3786 = vmatpush1.msra.mxu0 0.0
    %3787 = vmatprep.subr.mxu0 0.0
    %3788 = vmatpush1.msra.mxu0 0.0
    %3789 = vmatprep.subr.mxu0 0.0
    %3790 = vmatpush1.msra.mxu0 0.0
    %3791 = vmatprep.subr.mxu0 0.0
    %3792 = vmatpush1.msra.mxu0 0.0
    %3793 = vmatprep.mubr.f32.mxu0 0.0
    %3794 = vmatmul.mubr.f32.gmra.mrb[0].mxu0 %v3724
    %v3795 = vpop.f32.mrb[0].mxu0
    %v3796 = vadd.f32 %v3722, %v3795
    %v3797 = vpop.f32.mrb[0].mxu0
    %3798 = vmatprep.mubr.f32.mxu0 0.0
    %3799 = vmatmul.mubr.f32.gmra.mrb[0].mxu0 %v3727
    %v3800 = vpop.f32.mrb[0].mxu0
    %v3801 = vadd.f32 %v3722, %v3800
    %v3802 = vpop.f32.mrb[0].mxu0
    %3803 = vdwg.mxu0
    %s3804 = scalar_lea.vmem %s11, 32
    %v3805 = vld [vmem:[%s3804] sm:$0xff]
    %v3806 = vld [vmem:[%s3804 + $0x8] sm:$0xff]
    %v3807 = vld [vmem:[%s3804 + $0x10] sm:$0xff]
    %v3808 = vld [vmem:[%s3804 + $0x18] sm:$0xff]
    %v3809 = vmul.f32 %v3796, 0.35355338
    %v3810 = vmul.f32 %v3801, 0.35355338
    %3813 = vrot.lane.b32.xlu0 %v3796, 96
    %v3814 = vpop.permute.xlu0 %3813
    %3815 = vrot.lane.b32.xlu0 %v3801, 96
    %v3816 = vpop.permute.xlu0 %3815
    %v3818 = vsel %vm2296, %v3809, 0
    %v3821 = vsel %vm2296, %v3810, 0
    %v3823 = vsel %vm2296, %v3814, 0
    %v3825 = vsel %vm2296, %v3816, 0
    %3827 = vmatprep.subr.mxu0 0.0
    %3828 = vmatpush1.xpose.msra.mxu0 %v3823
    %3829 = vmatprep.subr.mxu0 0.0
    %3830 = vmatpush1.xpose.msra.mxu0 %v3825
    %3831 = vmatprep.subr.mxu0 0.0
    %3832 = vmatpush1.xpose.msra.mxu0 0.0
    %3833 = vmatprep.subr.mxu0 0.0
    %3834 = vmatpush1.xpose.msra.mxu0 0.0
    %3835 = vmatprep.subr.mxu0 0.0
    %3836 = vmatpush1.xpose.msra.mxu0 0.0
    %3837 = vmatprep.subr.mxu0 0.0
    %3838 = vmatpush1.xpose.msra.mxu0 0.0
    %3839 = vmatprep.subr.mxu0 0.0
    %3840 = vmatpush1.xpose.msra.mxu0 0.0
    %3841 = vmatprep.subr.mxu0 0.0
    %3842 = vmatpush1.xpose.msra.mxu0 0.0
    %3843 = vmatprep.subr.mxu0 0.0
    %3844 = vmatpush1.xpose.msra.mxu0 0.0
    %3845 = vmatprep.subr.mxu0 0.0
    %3846 = vmatpush1.xpose.msra.mxu0 0.0
    %3847 = vmatprep.subr.mxu0 0.0
    %3848 = vmatpush1.xpose.msra.mxu0 0.0
    %3849 = vmatprep.subr.mxu0 0.0
    %3850 = vmatpush1.xpose.msra.mxu0 0.0
    %3851 = vmatprep.subr.mxu0 0.0
    %3852 = vmatpush1.xpose.msra.mxu0 0.0
    %3853 = vmatprep.subr.mxu0 0.0
    %3854 = vmatpush1.xpose.msra.mxu0 0.0
    %3855 = vmatprep.subr.mxu0 0.0
    %3856 = vmatpush1.xpose.msra.mxu0 0.0
    %3857 = vmatprep.subr.mxu0 0.0
    %3858 = vmatpush1.xpose.msra.mxu0 0.0
    %3859 = vmatprep.subr.mxu0 0.0
    %3860 = vmatpush1.xpose.msra.mxu0 0.0
    %3861 = vmatprep.subr.mxu0 0.0
    %3862 = vmatpush1.xpose.msra.mxu0 0.0
    %3863 = vmatprep.subr.mxu0 0.0
    %3864 = vmatpush1.xpose.msra.mxu0 0.0
    %3865 = vmatprep.subr.mxu0 0.0
    %3866 = vmatpush1.xpose.msra.mxu0 0.0
    %3867 = vmatprep.subr.mxu0 0.0
    %3868 = vmatpush1.xpose.msra.mxu0 0.0
    %3869 = vmatprep.subr.mxu0 0.0
    %3870 = vmatpush1.xpose.msra.mxu0 0.0
    %3871 = vmatprep.subr.mxu0 0.0
    %3872 = vmatpush1.xpose.msra.mxu0 0.0
    %3873 = vmatprep.subr.mxu0 0.0
    %3874 = vmatpush1.xpose.msra.mxu0 0.0
    %3875 = vmatprep.subr.mxu0 0.0
    %3876 = vmatpush1.xpose.msra.mxu0 0.0
    %3877 = vmatprep.subr.mxu0 0.0
    %3878 = vmatpush1.xpose.msra.mxu0 0.0
    %3879 = vmatprep.subr.mxu0 0.0
    %3880 = vmatpush1.xpose.msra.mxu0 0.0
    %3881 = vmatprep.subr.mxu0 0.0
    %3882 = vmatpush1.xpose.msra.mxu0 0.0
    %3883 = vmatprep.subr.mxu0 0.0
    %3884 = vmatpush1.xpose.msra.mxu0 0.0
    %3885 = vmatprep.subr.mxu0 0.0
    %3886 = vmatpush1.xpose.msra.mxu0 0.0
    %3887 = vmatprep.subr.mxu0 0.0
    %3888 = vmatpush1.xpose.msra.mxu0 0.0
    %3889 = vmatprep.subr.mxu0 0.0
    %3890 = vmatpush1.xpose.msra.mxu0 0.0
    %3891 = vmatprep.mubr.f32.mxu0 0.0
    %3892 = vmatmul.mubr.f32.gmra.mrb[0].mxu0 %v3818
    %v3893 = vpop.f32.mrb[0].mxu0
    %v3894 = vadd.f32 %v2192, %v3893
    %v3895 = vpop.f32.mrb[0].mxu0
    %3896 = vmatprep.mubr.f32.mxu0 0.0
    %3897 = vmatmul.mubr.f32.gmra.mrb[0].mxu0 %v3821
    %v3898 = vpop.f32.mrb[0].mxu0
    %v3899 = vadd.f32 %v2193, %v3898
    %v3900 = vpop.f32.mrb[0].mxu0
    %3901 = vdwg.mxu0
    %v3902 = vsel %vm790, %v3894, -inf
    %3903 = vmax.xlane.f32.xlu0 %v3902
    %v3904 = vpop.xlane.xlu0 %3903
    %v3905 = vsel %vm790, %v3899, -inf
    %3906 = vmax.xlane.f32.xlu0 %v3905
    %v3907 = vpop.xlane.xlu0 %3906
    %v3908 = vsub.f32 %v3894, %v3904
    %v3909 = vsub.f32 %v3899, %v3907
    %v3910 = vmul.f32 %v3908, 1.442695
    %v3911 = vpow.pop %v3910
    %v3912 = vmul.f32 %v3909, 1.442695
    %v3913 = vpow.pop %v3912
    %v3914 = vsel %vm790, %v3911, 0.0
    %3915 = vadd.xlane.f32.xlu0 %v3914
    %v3916 = vpop.xlane.xlu0 %3915
    %v3917 = vsel %vm790, %v3913, 0.0
    %3918 = vadd.xlane.f32.xlu0 %v3917
    %v3919 = vpop.xlane.xlu0 %3918
    %v3920 = vrcp.pop %v3916
    %v3921 = vrcp.pop %v3919
    %v3922 = vmul.f32 %v3911, %v3920
    %v3923 = vmul.f32 %v3913, %v3921
    %3924 = vrot.lane.b32.xlu0 %v3796, 64
    %v3925 = vpop.permute.xlu0 %3924
    %3926 = vrot.lane.b32.xlu0 %v3801, 64
    %v3927 = vpop.permute.xlu0 %3926
    %v3931 = vsel %vm790, %v3922, 0
    %v3934 = vsel %vm790, %v3923, 0
    %3936 = vmatprep.subr.mxu0 0.0
    %3937 = vmatpush1.msra.mxu0 %v3925
    %3938 = vmatprep.subr.mxu0 0.0
    %3939 = vmatpush1.msra.mxu0 %v3927
    %3940 = vmatprep.subr.mxu0 0.0
    %3941 = vmatpush1.msra.mxu0 0.0
    %3942 = vmatprep.subr.mxu0 0.0
    %3943 = vmatpush1.msra.mxu0 0.0
    %3944 = vmatprep.subr.mxu0 0.0
    %3945 = vmatpush1.msra.mxu0 0.0
    %3946 = vmatprep.subr.mxu0 0.0
    %3947 = vmatpush1.msra.mxu0 0.0
    %3948 = vmatprep.subr.mxu0 0.0
    %3949 = vmatpush1.msra.mxu0 0.0
    %3950 = vmatprep.subr.mxu0 0.0
    %3951 = vmatpush1.msra.mxu0 0.0
    %3952 = vmatprep.subr.mxu0 0.0
    %3953 = vmatpush1.msra.mxu0 0.0
    %3954 = vmatprep.subr.mxu0 0.0
    %3955 = vmatpush1.msra.mxu0 0.0
    %3956 = vmatprep.subr.mxu0 0.0
    %3957 = vmatpush1.msra.mxu0 0.0
    %3958 = vmatprep.subr.mxu0 0.0
    %3959 = vmatpush1.msra.mxu0 0.0
    %3960 = vmatprep.subr.mxu0 0.0
    %3961 = vmatpush1.msra.mxu0 0.0
    %3962 = vmatprep.subr.mxu0 0.0
    %3963 = vmatpush1.msra.mxu0 0.0
    %3964 = vmatprep.subr.mxu0 0.0
    %3965 = vmatpush1.msra.mxu0 0.0
    %3966 = vmatprep.subr.mxu0 0.0
    %3967 = vmatpush1.msra.mxu0 0.0
    %3968 = vmatprep.subr.mxu0 0.0
    %3969 = vmatpush1.msra.mxu0 0.0
    %3970 = vmatprep.subr.mxu0 0.0
    %3971 = vmatpush1.msra.mxu0 0.0
    %3972 = vmatprep.subr.mxu0 0.0
    %3973 = vmatpush1.msra.mxu0 0.0
    %3974 = vmatprep.subr.mxu0 0.0
    %3975 = vmatpush1.msra.mxu0 0.0
    %3976 = vmatprep.subr.mxu0 0.0
    %3977 = vmatpush1.msra.mxu0 0.0
    %3978 = vmatprep.subr.mxu0 0.0
    %3979 = vmatpush1.msra.mxu0 0.0
    %3980 = vmatprep.subr.mxu0 0.0
    %3981 = vmatpush1.msra.mxu0 0.0
    %3982 = vmatprep.subr.mxu0 0.0
    %3983 = vmatpush1.msra.mxu0 0.0
    %3984 = vmatprep.subr.mxu0 0.0
    %3985 = vmatpush1.msra.mxu0 0.0
    %3986 = vmatprep.subr.mxu0 0.0
    %3987 = vmatpush1.msra.mxu0 0.0
    %3988 = vmatprep.subr.mxu0 0.0
    %3989 = vmatpush1.msra.mxu0 0.0
    %3990 = vmatprep.subr.mxu0 0.0
    %3991 = vmatpush1.msra.mxu0 0.0
    %3992 = vmatprep.subr.mxu0 0.0
    %3993 = vmatpush1.msra.mxu0 0.0
    %3994 = vmatprep.subr.mxu0 0.0
    %3995 = vmatpush1.msra.mxu0 0.0
    %3996 = vmatprep.subr.mxu0 0.0
    %3997 = vmatpush1.msra.mxu0 0.0
    %3998 = vmatprep.subr.mxu0 0.0
    %3999 = vmatpush1.msra.mxu0 0.0
    %4000 = vmatprep.mubr.f32.mxu0 0.0
    %4001 = vmatmul.mubr.f32.gmra.mrb[0].mxu0 %v3931
    %v4002 = vpop.f32.mrb[0].mxu0
    %v4003 = vadd.f32 0.0, %v4002
    %v4004 = vpop.f32.mrb[0].mxu0
    %4005 = vmatprep.mubr.f32.mxu0 0.0
    %4006 = vmatmul.mubr.f32.gmra.mrb[0].mxu0 %v3934
    %v4007 = vpop.f32.mrb[0].mxu0
    %v4008 = vadd.f32 0.0, %v4007
    %v4009 = vpop.f32.mrb[0].mxu0
    %4010 = vdwg.mxu0
    %4011 = vrot.lane.b32.xlu0 %v3809, 120
    %v4012 = vpop.permute.xlu0 %4011
    %4013 = vrot.lane.b32.xlu0 %v3810, 120
    %v4014 = vpop.permute.xlu0 %4013
    %4015 = vrot.lane.b32.xlu0 %v3796, 88
    %v4016 = vpop.permute.xlu0 %4015
    %4017 = vrot.lane.b32.xlu0 %v3801, 88
    %v4018 = vpop.permute.xlu0 %4017
    %v4019 = vsel %vm2296, %v4012, 0
    %v4021 = vsel %vm2296, %v4014, 0
    %v4023 = vsel %vm2296, %v4016, 0
    %v4025 = vsel %vm2296, %v4018, 0
    %4027 = vmatprep.subr.mxu0 0.0
    %4028 = vmatpush1.xpose.msra.mxu0 %v4023
    %4029 = vmatprep.subr.mxu0 0.0
    %4030 = vmatpush1.xpose.msra.mxu0 %v4025
    %4031 = vmatprep.subr.mxu0 0.0
    %4032 = vmatpush1.xpose.msra.mxu0 0.0
    %4033 = vmatprep.subr.mxu0 0.0
    %4034 = vmatpush1.xpose.msra.mxu0 0.0
    %4035 = vmatprep.subr.mxu0 0.0
    %4036 = vmatpush1.xpose.msra.mxu0 0.0
    %4037 = vmatprep.subr.mxu0 0.0
    %4038 = vmatpush1.xpose.msra.mxu0 0.0
    %4039 = vmatprep.subr.mxu0 0.0
    %4040 = vmatpush1.xpose.msra.mxu0 0.0
    %4041 = vmatprep.subr.mxu0 0.0
    %4042 = vmatpush1.xpose.msra.mxu0 0.0
    %4043 = vmatprep.subr.mxu0 0.0
    %4044 = vmatpush1.xpose.msra.mxu0 0.0
    %4045 = vmatprep.subr.mxu0 0.0
    %4046 = vmatpush1.xpose.msra.mxu0 0.0
    %4047 = vmatprep.subr.mxu0 0.0
    %4048 = vmatpush1.xpose.msra.mxu0 0.0
    %4049 = vmatprep.subr.mxu0 0.0
    %4050 = vmatpush1.xpose.msra.mxu0 0.0
    %4051 = vmatprep.subr.mxu0 0.0
    %4052 = vmatpush1.xpose.msra.mxu0 0.0
    %4053 = vmatprep.subr.mxu0 0.0
    %4054 = vmatpush1.xpose.msra.mxu0 0.0
    %4055 = vmatprep.subr.mxu0 0.0
    %4056 = vmatpush1.xpose.msra.mxu0 0.0
    %4057 = vmatprep.subr.mxu0 0.0
    %4058 = vmatpush1.xpose.msra.mxu0 0.0
    %4059 = vmatprep.subr.mxu0 0.0
    %4060 = vmatpush1.xpose.msra.mxu0 0.0
    %4061 = vmatprep.subr.mxu0 0.0
    %4062 = vmatpush1.xpose.msra.mxu0 0.0
    %4063 = vmatprep.subr.mxu0 0.0
    %4064 = vmatpush1.xpose.msra.mxu0 0.0
    %4065 = vmatprep.subr.mxu0 0.0
    %4066 = vmatpush1.xpose.msra.mxu0 0.0
    %4067 = vmatprep.subr.mxu0 0.0
    %4068 = vmatpush1.xpose.msra.mxu0 0.0
    %4069 = vmatprep.subr.mxu0 0.0
    %4070 = vmatpush1.xpose.msra.mxu0 0.0
    %4071 = vmatprep.subr.mxu0 0.0
    %4072 = vmatpush1.xpose.msra.mxu0 0.0
    %4073 = vmatprep.subr.mxu0 0.0
    %4074 = vmatpush1.xpose.msra.mxu0 0.0
    %4075 = vmatprep.subr.mxu0 0.0
    %4076 = vmatpush1.xpose.msra.mxu0 0.0
    %4077 = vmatprep.subr.mxu0 0.0
    %4078 = vmatpush1.xpose.msra.mxu0 0.0
    %4079 = vmatprep.subr.mxu0 0.0
    %4080 = vmatpush1.xpose.msra.mxu0 0.0
    %4081 = vmatprep.subr.mxu0 0.0
    %4082 = vmatpush1.xpose.msra.mxu0 0.0
    %4083 = vmatprep.subr.mxu0 0.0
    %4084 = vmatpush1.xpose.msra.mxu0 0.0
    %4085 = vmatprep.subr.mxu0 0.0
    %4086 = vmatpush1.xpose.msra.mxu0 0.0
    %4087 = vmatprep.subr.mxu0 0.0
    %4088 = vmatpush1.xpose.msra.mxu0 0.0
    %4089 = vmatprep.subr.mxu0 0.0
    %4090 = vmatpush1.xpose.msra.mxu0 0.0
    %4091 = vmatprep.mubr.f32.mxu0 0.0
    %4092 = vmatmul.mubr.f32.gmra.mrb[0].mxu0 %v4019
    %v4093 = vpop.f32.mrb[0].mxu0
    %v4094 = vadd.f32 %v2192, %v4093
    %v4095 = vpop.f32.mrb[0].mxu0
    %4096 = vmatprep.mubr.f32.mxu0 0.0
    %4097 = vmatmul.mubr.f32.gmra.mrb[0].mxu0 %v4021
    %v4098 = vpop.f32.mrb[0].mxu0
    %v4099 = vadd.f32 %v2193, %v4098
    %v4100 = vpop.f32.mrb[0].mxu0
    %4101 = vdwg.mxu0
    %v4102 = vsel %vm790, %v4094, -inf
    %4103 = vmax.xlane.f32.xlu0 %v4102
    %v4104 = vpop.xlane.xlu0 %4103
    %v4105 = vsel %vm790, %v4099, -inf
    %4106 = vmax.xlane.f32.xlu0 %v4105
    %v4107 = vpop.xlane.xlu0 %4106
    %v4108 = vsub.f32 %v4094, %v4104
    %v4109 = vsub.f32 %v4099, %v4107
    %v4110 = vmul.f32 %v4108, 1.442695
    %v4111 = vpow.pop %v4110
    %v4112 = vmul.f32 %v4109, 1.442695
    %v4113 = vpow.pop %v4112
    %v4114 = vsel %vm790, %v4111, 0.0
    %4115 = vadd.xlane.f32.xlu0 %v4114
    %v4116 = vpop.xlane.xlu0 %4115
    %v4117 = vsel %vm790, %v4113, 0.0
    %4118 = vadd.xlane.f32.xlu0 %v4117
    %v4119 = vpop.xlane.xlu0 %4118
    %v4120 = vrcp.pop %v4116
    %v4121 = vrcp.pop %v4119
    %v4122 = vmul.f32 %v4111, %v4120
    %v4123 = vmul.f32 %v4113, %v4121
    %4124 = vrot.lane.b32.xlu0 %v3796, 56
    %v4125 = vpop.permute.xlu0 %4124
    %4126 = vrot.lane.b32.xlu0 %v3801, 56
    %v4127 = vpop.permute.xlu0 %4126
    %v4131 = vsel %vm790, %v4122, 0
    %v4134 = vsel %vm790, %v4123, 0
    %4136 = vmatprep.subr.mxu0 0.0
    %4137 = vmatpush1.msra.mxu0 %v4125
    %4138 = vmatprep.subr.mxu0 0.0
    %4139 = vmatpush1.msra.mxu0 %v4127
    %4140 = vmatprep.subr.mxu0 0.0
    %4141 = vmatpush1.msra.mxu0 0.0
    %4142 = vmatprep.subr.mxu0 0.0
    %4143 = vmatpush1.msra.mxu0 0.0
    %4144 = vmatprep.subr.mxu0 0.0
    %4145 = vmatpush1.msra.mxu0 0.0
    %4146 = vmatprep.subr.mxu0 0.0
    %4147 = vmatpush1.msra.mxu0 0.0
    %4148 = vmatprep.subr.mxu0 0.0
    %4149 = vmatpush1.msra.mxu0 0.0
    %4150 = vmatprep.subr.mxu0 0.0
    %4151 = vmatpush1.msra.mxu0 0.0
    %4152 = vmatprep.subr.mxu0 0.0
    %4153 = vmatpush1.msra.mxu0 0.0
    %4154 = vmatprep.subr.mxu0 0.0
    %4155 = vmatpush1.msra.mxu0 0.0
    %4156 = vmatprep.subr.mxu0 0.0
    %4157 = vmatpush1.msra.mxu0 0.0
    %4158 = vmatprep.subr.mxu0 0.0
    %4159 = vmatpush1.msra.mxu0 0.0
    %4160 = vmatprep.subr.mxu0 0.0
    %4161 = vmatpush1.msra.mxu0 0.0
    %4162 = vmatprep.subr.mxu0 0.0
    %4163 = vmatpush1.msra.mxu0 0.0
    %4164 = vmatprep.subr.mxu0 0.0
    %4165 = vmatpush1.msra.mxu0 0.0
    %4166 = vmatprep.subr.mxu0 0.0
    %4167 = vmatpush1.msra.mxu0 0.0
    %4168 = vmatprep.subr.mxu0 0.0
    %4169 = vmatpush1.msra.mxu0 0.0
    %4170 = vmatprep.subr.mxu0 0.0
    %4171 = vmatpush1.msra.mxu0 0.0
    %4172 = vmatprep.subr.mxu0 0.0
    %4173 = vmatpush1.msra.mxu0 0.0
    %4174 = vmatprep.subr.mxu0 0.0
    %4175 = vmatpush1.msra.mxu0 0.0
    %4176 = vmatprep.subr.mxu0 0.0
    %4177 = vmatpush1.msra.mxu0 0.0
    %4178 = vmatprep.subr.mxu0 0.0
    %4179 = vmatpush1.msra.mxu0 0.0
    %4180 = vmatprep.subr.mxu0 0.0
    %4181 = vmatpush1.msra.mxu0 0.0
    %4182 = vmatprep.subr.mxu0 0.0
    %4183 = vmatpush1.msra.mxu0 0.0
    %4184 = vmatprep.subr.mxu0 0.0
    %4185 = vmatpush1.msra.mxu0 0.0
    %4186 = vmatprep.subr.mxu0 0.0
    %4187 = vmatpush1.msra.mxu0 0.0
    %4188 = vmatprep.subr.mxu0 0.0
    %4189 = vmatpush1.msra.mxu0 0.0
    %4190 = vmatprep.subr.mxu0 0.0
    %4191 = vmatpush1.msra.mxu0 0.0
    %4192 = vmatprep.subr.mxu0 0.0
    %4193 = vmatpush1.msra.mxu0 0.0
    %4194 = vmatprep.subr.mxu0 0.0
    %4195 = vmatpush1.msra.mxu0 0.0
    %4196 = vmatprep.subr.mxu0 0.0
    %4197 = vmatpush1.msra.mxu0 0.0
    %4198 = vmatprep.subr.mxu0 0.0
    %4199 = vmatpush1.msra.mxu0 0.0
    %4200 = vmatprep.mubr.f32.mxu0 0.0
    %4201 = vmatmul.mubr.f32.gmra.mrb[0].mxu0 %v4131
    %v4202 = vpop.f32.mrb[0].mxu0
    %v4203 = vadd.f32 0.0, %v4202
    %v4204 = vpop.f32.mrb[0].mxu0
    %4205 = vmatprep.mubr.f32.mxu0 0.0
    %4206 = vmatmul.mubr.f32.gmra.mrb[0].mxu0 %v4134
    %v4207 = vpop.f32.mrb[0].mxu0
    %v4208 = vadd.f32 0.0, %v4207
    %v4209 = vpop.f32.mrb[0].mxu0
    %4210 = vdwg.mxu0
    %v4212 = vsel %vm2296, %v4203, 0
    %v4215 = vsel %vm2296, %v4208, 0
    %4217 = vmatprep.subr.mxu0 0.0
    %4218 = vmatpush1.msra.mxu0 %v3806
    %4219 = vmatprep.subr.mxu0 0.0
    %4220 = vmatpush1.msra.mxu0 0.0
    %4221 = vmatprep.subr.mxu0 0.0
    %4222 = vmatpush1.msra.mxu0 0.0
    %4223 = vmatprep.subr.mxu0 0.0
    %4224 = vmatpush1.msra.mxu0 0.0
    %4225 = vmatprep.subr.mxu0 0.0
    %4226 = vmatpush1.msra.mxu0 0.0
    %4227 = vmatprep.subr.mxu0 0.0
    %4228 = vmatpush1.msra.mxu0 0.0
    %4229 = vmatprep.subr.mxu0 0.0
    %4230 = vmatpush1.msra.mxu0 0.0
    %4231 = vmatprep.subr.mxu0 0.0
    %4232 = vmatpush1.msra.mxu0 0.0
    %4233 = vmatprep.subr.mxu0 0.0
    %4234 = vmatpush1.msra.mxu0 0.0
    %4235 = vmatprep.subr.mxu0 0.0
    %4236 = vmatpush1.msra.mxu0 0.0
    %4237 = vmatprep.subr.mxu0 0.0
    %4238 = vmatpush1.msra.mxu0 0.0
    %4239 = vmatprep.subr.mxu0 0.0
    %4240 = vmatpush1.msra.mxu0 0.0
    %4241 = vmatprep.subr.mxu0 0.0
    %4242 = vmatpush1.msra.mxu0 0.0
    %4243 = vmatprep.subr.mxu0 0.0
    %4244 = vmatpush1.msra.mxu0 0.0
    %4245 = vmatprep.subr.mxu0 0.0
    %4246 = vmatpush1.msra.mxu0 0.0
    %4247 = vmatprep.subr.mxu0 0.0
    %4248 = vmatpush1.msra.mxu0 0.0
    %4249 = vmatprep.subr.mxu0 0.0
    %4250 = vmatpush1.msra.mxu0 0.0
    %4251 = vmatprep.subr.mxu0 0.0
    %4252 = vmatpush1.msra.mxu0 0.0
    %4253 = vmatprep.subr.mxu0 0.0
    %4254 = vmatpush1.msra.mxu0 0.0
    %4255 = vmatprep.subr.mxu0 0.0
    %4256 = vmatpush1.msra.mxu0 0.0
    %4257 = vmatprep.subr.mxu0 0.0
    %4258 = vmatpush1.msra.mxu0 0.0
    %4259 = vmatprep.subr.mxu0 0.0
    %4260 = vmatpush1.msra.mxu0 0.0
    %4261 = vmatprep.subr.mxu0 0.0
    %4262 = vmatpush1.msra.mxu0 0.0
    %4263 = vmatprep.subr.mxu0 0.0
    %4264 = vmatpush1.msra.mxu0 0.0
    %4265 = vmatprep.subr.mxu0 0.0
    %4266 = vmatpush1.msra.mxu0 0.0
    %4267 = vmatprep.subr.mxu0 0.0
    %4268 = vmatpush1.msra.mxu0 0.0
    %4269 = vmatprep.subr.mxu0 0.0
    %4270 = vmatpush1.msra.mxu0 0.0
    %4271 = vmatprep.subr.mxu0 0.0
    %4272 = vmatpush1.msra.mxu0 0.0
    %4273 = vmatprep.subr.mxu0 0.0
    %4274 = vmatpush1.msra.mxu0 0.0
    %4275 = vmatprep.subr.mxu0 0.0
    %4276 = vmatpush1.msra.mxu0 0.0
    %4277 = vmatprep.subr.mxu0 0.0
    %4278 = vmatpush1.msra.mxu0 0.0
    %4279 = vmatprep.subr.mxu0 0.0
    %4280 = vmatpush1.msra.mxu0 0.0
    %4281 = vmatprep.mubr.f32.mxu0 0.0
    %4282 = vmatmul.mubr.f32.gmra.mrb[0].mxu0 %v4212
    %v4283 = vpop.f32.mrb[0].mxu0
    %v4284 = vadd.f32 0.0, %v4283
    %v4285 = vpop.f32.mrb[0].mxu0
    %4286 = vmatprep.mubr.f32.mxu0 0.0
    %4287 = vmatmul.mubr.f32.gmra.mrb[0].mxu0 %v4215
    %v4288 = vpop.f32.mrb[0].mxu0
    %v4289 = vadd.f32 0.0, %v4288
    %v4290 = vpop.f32.mrb[0].mxu0
    %4291 = vdwg.mxu0
    %v4293 = vsel %vm2296, %v4003, 0
    %v4296 = vsel %vm2296, %v4008, 0
    %4298 = vmatprep.subr.mxu0 0.0
    %4299 = vmatpush1.msra.mxu0 %v3805
    %4300 = vmatprep.subr.mxu0 0.0
    %4301 = vmatpush1.msra.mxu0 0.0
    %4302 = vmatprep.subr.mxu0 0.0
    %4303 = vmatpush1.msra.mxu0 0.0
    %4304 = vmatprep.subr.mxu0 0.0
    %4305 = vmatpush1.msra.mxu0 0.0
    %4306 = vmatprep.subr.mxu0 0.0
    %4307 = vmatpush1.msra.mxu0 0.0
    %4308 = vmatprep.subr.mxu0 0.0
    %4309 = vmatpush1.msra.mxu0 0.0
    %4310 = vmatprep.subr.mxu0 0.0
    %4311 = vmatpush1.msra.mxu0 0.0
    %4312 = vmatprep.subr.mxu0 0.0
    %4313 = vmatpush1.msra.mxu0 0.0
    %4314 = vmatprep.subr.mxu0 0.0
    %4315 = vmatpush1.msra.mxu0 0.0
    %4316 = vmatprep.subr.mxu0 0.0
    %4317 = vmatpush1.msra.mxu0 0.0
    %4318 = vmatprep.subr.mxu0 0.0
    %4319 = vmatpush1.msra.mxu0 0.0
    %4320 = vmatprep.subr.mxu0 0.0
    %4321 = vmatpush1.msra.mxu0 0.0
    %4322 = vmatprep.subr.mxu0 0.0
    %4323 = vmatpush1.msra.mxu0 0.0
    %4324 = vmatprep.subr.mxu0 0.0
    %4325 = vmatpush1.msra.mxu0 0.0
    %4326 = vmatprep.subr.mxu0 0.0
    %4327 = vmatpush1.msra.mxu0 0.0
    %4328 = vmatprep.subr.mxu0 0.0
    %4329 = vmatpush1.msra.mxu0 0.0
    %4330 = vmatprep.subr.mxu0 0.0
    %4331 = vmatpush1.msra.mxu0 0.0
    %4332 = vmatprep.subr.mxu0 0.0
    %4333 = vmatpush1.msra.mxu0 0.0
    %4334 = vmatprep.subr.mxu0 0.0
    %4335 = vmatpush1.msra.mxu0 0.0
    %4336 = vmatprep.subr.mxu0 0.0
    %4337 = vmatpush1.msra.mxu0 0.0
    %4338 = vmatprep.subr.mxu0 0.0
    %4339 = vmatpush1.msra.mxu0 0.0
    %4340 = vmatprep.subr.mxu0 0.0
    %4341 = vmatpush1.msra.mxu0 0.0
    %4342 = vmatprep.subr.mxu0 0.0
    %4343 = vmatpush1.msra.mxu0 0.0
    %4344 = vmatprep.subr.mxu0 0.0
    %4345 = vmatpush1.msra.mxu0 0.0
    %4346 = vmatprep.subr.mxu0 0.0
    %4347 = vmatpush1.msra.mxu0 0.0
    %4348 = vmatprep.subr.mxu0 0.0
    %4349 = vmatpush1.msra.mxu0 0.0
    %4350 = vmatprep.subr.mxu0 0.0
    %4351 = vmatpush1.msra.mxu0 0.0
    %4352 = vmatprep.subr.mxu0 0.0
    %4353 = vmatpush1.msra.mxu0 0.0
    %4354 = vmatprep.subr.mxu0 0.0
    %4355 = vmatpush1.msra.mxu0 0.0
    %4356 = vmatprep.subr.mxu0 0.0
    %4357 = vmatpush1.msra.mxu0 0.0
    %4358 = vmatprep.subr.mxu0 0.0
    %4359 = vmatpush1.msra.mxu0 0.0
    %4360 = vmatprep.subr.mxu0 0.0
    %4361 = vmatpush1.msra.mxu0 0.0
    %4362 = vmatprep.mubr.f32.mxu0 0.0
    %4363 = vmatmul.mubr.f32.gmra.mrb[0].mxu0 %v4293
    %v4364 = vpop.f32.mrb[0].mxu0
    %v4365 = vadd.f32 %v4284, %v4364
    %v4366 = vpop.f32.mrb[0].mxu0
    %4367 = vmatprep.mubr.f32.mxu0 0.0
    %4368 = vmatmul.mubr.f32.gmra.mrb[0].mxu0 %v4296
    %v4369 = vpop.f32.mrb[0].mxu0
    %v4370 = vadd.f32 %v4289, %v4369
    %v4371 = vpop.f32.mrb[0].mxu0
    %4372 = vdwg.mxu0
    %4373 = vrot.lane.b32.xlu0 %v3809, 112
    %v4374 = vpop.permute.xlu0 %4373
    %4375 = vrot.lane.b32.xlu0 %v3810, 112
    %v4376 = vpop.permute.xlu0 %4375
    %4377 = vrot.lane.b32.xlu0 %v3796, 80
    %v4378 = vpop.permute.xlu0 %4377
    %4379 = vrot.lane.b32.xlu0 %v3801, 80
    %v4380 = vpop.permute.xlu0 %4379
    %v4381 = vsel %vm2296, %v4374, 0
    %v4383 = vsel %vm2296, %v4376, 0
    %v4385 = vsel %vm2296, %v4378, 0
    %v4387 = vsel %vm2296, %v4380, 0
    %4389 = vmatprep.subr.mxu0 0.0
    %4390 = vmatpush1.xpose.msra.mxu0 %v4385
    %4391 = vmatprep.subr.mxu0 0.0
    %4392 = vmatpush1.xpose.msra.mxu0 %v4387
    %4393 = vmatprep.subr.mxu0 0.0
    %4394 = vmatpush1.xpose.msra.mxu0 0.0
    %4395 = vmatprep.subr.mxu0 0.0
    %4396 = vmatpush1.xpose.msra.mxu0 0.0
    %4397 = vmatprep.subr.mxu0 0.0
    %4398 = vmatpush1.xpose.msra.mxu0 0.0
    %4399 = vmatprep.subr.mxu0 0.0
    %4400 = vmatpush1.xpose.msra.mxu0 0.0
    %4401 = vmatprep.subr.mxu0 0.0
    %4402 = vmatpush1.xpose.msra.mxu0 0.0
    %4403 = vmatprep.subr.mxu0 0.0
    %4404 = vmatpush1.xpose.msra.mxu0 0.0
    %4405 = vmatprep.subr.mxu0 0.0
    %4406 = vmatpush1.xpose.msra.mxu0 0.0
    %4407 = vmatprep.subr.mxu0 0.0
    %4408 = vmatpush1.xpose.msra.mxu0 0.0
    %4409 = vmatprep.subr.mxu0 0.0
    %4410 = vmatpush1.xpose.msra.mxu0 0.0
    %4411 = vmatprep.subr.mxu0 0.0
    %4412 = vmatpush1.xpose.msra.mxu0 0.0
    %4413 = vmatprep.subr.mxu0 0.0
    %4414 = vmatpush1.xpose.msra.mxu0 0.0
    %4415 = vmatprep.subr.mxu0 0.0
    %4416 = vmatpush1.xpose.msra.mxu0 0.0
    %4417 = vmatprep.subr.mxu0 0.0
    %4418 = vmatpush1.xpose.msra.mxu0 0.0
    %4419 = vmatprep.subr.mxu0 0.0
    %4420 = vmatpush1.xpose.msra.mxu0 0.0
    %4421 = vmatprep.subr.mxu0 0.0
    %4422 = vmatpush1.xpose.msra.mxu0 0.0
    %4423 = vmatprep.subr.mxu0 0.0
    %4424 = vmatpush1.xpose.msra.mxu0 0.0
    %4425 = vmatprep.subr.mxu0 0.0
    %4426 = vmatpush1.xpose.msra.mxu0 0.0
    %4427 = vmatprep.subr.mxu0 0.0
    %4428 = vmatpush1.xpose.msra.mxu0 0.0
    %4429 = vmatprep.subr.mxu0 0.0
    %4430 = vmatpush1.xpose.msra.mxu0 0.0
    %4431 = vmatprep.subr.mxu0 0.0
    %4432 = vmatpush1.xpose.msra.mxu0 0.0
    %4433 = vmatprep.subr.mxu0 0.0
    %4434 = vmatpush1.xpose.msra.mxu0 0.0
    %4435 = vmatprep.subr.mxu0 0.0
    %4436 = vmatpush1.xpose.msra.mxu0 0.0
    %4437 = vmatprep.subr.mxu0 0.0
    %4438 = vmatpush1.xpose.msra.mxu0 0.0
    %4439 = vmatprep.subr.mxu0 0.0
    %4440 = vmatpush1.xpose.msra.mxu0 0.0
    %4441 = vmatprep.subr.mxu0 0.0
    %4442 = vmatpush1.xpose.msra.mxu0 0.0
    %4443 = vmatprep.subr.mxu0 0.0
    %4444 = vmatpush1.xpose.msra.mxu0 0.0
    %4445 = vmatprep.subr.mxu0 0.0
    %4446 = vmatpush1.xpose.msra.mxu0 0.0
    %4447 = vmatprep.subr.mxu0 0.0
    %4448 = vmatpush1.xpose.msra.mxu0 0.0
    %4449 = vmatprep.subr.mxu0 0.0
    %4450 = vmatpush1.xpose.msra.mxu0 0.0
    %4451 = vmatprep.subr.mxu0 0.0
    %4452 = vmatpush1.xpose.msra.mxu0 0.0
    %4453 = vmatprep.mubr.f32.mxu0 0.0
    %4454 = vmatmul.mubr.f32.gmra.mrb[0].mxu0 %v4381
    %v4455 = vpop.f32.mrb[0].mxu0
    %v4456 = vadd.f32 %v2192, %v4455
    %v4457 = vpop.f32.mrb[0].mxu0
    %4458 = vmatprep.mubr.f32.mxu0 0.0
    %4459 = vmatmul.mubr.f32.gmra.mrb[0].mxu0 %v4383
    %v4460 = vpop.f32.mrb[0].mxu0
    %v4461 = vadd.f32 %v2193, %v4460
    %v4462 = vpop.f32.mrb[0].mxu0
    %4463 = vdwg.mxu0
    %v4464 = vsel %vm790, %v4456, -inf
    %4465 = vmax.xlane.f32.xlu0 %v4464
    %v4466 = vpop.xlane.xlu0 %4465
    %v4467 = vsel %vm790, %v4461, -inf
    %4468 = vmax.xlane.f32.xlu0 %v4467
    %v4469 = vpop.xlane.xlu0 %4468
    %v4470 = vsub.f32 %v4456, %v4466
    %v4471 = vsub.f32 %v4461, %v4469
    %v4472 = vmul.f32 %v4470, 1.442695
    %v4473 = vpow.pop %v4472
    %v4474 = vmul.f32 %v4471, 1.442695
    %v4475 = vpow.pop %v4474
    %v4476 = vsel %vm790, %v4473, 0.0
    %4477 = vadd.xlane.f32.xlu0 %v4476
    %v4478 = vpop.xlane.xlu0 %4477
    %v4479 = vsel %vm790, %v4475, 0.0
    %4480 = vadd.xlane.f32.xlu0 %v4479
    %v4481 = vpop.xlane.xlu0 %4480
    %v4482 = vrcp.pop %v4478
    %v4483 = vrcp.pop %v4481
    %v4484 = vmul.f32 %v4473, %v4482
    %v4485 = vmul.f32 %v4475, %v4483
    %4486 = vrot.lane.b32.xlu0 %v3796, 48
    %v4487 = vpop.permute.xlu0 %4486
    %4488 = vrot.lane.b32.xlu0 %v3801, 48
    %v4489 = vpop.permute.xlu0 %4488
    %v4493 = vsel %vm790, %v4484, 0
    %v4496 = vsel %vm790, %v4485, 0
    %4498 = vmatprep.subr.mxu0 0.0
    %4499 = vmatpush1.msra.mxu0 %v4487
    %4500 = vmatprep.subr.mxu0 0.0
    %4501 = vmatpush1.msra.mxu0 %v4489
    %4502 = vmatprep.subr.mxu0 0.0
    %4503 = vmatpush1.msra.mxu0 0.0
    %4504 = vmatprep.subr.mxu0 0.0
    %4505 = vmatpush1.msra.mxu0 0.0
    %4506 = vmatprep.subr.mxu0 0.0
    %4507 = vmatpush1.msra.mxu0 0.0
    %4508 = vmatprep.subr.mxu0 0.0
    %4509 = vmatpush1.msra.mxu0 0.0
    %4510 = vmatprep.subr.mxu0 0.0
    %4511 = vmatpush1.msra.mxu0 0.0
    %4512 = vmatprep.subr.mxu0 0.0
    %4513 = vmatpush1.msra.mxu0 0.0
    %4514 = vmatprep.subr.mxu0 0.0
    %4515 = vmatpush1.msra.mxu0 0.0
    %4516 = vmatprep.subr.mxu0 0.0
    %4517 = vmatpush1.msra.mxu0 0.0
    %4518 = vmatprep.subr.mxu0 0.0
    %4519 = vmatpush1.msra.mxu0 0.0
    %4520 = vmatprep.subr.mxu0 0.0
    %4521 = vmatpush1.msra.mxu0 0.0
    %4522 = vmatprep.subr.mxu0 0.0
    %4523 = vmatpush1.msra.mxu0 0.0
    %4524 = vmatprep.subr.mxu0 0.0
    %4525 = vmatpush1.msra.mxu0 0.0
    %4526 = vmatprep.subr.mxu0 0.0
    %4527 = vmatpush1.msra.mxu0 0.0
    %4528 = vmatprep.subr.mxu0 0.0
    %4529 = vmatpush1.msra.mxu0 0.0
    %4530 = vmatprep.subr.mxu0 0.0
    %4531 = vmatpush1.msra.mxu0 0.0
    %4532 = vmatprep.subr.mxu0 0.0
    %4533 = vmatpush1.msra.mxu0 0.0
    %4534 = vmatprep.subr.mxu0 0.0
    %4535 = vmatpush1.msra.mxu0 0.0
    %4536 = vmatprep.subr.mxu0 0.0
    %4537 = vmatpush1.msra.mxu0 0.0
    %4538 = vmatprep.subr.mxu0 0.0
    %4539 = vmatpush1.msra.mxu0 0.0
    %4540 = vmatprep.subr.mxu0 0.0
    %4541 = vmatpush1.msra.mxu0 0.0
    %4542 = vmatprep.subr.mxu0 0.0
    %4543 = vmatpush1.msra.mxu0 0.0
    %4544 = vmatprep.subr.mxu0 0.0
    %4545 = vmatpush1.msra.mxu0 0.0
    %4546 = vmatprep.subr.mxu0 0.0
    %4547 = vmatpush1.msra.mxu0 0.0
    %4548 = vmatprep.subr.mxu0 0.0
    %4549 = vmatpush1.msra.mxu0 0.0
    %4550 = vmatprep.subr.mxu0 0.0
    %4551 = vmatpush1.msra.mxu0 0.0
    %4552 = vmatprep.subr.mxu0 0.0
    %4553 = vmatpush1.msra.mxu0 0.0
    %4554 = vmatprep.subr.mxu0 0.0
    %4555 = vmatpush1.msra.mxu0 0.0
    %4556 = vmatprep.subr.mxu0 0.0
    %4557 = vmatpush1.msra.mxu0 0.0
    %4558 = vmatprep.subr.mxu0 0.0
    %4559 = vmatpush1.msra.mxu0 0.0
    %4560 = vmatprep.subr.mxu0 0.0
    %4561 = vmatpush1.msra.mxu0 0.0
    %4562 = vmatprep.mubr.f32.mxu0 0.0
    %4563 = vmatmul.mubr.f32.gmra.mrb[0].mxu0 %v4493
    %v4564 = vpop.f32.mrb[0].mxu0
    %v4565 = vadd.f32 0.0, %v4564
    %v4566 = vpop.f32.mrb[0].mxu0
    %4567 = vmatprep.mubr.f32.mxu0 0.0
    %4568 = vmatmul.mubr.f32.gmra.mrb[0].mxu0 %v4496
    %v4569 = vpop.f32.mrb[0].mxu0
    %v4570 = vadd.f32 0.0, %v4569
    %v4571 = vpop.f32.mrb[0].mxu0
    %4572 = vdwg.mxu0
    %v4574 = vsel %vm2296, %v4565, 0
    %v4577 = vsel %vm2296, %v4570, 0
    %4579 = vmatprep.subr.mxu0 0.0
    %4580 = vmatpush1.msra.mxu0 %v3807
    %4581 = vmatprep.subr.mxu0 0.0
    %4582 = vmatpush1.msra.mxu0 0.0
    %4583 = vmatprep.subr.mxu0 0.0
    %4584 = vmatpush1.msra.mxu0 0.0
    %4585 = vmatprep.subr.mxu0 0.0
    %4586 = vmatpush1.msra.mxu0 0.0
    %4587 = vmatprep.subr.mxu0 0.0
    %4588 = vmatpush1.msra.mxu0 0.0
    %4589 = vmatprep.subr.mxu0 0.0
    %4590 = vmatpush1.msra.mxu0 0.0
    %4591 = vmatprep.subr.mxu0 0.0
    %4592 = vmatpush1.msra.mxu0 0.0
    %4593 = vmatprep.subr.mxu0 0.0
    %4594 = vmatpush1.msra.mxu0 0.0
    %4595 = vmatprep.subr.mxu0 0.0
    %4596 = vmatpush1.msra.mxu0 0.0
    %4597 = vmatprep.subr.mxu0 0.0
    %4598 = vmatpush1.msra.mxu0 0.0
    %4599 = vmatprep.subr.mxu0 0.0
    %4600 = vmatpush1.msra.mxu0 0.0
    %4601 = vmatprep.subr.mxu0 0.0
    %4602 = vmatpush1.msra.mxu0 0.0
    %4603 = vmatprep.subr.mxu0 0.0
    %4604 = vmatpush1.msra.mxu0 0.0
    %4605 = vmatprep.subr.mxu0 0.0
    %4606 = vmatpush1.msra.mxu0 0.0
    %4607 = vmatprep.subr.mxu0 0.0
    %4608 = vmatpush1.msra.mxu0 0.0
    %4609 = vmatprep.subr.mxu0 0.0
    %4610 = vmatpush1.msra.mxu0 0.0
    %4611 = vmatprep.subr.mxu0 0.0
    %4612 = vmatpush1.msra.mxu0 0.0
    %4613 = vmatprep.subr.mxu0 0.0
    %4614 = vmatpush1.msra.mxu0 0.0
    %4615 = vmatprep.subr.mxu0 0.0
    %4616 = vmatpush1.msra.mxu0 0.0
    %4617 = vmatprep.subr.mxu0 0.0
    %4618 = vmatpush1.msra.mxu0 0.0
    %4619 = vmatprep.subr.mxu0 0.0
    %4620 = vmatpush1.msra.mxu0 0.0
    %4621 = vmatprep.subr.mxu0 0.0
    %4622 = vmatpush1.msra.mxu0 0.0
    %4623 = vmatprep.subr.mxu0 0.0
    %4624 = vmatpush1.msra.mxu0 0.0
    %4625 = vmatprep.subr.mxu0 0.0
    %4626 = vmatpush1.msra.mxu0 0.0
    %4627 = vmatprep.subr.mxu0 0.0
    %4628 = vmatpush1.msra.mxu0 0.0
    %4629 = vmatprep.subr.mxu0 0.0
    %4630 = vmatpush1.msra.mxu0 0.0
    %4631 = vmatprep.subr.mxu0 0.0
    %4632 = vmatpush1.msra.mxu0 0.0
    %4633 = vmatprep.subr.mxu0 0.0
    %4634 = vmatpush1.msra.mxu0 0.0
    %4635 = vmatprep.subr.mxu0 0.0
    %4636 = vmatpush1.msra.mxu0 0.0
    %4637 = vmatprep.subr.mxu0 0.0
    %4638 = vmatpush1.msra.mxu0 0.0
    %4639 = vmatprep.subr.mxu0 0.0
    %4640 = vmatpush1.msra.mxu0 0.0
    %4641 = vmatprep.subr.mxu0 0.0
    %4642 = vmatpush1.msra.mxu0 0.0
    %4643 = vmatprep.mubr.f32.mxu0 0.0
    %4644 = vmatmul.mubr.f32.gmra.mrb[0].mxu0 %v4574
    %v4645 = vpop.f32.mrb[0].mxu0
    %v4646 = vadd.f32 0.0, %v4645
    %v4647 = vpop.f32.mrb[0].mxu0
    %4648 = vmatprep.mubr.f32.mxu0 0.0
    %4649 = vmatmul.mubr.f32.gmra.mrb[0].mxu0 %v4577
    %v4650 = vpop.f32.mrb[0].mxu0
    %v4651 = vadd.f32 0.0, %v4650
    %v4652 = vpop.f32.mrb[0].mxu0
    %4653 = vdwg.mxu0
    %v4654 = vadd.f32 %v4365, %v4646
    %v4655 = vadd.f32 %v4370, %v4651
    %4656 = vrot.lane.b32.xlu0 %v3809, 104
    %v4657 = vpop.permute.xlu0 %4656
    %4658 = vrot.lane.b32.xlu0 %v3810, 104
    %v4659 = vpop.permute.xlu0 %4658
    %4660 = vrot.lane.b32.xlu0 %v3796, 72
    %v4661 = vpop.permute.xlu0 %4660
    %4662 = vrot.lane.b32.xlu0 %v3801, 72
    %v4663 = vpop.permute.xlu0 %4662
    %v4664 = vsel %vm2296, %v4657, 0
    %v4666 = vsel %vm2296, %v4659, 0
    %v4668 = vsel %vm2296, %v4661, 0
    %v4670 = vsel %vm2296, %v4663, 0
    %4672 = vmatprep.subr.mxu0 0.0
    %4673 = vmatpush1.xpose.msra.mxu0 %v4668
    %4674 = vmatprep.subr.mxu0 0.0
    %4675 = vmatpush1.xpose.msra.mxu0 %v4670
    %4676 = vmatprep.subr.mxu0 0.0
    %4677 = vmatpush1.xpose.msra.mxu0 0.0
    %4678 = vmatprep.subr.mxu0 0.0
    %4679 = vmatpush1.xpose.msra.mxu0 0.0
    %4680 = vmatprep.subr.mxu0 0.0
    %4681 = vmatpush1.xpose.msra.mxu0 0.0
    %4682 = vmatprep.subr.mxu0 0.0
    %4683 = vmatpush1.xpose.msra.mxu0 0.0
    %4684 = vmatprep.subr.mxu0 0.0
    %4685 = vmatpush1.xpose.msra.mxu0 0.0
    %4686 = vmatprep.subr.mxu0 0.0
    %4687 = vmatpush1.xpose.msra.mxu0 0.0
    %4688 = vmatprep.subr.mxu0 0.0
    %4689 = vmatpush1.xpose.msra.mxu0 0.0
    %4690 = vmatprep.subr.mxu0 0.0
    %4691 = vmatpush1.xpose.msra.mxu0 0.0
    %4692 = vmatprep.subr.mxu0 0.0
    %4693 = vmatpush1.xpose.msra.mxu0 0.0
    %4694 = vmatprep.subr.mxu0 0.0
    %4695 = vmatpush1.xpose.msra.mxu0 0.0
    %4696 = vmatprep.subr.mxu0 0.0
    %4697 = vmatpush1.xpose.msra.mxu0 0.0
    %4698 = vmatprep.subr.mxu0 0.0
    %4699 = vmatpush1.xpose.msra.mxu0 0.0
    %4700 = vmatprep.subr.mxu0 0.0
    %4701 = vmatpush1.xpose.msra.mxu0 0.0
    %4702 = vmatprep.subr.mxu0 0.0
    %4703 = vmatpush1.xpose.msra.mxu0 0.0
    %4704 = vmatprep.subr.mxu0 0.0
    %4705 = vmatpush1.xpose.msra.mxu0 0.0
    %4706 = vmatprep.subr.mxu0 0.0
    %4707 = vmatpush1.xpose.msra.mxu0 0.0
    %4708 = vmatprep.subr.mxu0 0.0
    %4709 = vmatpush1.xpose.msra.mxu0 0.0
    %4710 = vmatprep.subr.mxu0 0.0
    %4711 = vmatpush1.xpose.msra.mxu0 0.0
    %4712 = vmatprep.subr.mxu0 0.0
    %4713 = vmatpush1.xpose.msra.mxu0 0.0
    %4714 = vmatprep.subr.mxu0 0.0
    %4715 = vmatpush1.xpose.msra.mxu0 0.0
    %4716 = vmatprep.subr.mxu0 0.0
    %4717 = vmatpush1.xpose.msra.mxu0 0.0
    %4718 = vmatprep.subr.mxu0 0.0
    %4719 = vmatpush1.xpose.msra.mxu0 0.0
    %4720 = vmatprep.subr.mxu0 0.0
    %4721 = vmatpush1.xpose.msra.mxu0 0.0
    %4722 = vmatprep.subr.mxu0 0.0
    %4723 = vmatpush1.xpose.msra.mxu0 0.0
    %4724 = vmatprep.subr.mxu0 0.0
    %4725 = vmatpush1.xpose.msra.mxu0 0.0
    %4726 = vmatprep.subr.mxu0 0.0
    %4727 = vmatpush1.xpose.msra.mxu0 0.0
    %4728 = vmatprep.subr.mxu0 0.0
    %4729 = vmatpush1.xpose.msra.mxu0 0.0
    %4730 = vmatprep.subr.mxu0 0.0
    %4731 = vmatpush1.xpose.msra.mxu0 0.0
    %4732 = vmatprep.subr.mxu0 0.0
    %4733 = vmatpush1.xpose.msra.mxu0 0.0
    %4734 = vmatprep.subr.mxu0 0.0
    %4735 = vmatpush1.xpose.msra.mxu0 0.0
    %4736 = vmatprep.mubr.f32.mxu0 0.0
    %4737 = vmatmul.mubr.f32.gmra.mrb[0].mxu0 %v4664
    %v4738 = vpop.f32.mrb[0].mxu0
    %v4739 = vadd.f32 %v2192, %v4738
    %v4740 = vpop.f32.mrb[0].mxu0
    %4741 = vmatprep.mubr.f32.mxu0 0.0
    %4742 = vmatmul.mubr.f32.gmra.mrb[0].mxu0 %v4666
    %v4743 = vpop.f32.mrb[0].mxu0
    %v4744 = vadd.f32 %v2193, %v4743
    %v4745 = vpop.f32.mrb[0].mxu0
    %4746 = vdwg.mxu0
    %v4747 = vsel %vm790, %v4739, -inf
    %4748 = vmax.xlane.f32.xlu0 %v4747
    %v4749 = vpop.xlane.xlu0 %4748
    %v4750 = vsel %vm790, %v4744, -inf
    %4751 = vmax.xlane.f32.xlu0 %v4750
    %v4752 = vpop.xlane.xlu0 %4751
    %v4753 = vsub.f32 %v4739, %v4749
    %v4754 = vsub.f32 %v4744, %v4752
    %v4755 = vmul.f32 %v4753, 1.442695
    %v4756 = vpow.pop %v4755
    %v4757 = vmul.f32 %v4754, 1.442695
    %v4758 = vpow.pop %v4757
    %v4759 = vsel %vm790, %v4756, 0.0
    %4760 = vadd.xlane.f32.xlu0 %v4759
    %v4761 = vpop.xlane.xlu0 %4760
    %v4762 = vsel %vm790, %v4758, 0.0
    %4763 = vadd.xlane.f32.xlu0 %v4762
    %v4764 = vpop.xlane.xlu0 %4763
    %v4765 = vrcp.pop %v4761
    %v4766 = vrcp.pop %v4764
    %v4767 = vmul.f32 %v4756, %v4765
    %v4768 = vmul.f32 %v4758, %v4766
    %4769 = vrot.lane.b32.xlu0 %v3796, 40
    %v4770 = vpop.permute.xlu0 %4769
    %4771 = vrot.lane.b32.xlu0 %v3801, 40
    %v4772 = vpop.permute.xlu0 %4771
    %v4776 = vsel %vm790, %v4767, 0
    %v4779 = vsel %vm790, %v4768, 0
    %4781 = vmatprep.subr.mxu0 0.0
    %4782 = vmatpush1.msra.mxu0 %v4770
    %4783 = vmatprep.subr.mxu0 0.0
    %4784 = vmatpush1.msra.mxu0 %v4772
    %4785 = vmatprep.subr.mxu0 0.0
    %4786 = vmatpush1.msra.mxu0 0.0
    %4787 = vmatprep.subr.mxu0 0.0
    %4788 = vmatpush1.msra.mxu0 0.0
    %4789 = vmatprep.subr.mxu0 0.0
    %4790 = vmatpush1.msra.mxu0 0.0
    %4791 = vmatprep.subr.mxu0 0.0
    %4792 = vmatpush1.msra.mxu0 0.0
    %4793 = vmatprep.subr.mxu0 0.0
    %4794 = vmatpush1.msra.mxu0 0.0
    %4795 = vmatprep.subr.mxu0 0.0
    %4796 = vmatpush1.msra.mxu0 0.0
    %4797 = vmatprep.subr.mxu0 0.0
    %4798 = vmatpush1.msra.mxu0 0.0
    %4799 = vmatprep.subr.mxu0 0.0
    %4800 = vmatpush1.msra.mxu0 0.0
    %4801 = vmatprep.subr.mxu0 0.0
    %4802 = vmatpush1.msra.mxu0 0.0
    %4803 = vmatprep.subr.mxu0 0.0
    %4804 = vmatpush1.msra.mxu0 0.0
    %4805 = vmatprep.subr.mxu0 0.0
    %4806 = vmatpush1.msra.mxu0 0.0
    %4807 = vmatprep.subr.mxu0 0.0
    %4808 = vmatpush1.msra.mxu0 0.0
    %4809 = vmatprep.subr.mxu0 0.0
    %4810 = vmatpush1.msra.mxu0 0.0
    %4811 = vmatprep.subr.mxu0 0.0
    %4812 = vmatpush1.msra.mxu0 0.0
    %4813 = vmatprep.subr.mxu0 0.0
    %4814 = vmatpush1.msra.mxu0 0.0
    %4815 = vmatprep.subr.mxu0 0.0
    %4816 = vmatpush1.msra.mxu0 0.0
    %4817 = vmatprep.subr.mxu0 0.0
    %4818 = vmatpush1.msra.mxu0 0.0
    %4819 = vmatprep.subr.mxu0 0.0
    %4820 = vmatpush1.msra.mxu0 0.0
    %4821 = vmatprep.subr.mxu0 0.0
    %4822 = vmatpush1.msra.mxu0 0.0
    %4823 = vmatprep.subr.mxu0 0.0
    %4824 = vmatpush1.msra.mxu0 0.0
    %4825 = vmatprep.subr.mxu0 0.0
    %4826 = vmatpush1.msra.mxu0 0.0
    %4827 = vmatprep.subr.mxu0 0.0
    %4828 = vmatpush1.msra.mxu0 0.0
    %4829 = vmatprep.subr.mxu0 0.0
    %4830 = vmatpush1.msra.mxu0 0.0
    %4831 = vmatprep.subr.mxu0 0.0
    %4832 = vmatpush1.msra.mxu0 0.0
    %4833 = vmatprep.subr.mxu0 0.0
    %4834 = vmatpush1.msra.mxu0 0.0
    %4835 = vmatprep.subr.mxu0 0.0
    %4836 = vmatpush1.msra.mxu0 0.0
    %4837 = vmatprep.subr.mxu0 0.0
    %4838 = vmatpush1.msra.mxu0 0.0
    %4839 = vmatprep.subr.mxu0 0.0
    %4840 = vmatpush1.msra.mxu0 0.0
    %4841 = vmatprep.subr.mxu0 0.0
    %4842 = vmatpush1.msra.mxu0 0.0
    %4843 = vmatprep.subr.mxu0 0.0
    %4844 = vmatpush1.msra.mxu0 0.0
    %4845 = vmatprep.mubr.f32.mxu0 0.0
    %4846 = vmatmul.mubr.f32.gmra.mrb[0].mxu0 %v4776
    %v4847 = vpop.f32.mrb[0].mxu0
    %v4848 = vadd.f32 0.0, %v4847
    %v4849 = vpop.f32.mrb[0].mxu0
    %4850 = vmatprep.mubr.f32.mxu0 0.0
    %4851 = vmatmul.mubr.f32.gmra.mrb[0].mxu0 %v4779
    %v4852 = vpop.f32.mrb[0].mxu0
    %v4853 = vadd.f32 0.0, %v4852
    %v4854 = vpop.f32.mrb[0].mxu0
    %4855 = vdwg.mxu0
    %v4857 = vsel %vm2296, %v4848, 0
    %v4860 = vsel %vm2296, %v4853, 0
    %4862 = vmatprep.subr.mxu0 0.0
    %4863 = vmatpush1.msra.mxu0 %v3808
    %4864 = vmatprep.subr.mxu0 0.0
    %4865 = vmatpush1.msra.mxu0 0.0
    %4866 = vmatprep.subr.mxu0 0.0
    %4867 = vmatpush1.msra.mxu0 0.0
    %4868 = vmatprep.subr.mxu0 0.0
    %4869 = vmatpush1.msra.mxu0 0.0
    %4870 = vmatprep.subr.mxu0 0.0
    %4871 = vmatpush1.msra.mxu0 0.0
    %4872 = vmatprep.subr.mxu0 0.0
    %4873 = vmatpush1.msra.mxu0 0.0
    %4874 = vmatprep.subr.mxu0 0.0
    %4875 = vmatpush1.msra.mxu0 0.0
    %4876 = vmatprep.subr.mxu0 0.0
    %4877 = vmatpush1.msra.mxu0 0.0
    %4878 = vmatprep.subr.mxu0 0.0
    %4879 = vmatpush1.msra.mxu0 0.0
    %4880 = vmatprep.subr.mxu0 0.0
    %4881 = vmatpush1.msra.mxu0 0.0
    %4882 = vmatprep.subr.mxu0 0.0
    %4883 = vmatpush1.msra.mxu0 0.0
    %4884 = vmatprep.subr.mxu0 0.0
    %4885 = vmatpush1.msra.mxu0 0.0
    %4886 = vmatprep.subr.mxu0 0.0
    %4887 = vmatpush1.msra.mxu0 0.0
    %4888 = vmatprep.subr.mxu0 0.0
    %4889 = vmatpush1.msra.mxu0 0.0
    %4890 = vmatprep.subr.mxu0 0.0
    %4891 = vmatpush1.msra.mxu0 0.0
    %4892 = vmatprep.subr.mxu0 0.0
    %4893 = vmatpush1.msra.mxu0 0.0
    %4894 = vmatprep.subr.mxu0 0.0
    %4895 = vmatpush1.msra.mxu0 0.0
    %4896 = vmatprep.subr.mxu0 0.0
    %4897 = vmatpush1.msra.mxu0 0.0
    %4898 = vmatprep.subr.mxu0 0.0
    %4899 = vmatpush1.msra.mxu0 0.0
    %4900 = vmatprep.subr.mxu0 0.0
    %4901 = vmatpush1.msra.mxu0 0.0
    %4902 = vmatprep.subr.mxu0 0.0
    %4903 = vmatpush1.msra.mxu0 0.0
    %4904 = vmatprep.subr.mxu0 0.0
    %4905 = vmatpush1.msra.mxu0 0.0
    %4906 = vmatprep.subr.mxu0 0.0
    %4907 = vmatpush1.msra.mxu0 0.0
    %4908 = vmatprep.subr.mxu0 0.0
    %4909 = vmatpush1.msra.mxu0 0.0
    %4910 = vmatprep.subr.mxu0 0.0
    %4911 = vmatpush1.msra.mxu0 0.0
    %4912 = vmatprep.subr.mxu0 0.0
    %4913 = vmatpush1.msra.mxu0 0.0
    %4914 = vmatprep.subr.mxu0 0.0
    %4915 = vmatpush1.msra.mxu0 0.0
    %4916 = vmatprep.subr.mxu0 0.0
    %4917 = vmatpush1.msra.mxu0 0.0
    %4918 = vmatprep.subr.mxu0 0.0
    %4919 = vmatpush1.msra.mxu0 0.0
    %4920 = vmatprep.subr.mxu0 0.0
    %4921 = vmatpush1.msra.mxu0 0.0
    %4922 = vmatprep.subr.mxu0 0.0
    %4923 = vmatpush1.msra.mxu0 0.0
    %4924 = vmatprep.subr.mxu0 0.0
    %4925 = vmatpush1.msra.mxu0 0.0
    %4926 = vmatprep.mubr.f32.mxu0 0.0
    %4927 = vmatmul.mubr.f32.gmra.mrb[0].mxu0 %v4857
    %v4928 = vpop.f32.mrb[0].mxu0
    %v4929 = vadd.f32 0.0, %v4928
    %v4930 = vpop.f32.mrb[0].mxu0
    %4931 = vmatprep.mubr.f32.mxu0 0.0
    %4932 = vmatmul.mubr.f32.gmra.mrb[0].mxu0 %v4860
    %v4933 = vpop.f32.mrb[0].mxu0
    %v4934 = vadd.f32 0.0, %v4933
    %v4935 = vpop.f32.mrb[0].mxu0
    %4936 = vdwg.mxu0
    %v4937 = vadd.f32 %v4654, %v4929
    %v4938 = vadd.f32 %v4655, %v4934
    %v4939 = vld [vmem:[%s15 + $0x11] sm:$0x1]
    %v4940 = vlaneseq
    %v4941 = vshrl.u32 %v4940, 7
    %v4942 = vsub.s32 0, %v4941
    %v4943 = vrot.slane %v4939, %v4942
    %v4944 = vadd.f32 %v4937, %v4943
    %v4945 = vadd.f32 %v4938, %v4943
    %v4946 = vadd.f32 %v3711, %v4944
    %v4947 = vadd.f32 %v3712, %v4945
    %v4948 = vld [vmem:[%s15 + $0x12] sm:$0x1]
    %v4949 = vld [vmem:[%s15 + $0x13] sm:$0x1]
    %v4950 = vsel %vm1313, %v4946, 0.0
    %4951 = vadd.xlane.f32.xlu0 %v4950
    %v4952 = vpop.xlane.xlu0 %4951
    %v4953 = vsel %vm1313, %v4947, 0.0
    %4954 = vadd.xlane.f32.xlu0 %v4953
    %v4955 = vpop.xlane.xlu0 %4954
    %v4956 = vmul.f32 %v4952, %v1320
    %v4957 = vmul.f32 %v4955, %v1320
    %v4958 = vsub.f32 %v4946, %v4956
    %v4959 = vsub.f32 %v4947, %v4957
    %v4960 = vmul.f32 %v4958, %v4958
    %v4961 = vmul.f32 %v4959, %v4959
    %v4962 = vsel %vm1313, %v4960, 0.0
    %4963 = vadd.xlane.f32.xlu0 %v4962
    %v4964 = vpop.xlane.xlu0 %4963
    %v4965 = vsel %vm1313, %v4961, 0.0
    %4966 = vadd.xlane.f32.xlu0 %v4965
    %v4967 = vpop.xlane.xlu0 %4966
    %v4968 = vmul.f32 %v4964, %v1320
    %v4969 = vmul.f32 %v4967, %v1320
    %v4970 = vadd.f32 %v4968, 1e-05
    %v4971 = vadd.f32 %v4969, 1e-05
    %v4972 = vrsqrt.pop %v4970
    %v4973 = vrsqrt.pop %v4971
    %v4974 = vmul.f32 %v4958, %v4972
    %v4975 = vmul.f32 %v4959, %v4973
    %v4976 = vlaneseq
    %v4977 = vshrl.u32 %v4976, 7
    %v4978 = vsub.s32 0, %v4977
    %v4979 = vrot.slane %v4948, %v4978
    %v4980 = vmul.f32 %v4974, %v4979
    %v4981 = vmul.f32 %v4975, %v4979
    %v4982 = vlaneseq
    %v4983 = vshrl.u32 %v4982, 7
    %v4984 = vsub.s32 0, %v4983
    %v4985 = vrot.slane %v4949, %v4984
    %v4986 = vadd.f32 %v4980, %v4985
    %v4987 = vadd.f32 %v4981, %v4985
    %s4988 = scalar_lea.vmem %s12, 32
    %v4989 = vld [vmem:[%s4988] sm:$0xff]
    %v4990 = vld [vmem:[%s4988 + $0x8] sm:$0xff]
    %v4991 = vld [vmem:[%s4988 + $0x10] sm:$0xff]
    %v4992 = vld [vmem:[%s4988 + $0x18] sm:$0xff]
    %v4993 = vld [vmem:[%s15 + $0x14] sm:$0x1]
    %v4994 = vlaneseq
    %v4995 = vshrl.u32 %v4994, 7
    %v4996 = vsub.s32 0, %v4995
    %v4997 = vrot.slane %v4993, %v4996
    %v4999 = vsel %vm1313, %v4986, 0
    %v5002 = vsel %vm1313, %v4987, 0
    %5004 = vmatprep.subr.mxu0 0.0
    %5005 = vmatpush1.msra.mxu0 %v4989
    %5006 = vmatprep.subr.mxu0 0.0
    %5007 = vmatpush1.msra.mxu0 %v4990
    %5008 = vmatprep.subr.mxu0 0.0
    %5009 = vmatpush1.msra.mxu0 %v4991
    %5010 = vmatprep.subr.mxu0 0.0
    %5011 = vmatpush1.msra.mxu0 %v4992
    %5012 = vmatprep.subr.mxu0 0.0
    %5013 = vmatpush1.msra.mxu0 0.0
    %5014 = vmatprep.subr.mxu0 0.0
    %5015 = vmatpush1.msra.mxu0 0.0
    %5016 = vmatprep.subr.mxu0 0.0
    %5017 = vmatpush1.msra.mxu0 0.0
    %5018 = vmatprep.subr.mxu0 0.0
    %5019 = vmatpush1.msra.mxu0 0.0
    %5020 = vmatprep.subr.mxu0 0.0
    %5021 = vmatpush1.msra.mxu0 0.0
    %5022 = vmatprep.subr.mxu0 0.0
    %5023 = vmatpush1.msra.mxu0 0.0
    %5024 = vmatprep.subr.mxu0 0.0
    %5025 = vmatpush1.msra.mxu0 0.0
    %5026 = vmatprep.subr.mxu0 0.0
    %5027 = vmatpush1.msra.mxu0 0.0
    %5028 = vmatprep.subr.mxu0 0.0
    %5029 = vmatpush1.msra.mxu0 0.0
    %5030 = vmatprep.subr.mxu0 0.0
    %5031 = vmatpush1.msra.mxu0 0.0
    %5032 = vmatprep.subr.mxu0 0.0
    %5033 = vmatpush1.msra.mxu0 0.0
    %5034 = vmatprep.subr.mxu0 0.0
    %5035 = vmatpush1.msra.mxu0 0.0
    %5036 = vmatprep.subr.mxu0 0.0
    %5037 = vmatpush1.msra.mxu0 0.0
    %5038 = vmatprep.subr.mxu0 0.0
    %5039 = vmatpush1.msra.mxu0 0.0
    %5040 = vmatprep.subr.mxu0 0.0
    %5041 = vmatpush1.msra.mxu0 0.0
    %5042 = vmatprep.subr.mxu0 0.0
    %5043 = vmatpush1.msra.mxu0 0.0
    %5044 = vmatprep.subr.mxu0 0.0
    %5045 = vmatpush1.msra.mxu0 0.0
    %5046 = vmatprep.subr.mxu0 0.0
    %5047 = vmatpush1.msra.mxu0 0.0
    %5048 = vmatprep.subr.mxu0 0.0
    %5049 = vmatpush1.msra.mxu0 0.0
    %5050 = vmatprep.subr.mxu0 0.0
    %5051 = vmatpush1.msra.mxu0 0.0
    %5052 = vmatprep.subr.mxu0 0.0
    %5053 = vmatpush1.msra.mxu0 0.0
    %5054 = vmatprep.subr.mxu0 0.0
    %5055 = vmatpush1.msra.mxu0 0.0
    %5056 = vmatprep.subr.mxu0 0.0
    %5057 = vmatpush1.msra.mxu0 0.0
    %5058 = vmatprep.subr.mxu0 0.0
    %5059 = vmatpush1.msra.mxu0 0.0
    %5060 = vmatprep.subr.mxu0 0.0
    %5061 = vmatpush1.msra.mxu0 0.0
    %5062 = vmatprep.subr.mxu0 0.0
    %5063 = vmatpush1.msra.mxu0 0.0
    %5064 = vmatprep.subr.mxu0 0.0
    %5065 = vmatpush1.msra.mxu0 0.0
    %5066 = vmatprep.subr.mxu0 0.0
    %5067 = vmatpush1.msra.mxu0 0.0
    %5068 = vmatprep.mubr.f32.mxu0 0.0
    %5069 = vmatmul.mubr.f32.gmra.mrb[0].mxu0 %v4999
    %v5070 = vpop.f32.mrb[0].mxu0
    %v5071 = vadd.f32 %v4997, %v5070
    %v5072 = vpop.f32.mrb[0].mxu0
    %5073 = vmatprep.mubr.f32.mxu0 0.0
    %5074 = vmatmul.mubr.f32.gmra.mrb[0].mxu0 %v5002
    %v5075 = vpop.f32.mrb[0].mxu0
    %v5076 = vadd.f32 %v4997, %v5075
    %v5077 = vpop.f32.mrb[0].mxu0
    %5078 = vdwg.mxu0
    %v5079 = vmul.f32 %v5071, 0.5
    %v5080 = vmul.f32 %v5076, 0.5
    %v5081 = vmul.f32 %v5071, 0.044715
    %v5082 = vmul.f32 %v5076, 0.044715
    %v5083 = vmul.f32 %v5081, %v5071
    %v5084 = vmul.f32 %v5082, %v5076
    %v5085 = vmul.f32 %v5083, %v5071
    %v5086 = vmul.f32 %v5084, %v5076
    %v5087 = vadd.f32 %v5071, %v5085
    %v5088 = vadd.f32 %v5076, %v5086
    %v5089 = vmul.f32 %v5087, 0.7978846
    %v5090 = vmul.f32 %v5088, 0.7978846
    %v5091 = vtanh.pop %v5089
    %v5092 = vtanh.pop %v5090
    %v5093 = vadd.f32 %v5091, 1.0
    %v5094 = vadd.f32 %v5092, 1.0
    %v5095 = vmul.f32 %v5079, %v5093
    %v5096 = vmul.f32 %v5080, %v5094
    %s5097 = scalar_lea.vmem %s13, 64
    %v5098 = vld [vmem:[%s5097] sm:$0xff]
    %v5099 = vld [vmem:[%s5097 + $0x8] sm:$0xff]
    %v5100 = vld [vmem:[%s5097 + $0x10] sm:$0xff]
    %v5101 = vld [vmem:[%s5097 + $0x18] sm:$0xff]
    %v5102 = vld [vmem:[%s5097 + $0x20] sm:$0xff]
    %v5103 = vld [vmem:[%s5097 + $0x28] sm:$0xff]
    %v5104 = vld [vmem:[%s5097 + $0x30] sm:$0xff]
    %v5105 = vld [vmem:[%s5097 + $0x38] sm:$0xff]
    %v5106 = vld [vmem:[%s15 + $0x15] sm:$0x1]
    %v5107 = vlaneseq
    %v5108 = vshrl.u32 %v5107, 7
    %v5109 = vsub.s32 0, %v5108
    %v5110 = vrot.slane %v5106, %v5109
    %v5112 = vsel %vm3589, %v5095, 0
    %v5115 = vsel %vm3589, %v5096, 0
    %5117 = vmatprep.subr.mxu0 0.0
    %5118 = vmatpush1.msra.mxu0 %v5098
    %5119 = vmatprep.subr.mxu0 0.0
    %5120 = vmatpush1.msra.mxu0 %v5099
    %5121 = vmatprep.subr.mxu0 0.0
    %5122 = vmatpush1.msra.mxu0 %v5100
    %5123 = vmatprep.subr.mxu0 0.0
    %5124 = vmatpush1.msra.mxu0 %v5101
    %5125 = vmatprep.subr.mxu0 0.0
    %5126 = vmatpush1.msra.mxu0 %v5102
    %5127 = vmatprep.subr.mxu0 0.0
    %5128 = vmatpush1.msra.mxu0 %v5103
    %5129 = vmatprep.subr.mxu0 0.0
    %5130 = vmatpush1.msra.mxu0 %v5104
    %5131 = vmatprep.subr.mxu0 0.0
    %5132 = vmatpush1.msra.mxu0 %v5105
    %5133 = vmatprep.subr.mxu0 0.0
    %5134 = vmatpush1.msra.mxu0 0.0
    %5135 = vmatprep.subr.mxu0 0.0
    %5136 = vmatpush1.msra.mxu0 0.0
    %5137 = vmatprep.subr.mxu0 0.0
    %5138 = vmatpush1.msra.mxu0 0.0
    %5139 = vmatprep.subr.mxu0 0.0
    %5140 = vmatpush1.msra.mxu0 0.0
    %5141 = vmatprep.subr.mxu0 0.0
    %5142 = vmatpush1.msra.mxu0 0.0
    %5143 = vmatprep.subr.mxu0 0.0
    %5144 = vmatpush1.msra.mxu0 0.0
    %5145 = vmatprep.subr.mxu0 0.0
    %5146 = vmatpush1.msra.mxu0 0.0
    %5147 = vmatprep.subr.mxu0 0.0
    %5148 = vmatpush1.msra.mxu0 0.0
    %5149 = vmatprep.subr.mxu0 0.0
    %5150 = vmatpush1.msra.mxu0 0.0
    %5151 = vmatprep.subr.mxu0 0.0
    %5152 = vmatpush1.msra.mxu0 0.0
    %5153 = vmatprep.subr.mxu0 0.0
    %5154 = vmatpush1.msra.mxu0 0.0
    %5155 = vmatprep.subr.mxu0 0.0
    %5156 = vmatpush1.msra.mxu0 0.0
    %5157 = vmatprep.subr.mxu0 0.0
    %5158 = vmatpush1.msra.mxu0 0.0
    %5159 = vmatprep.subr.mxu0 0.0
    %5160 = vmatpush1.msra.mxu0 0.0
    %5161 = vmatprep.subr.mxu0 0.0
    %5162 = vmatpush1.msra.mxu0 0.0
    %5163 = vmatprep.subr.mxu0 0.0
    %5164 = vmatpush1.msra.mxu0 0.0
    %5165 = vmatprep.subr.mxu0 0.0
    %5166 = vmatpush1.msra.mxu0 0.0
    %5167 = vmatprep.subr.mxu0 0.0
    %5168 = vmatpush1.msra.mxu0 0.0
    %5169 = vmatprep.subr.mxu0 0.0
    %5170 = vmatpush1.msra.mxu0 0.0
    %5171 = vmatprep.subr.mxu0 0.0
    %5172 = vmatpush1.msra.mxu0 0.0
    %5173 = vmatprep.subr.mxu0 0.0
    %5174 = vmatpush1.msra.mxu0 0.0
    %5175 = vmatprep.subr.mxu0 0.0
    %5176 = vmatpush1.msra.mxu0 0.0
    %5177 = vmatprep.subr.mxu0 0.0
    %5178 = vmatpush1.msra.mxu0 0.0
    %5179 = vmatprep.subr.mxu0 0.0
    %5180 = vmatpush1.msra.mxu0 0.0
    %5181 = vmatprep.mubr.f32.mxu0 0.0
    %5182 = vmatmul.mubr.f32.gmra.mrb[0].mxu0 %v5112
    %v5183 = vpop.f32.mrb[0].mxu0
    %v5184 = vadd.f32 %v5110, %v5183
    %v5185 = vpop.f32.mrb[0].mxu0
    %5186 = vmatprep.mubr.f32.mxu0 0.0
    %5187 = vmatmul.mubr.f32.gmra.mrb[0].mxu0 %v5115
    %v5188 = vpop.f32.mrb[0].mxu0
    %v5189 = vadd.f32 %v5110, %v5188
    %v5190 = vpop.f32.mrb[0].mxu0
    %5191 = vdwg.mxu0
    %v5192 = vadd.f32 %v4986, %v5184
    %v5193 = vadd.f32 %v4987, %v5189
    %v5194 = vld [vmem:[%s15 + $0x16] sm:$0x1]
    %v5195 = vld [vmem:[%s15 + $0x17] sm:$0x1]
    %v5196 = vsel %vm1313, %v5192, 0.0
    %5197 = vadd.xlane.f32.xlu0 %v5196
    %v5198 = vpop.xlane.xlu0 %5197
    %v5199 = vsel %vm1313, %v5193, 0.0
    %5200 = vadd.xlane.f32.xlu0 %v5199
    %v5201 = vpop.xlane.xlu0 %5200
    %v5202 = vmul.f32 %v5198, %v1320
    %v5203 = vmul.f32 %v5201, %v1320
    %v5204 = vsub.f32 %v5192, %v5202
    %v5205 = vsub.f32 %v5193, %v5203
    %v5206 = vmul.f32 %v5204, %v5204
    %v5207 = vmul.f32 %v5205, %v5205
    %v5208 = vsel %vm1313, %v5206, 0.0
    %5209 = vadd.xlane.f32.xlu0 %v5208
    %v5210 = vpop.xlane.xlu0 %5209
    %v5211 = vsel %vm1313, %v5207, 0.0
    %5212 = vadd.xlane.f32.xlu0 %v5211
    %v5213 = vpop.xlane.xlu0 %5212
    %v5214 = vmul.f32 %v5210, %v1320
    %v5215 = vmul.f32 %v5213, %v1320
    %v5216 = vadd.f32 %v5214, 1e-05
    %v5217 = vadd.f32 %v5215, 1e-05
    %v5218 = vrsqrt.pop %v5216
    %v5219 = vrsqrt.pop %v5217
    %v5220 = vmul.f32 %v5204, %v5218
    %v5221 = vmul.f32 %v5205, %v5219
    %v5222 = vlaneseq
    %v5223 = vshrl.u32 %v5222, 7
    %v5224 = vsub.s32 0, %v5223
    %v5225 = vrot.slane %v5194, %v5224
    %v5226 = vmul.f32 %v5220, %v5225
    %v5227 = vmul.f32 %v5221, %v5225
    %v5228 = vlaneseq
    %v5229 = vshrl.u32 %v5228, 7
    %v5230 = vsub.s32 0, %v5229
    %v5231 = vrot.slane %v5195, %v5230
    %v5232 = vadd.f32 %v5226, %v5231
    %v5233 = vadd.f32 %v5227, %v5231
    %v5234 = vld [vmem:[%s14] sm:$0x3]
    %v5236 = vsel %vm790, %v5234, 0
    %5238 = vmatprep.subr.mxu0 0.0
    %5239 = vmatpush1.msra.mxu0 %v5232
    %5240 = vmatprep.subr.mxu0 0.0
    %5241 = vmatpush1.msra.mxu0 %v5233
    %5242 = vmatprep.subr.mxu0 0.0
    %5243 = vmatpush1.msra.mxu0 0.0
    %5244 = vmatprep.subr.mxu0 0.0
    %5245 = vmatpush1.msra.mxu0 0.0
    %5246 = vmatprep.subr.mxu0 0.0
    %5247 = vmatpush1.msra.mxu0 0.0
    %5248 = vmatprep.subr.mxu0 0.0
    %5249 = vmatpush1.msra.mxu0 0.0
    %5250 = vmatprep.subr.mxu0 0.0
    %5251 = vmatpush1.msra.mxu0 0.0
    %5252 = vmatprep.subr.mxu0 0.0
    %5253 = vmatpush1.msra.mxu0 0.0
    %5254 = vmatprep.subr.mxu0 0.0
    %5255 = vmatpush1.msra.mxu0 0.0
    %5256 = vmatprep.subr.mxu0 0.0
    %5257 = vmatpush1.msra.mxu0 0.0
    %5258 = vmatprep.subr.mxu0 0.0
    %5259 = vmatpush1.msra.mxu0 0.0
    %5260 = vmatprep.subr.mxu0 0.0
    %5261 = vmatpush1.msra.mxu0 0.0
    %5262 = vmatprep.subr.mxu0 0.0
    %5263 = vmatpush1.msra.mxu0 0.0
    %5264 = vmatprep.subr.mxu0 0.0
    %5265 = vmatpush1.msra.mxu0 0.0
    %5266 = vmatprep.subr.mxu0 0.0
    %5267 = vmatpush1.msra.mxu0 0.0
    %5268 = vmatprep.subr.mxu0 0.0
    %5269 = vmatpush1.msra.mxu0 0.0
    %5270 = vmatprep.subr.mxu0 0.0
    %5271 = vmatpush1.msra.mxu0 0.0
    %5272 = vmatprep.subr.mxu0 0.0
    %5273 = vmatpush1.msra.mxu0 0.0
    %5274 = vmatprep.subr.mxu0 0.0
    %5275 = vmatpush1.msra.mxu0 0.0
    %5276 = vmatprep.subr.mxu0 0.0
    %5277 = vmatpush1.msra.mxu0 0.0
    %5278 = vmatprep.subr.mxu0 0.0
    %5279 = vmatpush1.msra.mxu0 0.0
    %5280 = vmatprep.subr.mxu0 0.0
    %5281 = vmatpush1.msra.mxu0 0.0
    %5282 = vmatprep.subr.mxu0 0.0
    %5283 = vmatpush1.msra.mxu0 0.0
    %5284 = vmatprep.subr.mxu0 0.0
    %5285 = vmatpush1.msra.mxu0 0.0
    %5286 = vmatprep.subr.mxu0 0.0
    %5287 = vmatpush1.msra.mxu0 0.0
    %5288 = vmatprep.subr.mxu0 0.0
    %5289 = vmatpush1.msra.mxu0 0.0
    %5290 = vmatprep.subr.mxu0 0.0
    %5291 = vmatpush1.msra.mxu0 0.0
    %5292 = vmatprep.subr.mxu0 0.0
    %5293 = vmatpush1.msra.mxu0 0.0
    %5294 = vmatprep.subr.mxu0 0.0
    %5295 = vmatpush1.msra.mxu0 0.0
    %5296 = vmatprep.subr.mxu0 0.0
    %5297 = vmatpush1.msra.mxu0 0.0
    %5298 = vmatprep.subr.mxu0 0.0
    %5299 = vmatpush1.msra.mxu0 0.0
    %5300 = vmatprep.subr.mxu0 0.0
    %5301 = vmatpush1.msra.mxu0 0.0
    %5302 = vmatprep.mubr.f32.mxu0 0.0
    %5303 = vmatmul.mubr.f32.gmra.mrb[0].mxu0 %v5236
    %v5304 = vpop.f32.mrb[0].mxu0
    %v5305 = vadd.f32 0.0, %v5304
    %v5306 = vpop.f32.mrb[0].mxu0
    %5307 = vdwg.mxu0
    %vm5308 = vcmask 254976
    %5309 = vst.msk [vmem:[#allocation2] sm:$0x3] %vm5308, %v5305
    // Predicated region
    $region66: #{w2v2_forward.1} parent=1 // pred_check
      _
    $region67: #{w2v2_forward.1} parent=1 // pred_check_branch
      %5311 = sbr.rel (0) target = $region69
    $region68: #{w2v2_forward.1} parent=1 // pred_region
      %s5313 = ssub.s32 32, 32
      %5314 = vsyncadd [#allocation3], %s5313
      %s5316 = sshll.u32 [#allocation2], 4
      %s5317 = int_to_ptr.vmem [resolvable:$true] %s5316
      %5319 = dma.vmem_to_hbm [thread:$0]  %s5317, 32, %s16, [#allocation3]
    $region69: #{w2v2_forward.1} parent=1 // pred_fallthru
      _
    // Predicated region
    $region70: #{w2v2_forward.1} parent=1 // pred_check
      _
    $region71: #{w2v2_forward.1} parent=1 // pred_check_branch
      %5321 = sbr.rel (0) target = $region73
    $region72: #{w2v2_forward.1} parent=1 // pred_region
      %5322 = dma.done [#allocation3], 32
    $region73: #{w2v2_forward.1} parent=1 // pred_fallthru
      _
    %5323 = vsyncpa [#allocation3], 1

</llo_original>
